<compile_context>
chip_gen: v7x
topology: tpu7x:2x2x1
jax: 0.10.0
libtpu: 0.0.40
codegen_flags: <defaults>
</compile_context>

<pallas_src>
import functools

import jax
import jax.numpy as jnp
from jax.experimental import pallas as pl
from jax.experimental.pallas import tpu as pltpu


# ---------------------------------------------------------------------------
# Kernel
# ---------------------------------------------------------------------------
def _conv_s2d_kernel(x_ref, w_ref, b_ref, o_ref, *, apply_gelu, tr):
    """Fused 3x3/s2 conv (+ folded BN bias, optional exact GELU) on s2d planes.

    x_ref : (1, Hs, 4*Cin, Ws)  per-batch space-to-depth planes (VMEM resident)
    w_ref : (4, Cout, 4*Cin)    shift-packed folded conv weights
    b_ref : (Cout, 1)           folded BN bias
    o_ref : (1, TR, Cout, Wo)   output rows [r*TR, (r+1)*TR)
    """
    cout = o_ref.shape[2]
    wo = o_ref.shape[3]
    i0 = pl.program_id(1) * tr

    w = w_ref[...]                              # (4, Cout, 4Cin)
    b = b_ref[...].astype(jnp.float32)          # (Cout, 1)

    for rr in range(tr):                        # static unroll over block rows
        acc = jnp.zeros((cout, wo), jnp.float32)
        for dr in (0, 1):
            # one contiguous (4Cin, Ws) slab; dynamic index is on a leading dim
            row = x_ref[0, i0 + rr + dr, :, :]
            for dc in (0, 1):
                acc = acc + jnp.dot(
                    w[2 * dr + dc],
                    row[:, dc:dc + wo],
                    preferred_element_type=jnp.float32,
                )
        acc = acc + b
        if apply_gelu:
            # exact erf-based GELU (matches torch.nn.GELU default)
            acc = 0.5 * acc * (1.0 + jax.lax.erf(acc * 0.7071067811865475))
        o_ref[0, rr, :, :] = acc.astype(o_ref.dtype)


# ---------------------------------------------------------------------------
# Layout glue (plain JAX, 1x data movement)
# ---------------------------------------------------------------------------
def _pick_row_block(ho):
    for tr in (16, 8, 4, 2):
        if ho % tr == 0:
            return tr
    return 1


def _pack_shift_weights(w_hwio):
    """(3,3,Cin,Cout) HWIO -> (4, Cout, 4*Cin) shift-packed weights.

    Tap (ki, kj) acts on space-to-depth plane (pr, pc) = (ki%2, kj%2) with
    shift (dr, dc) = (ki//2, kj//2).  Unused (shift, plane) slots are zero, so
    4 dots with K = 4*Cin reproduce the 9-tap conv exactly.
    """
    kh, kw, cin, cout = w_hwio.shape
    wp = jnp.zeros((2, 2, cout, 2, 2, cin), w_hwio.dtype)
    for ki in range(kh):
        for kj in range(kw):
            dr, pr = ki // 2, ki % 2
            dc, pc = kj // 2, kj % 2
            wp = wp.at[dr, dc, :, pr, pc, :].set(jnp.transpose(w_hwio[ki, kj]))
    return wp.reshape(4, cout, 4 * cin)


def _space_to_depth(x, layout):
    """Pad for a 3x3/s2/p1 conv and split H/W by parity.

    Returns (xs, ho, wo) with xs of shape (N, Ho+1, 4*C, Wo+1), channel order
    (row_parity, col_parity, c) so it matches _pack_shift_weights.
    """
    if layout == "NCHW":
        n, c, h, w = x.shape
    else:  # "NHCW" -- the kernel's native output layout
        n, h, c, w = x.shape
    ho = (h - 1) // 2 + 1
    wo = (w - 1) // 2 + 1
    hs, ws = ho + 1, wo + 1
    hp, wp = 2 * hs, 2 * ws

    if layout == "NCHW":
        xpad = jnp.pad(x, ((0, 0), (0, 0), (1, hp - h - 1), (1, wp - w - 1)))
        xs = xpad.reshape(n, c, hs, 2, ws, 2)          # (n, c, hs, pr, ws, pc)
        xs = jnp.transpose(xs, (0, 2, 3, 5, 1, 4))     # (n, hs, pr, pc, c, ws)
    else:
        xpad = jnp.pad(x, ((0, 0), (1, hp - h - 1), (0, 0), (1, wp - w - 1)))
        xs = xpad.reshape(n, hs, 2, c, ws, 2)          # (n, hs, pr, c, ws, pc)
        xs = jnp.transpose(xs, (0, 1, 2, 5, 3, 4))     # (n, hs, pr, pc, c, ws)
    return xs.reshape(n, hs, 4 * c, ws), ho, wo


# ---------------------------------------------------------------------------
# Fused ConvNorm(+GELU) wrapper
# ---------------------------------------------------------------------------
def conv_bn_act(x, w_hwio, bias, *, apply_gelu,
                input_layout="NCHW", output_layout="NCHW"):
    assert w_hwio.shape[0] == 3 and w_hwio.shape[1] == 3, "stem uses 3x3/s2/p1"
    xs, ho, wo = _space_to_depth(x, input_layout)
    n, hs, c4, ws = xs.shape
    cout = w_hwio.shape[3]

    w_packed = _pack_shift_weights(w_hwio)             # (4, Cout, 4Cin)
    b2 = bias.reshape(cout, 1)

    tr = _pick_row_block(ho)
    kernel = functools.partial(_conv_s2d_kernel, apply_gelu=apply_gelu, tr=tr)

    out = pl.pallas_call(
        kernel,
        out_shape=jax.ShapeDtypeStruct((n, ho, cout, wo), x.dtype),
        grid=(n, ho // tr),
        in_specs=[
            # full per-batch s2d planes, constant along the row axis -> one DMA per batch
            pl.BlockSpec((1, hs, c4, ws), lambda b, r: (b, 0, 0, 0)),
            pl.BlockSpec((4, cout, c4), lambda b, r: (0, 0, 0)),
            pl.BlockSpec((cout, 1), lambda b, r: (0, 0)),
        ],
        out_specs=pl.BlockSpec((1, tr, cout, wo), lambda b, r: (b, r, 0, 0)),
        compiler_params=pltpu.CompilerParams(
            dimension_semantics=("parallel", "parallel"),
            vmem_limit_bytes=48 * 1024 * 1024,   # headroom within v7x's 64 MiB VMEM
        ),
    )(xs, w_packed, b2)                                # (N, Ho, Cout, Wo)

    if output_layout == "NCHW":
        out = jnp.transpose(out, (0, 2, 1, 3))
    return out


# ---------------------------------------------------------------------------
# Parameter construction (BN folded at init state) and stem
# ---------------------------------------------------------------------------
def fuse_conv_bn(w_hwio, gamma, beta, mean, var, eps=1e-5):
    scale = gamma / jnp.sqrt(var + eps)
    return w_hwio * scale[None, None, None, :], beta - scale * mean


def make_recnext_stem_params(key, in_channels, out_channels, kernel_size=3):
    mid = out_channels // 2
    k1, k2 = jax.random.split(key)

    def conv_w(k, cin, cout):
        fan_in = cin * kernel_size * kernel_size
        return jax.random.normal(
            k, (kernel_size, kernel_size, cin, cout), jnp.float32
        ) * (1.0 / jnp.sqrt(jnp.float32(fan_in)))

    w1 = conv_w(k1, in_channels, mid)
    w2 = conv_w(k2, mid, out_channels)

    ones = lambda c: jnp.ones((c,), jnp.float32)
    zeros = lambda c: jnp.zeros((c,), jnp.float32)
    # BN in __init__ state (bn_weight_init=1), inference mode, eps=1e-5
    w1f, b1f = fuse_conv_bn(w1, ones(mid), zeros(mid), zeros(mid), ones(mid))
    w2f, b2f = fuse_conv_bn(w2, ones(out_channels), zeros(out_channels),
                            zeros(out_channels), ones(out_channels))
    return (w1f, b1f), (w2f, b2f)


def recnext_stem(x_nchw, params):
    (w1, b1), (w2, b2) = params
    # TODO(synk): fuse both convs + GELU into a single pallas_call (VMEM-resident
    # haloed intermediate) to also remove the intermediate HBM round trip.
    y = conv_bn_act(x_nchw, w1, b1, apply_gelu=True,
                    input_layout="NCHW", output_layout="NHCW")
    out = conv_bn_act(y, w2, b2, apply_gelu=False,
                      input_layout="NHCW", output_layout="NCHW")
    return out


# ---------------------------------------------------------------------------
# Pure-JAX reference
# ---------------------------------------------------------------------------
def reference_stem(x_nchw, params):
    (w1, b1), (w2, b2) = params
    x = jnp.transpose(x_nchw, (0, 2, 3, 1))

    def conv(y, w, b):
        y = jax.lax.conv_general_dilated(
            y, w, (2, 2), ((1, 1), (1, 1)),
            dimension_numbers=("NHWC", "HWIO", "NHWC"))
        return y + b[None, None, None, :]

    x = conv(x, w1, b1)
    x = 0.5 * x * (1.0 + jax.lax.erf(x * 0.7071067811865475))
    x = conv(x, w2, b2)
    return jnp.transpose(x, (0, 3, 1, 2))


if __name__ == "__main__":
    key = jax.random.PRNGKey(0)
    kx, kp = jax.random.split(key)

    in_channels, out_channels = 4, 32
    x = jax.random.normal(kx, (2, in_channels, 16, 16), jnp.float32)  # NCHW
    params = make_recnext_stem_params(kp, in_channels, out_channels)

    out = jax.jit(recnext_stem)(x, params)
    out = jax.block_until_ready(out)

    assert out.shape == (2, out_channels, 4, 4), out.shape
    ref = reference_stem(x, params)
    assert jnp.allclose(out, ref, atol=1e-4, rtol=1e-4), float(
        jnp.max(jnp.abs(out - ref)))
    print("KERNEL_OK")
</pallas_src>

<mosaic_0001>
module attributes {stable_mosaic.version = 11 : i64} {
  func.func @_conv_s2d_kernel(%arg0: i32, %arg1: i32, %arg2: memref<1x9x16x9xf32, #tpu.memory_space<vmem>>, %arg3: memref<4x16x16xf32, #tpu.memory_space<vmem>>, %arg4: memref<16x1xf32, #tpu.memory_space<vmem>>, %arg5: memref<1x8x16x8xf32, #tpu.memory_space<vmem>>) attributes {dimension_semantics = [#tpu.dimension_semantics<parallel>, #tpu.dimension_semantics<parallel>], iteration_bounds = array<i64: 2, 1>, scalar_prefetch = 0 : i64, scratch_operands = 0 : i64, tpu.core_type = #tpu.core_type<tc>, window_params = [{transform_indices = @transform_0, window_bounds = array<i64: 1, 9, 16, 9>}, {pipeline_mode = #tpu.pipeline_mode<synchronous>, transform_indices = @transform_1, window_bounds = array<i64: 4, 16, 16>}, {pipeline_mode = #tpu.pipeline_mode<synchronous>, transform_indices = @transform_2, window_bounds = array<i64: 16, 1>}, {transform_indices = @transform_3, window_bounds = array<i64: 1, 8, 16, 8>}]} {
    %c8_i32 = arith.constant 8 : i32
    %0 = arith.muli %arg1, %c8_i32 : i32
    %c0 = arith.constant 0 : index
    %c0_0 = arith.constant 0 : index
    %c0_1 = arith.constant 0 : index
    %1 = vector.load %arg3[%c0, %c0_0, %c0_1] : memref<4x16x16xf32, #tpu.memory_space<vmem>>, vector<4x16x16xf32>
    %c0_2 = arith.constant 0 : index
    %c0_3 = arith.constant 0 : index
    %2 = vector.load %arg4[%c0_2, %c0_3] : memref<16x1xf32, #tpu.memory_space<vmem>>, vector<16x1xf32>
    %cst = arith.constant 0.000000e+00 : f32
    %3 = vector.broadcast %cst : f32 to vector<16x8xf32>
    %c0_i32 = arith.constant 0 : i32
    %4 = arith.addi %0, %c0_i32 : i32
    %c0_i32_4 = arith.constant 0 : i32
    %5 = arith.addi %4, %c0_i32_4 : i32
    %c0_5 = arith.constant 0 : index
    %6 = arith.index_cast %5 : i32 to index
    %c0_6 = arith.constant 0 : index
    %c0_7 = arith.constant 0 : index
    %7 = vector.load %arg2[%c0_5, %6, %c0_6, %c0_7] : memref<1x9x16x9xf32, #tpu.memory_space<vmem>>, vector<1x1x16x9xf32>
    %8 = vector.shape_cast %7 : vector<1x1x16x9xf32> to vector<16x9xf32>
    %9 = vector.extract_strided_slice %1 {offsets = [0, 0, 0], sizes = [1, 16, 16], strides = [1, 1, 1]} : vector<4x16x16xf32> to vector<1x16x16xf32>
    %10 = vector.shape_cast %9 : vector<1x16x16xf32> to vector<16x16xf32>
    %11 = vector.extract_strided_slice %8 {offsets = [0, 0], sizes = [16, 8], strides = [1, 1]} : vector<16x9xf32> to vector<16x8xf32>
    %cst_8 = arith.constant dense<0.000000e+00> : vector<16x8xf32>
    %12 = tpu.matmul %10, %11, %cst_8 {dimension_numbers = #tpu.dot_dimension_numbers<[1], [0], [0], [1], [0, 0, 1, 1], [], []>} : vector<16x16xf32>, vector<16x8xf32>, vector<16x8xf32> -> vector<16x8xf32>
    %13 = arith.addf %3, %12 : vector<16x8xf32>
    %14 = vector.extract_strided_slice %1 {offsets = [1, 0, 0], sizes = [1, 16, 16], strides = [1, 1, 1]} : vector<4x16x16xf32> to vector<1x16x16xf32>
    %15 = vector.shape_cast %14 : vector<1x16x16xf32> to vector<16x16xf32>
    %16 = vector.extract_strided_slice %8 {offsets = [0, 1], sizes = [16, 8], strides = [1, 1]} : vector<16x9xf32> to vector<16x8xf32>
    %cst_9 = arith.constant dense<0.000000e+00> : vector<16x8xf32>
    %17 = tpu.matmul %15, %16, %cst_9 {dimension_numbers = #tpu.dot_dimension_numbers<[1], [0], [0], [1], [0, 0, 1, 1], [], []>} : vector<16x16xf32>, vector<16x8xf32>, vector<16x8xf32> -> vector<16x8xf32>
    %18 = arith.addf %13, %17 : vector<16x8xf32>
    %c0_i32_10 = arith.constant 0 : i32
    %19 = arith.addi %0, %c0_i32_10 : i32
    %c1_i32 = arith.constant 1 : i32
    %20 = arith.addi %19, %c1_i32 : i32
    %c0_11 = arith.constant 0 : index
    %21 = arith.index_cast %20 : i32 to index
    %c0_12 = arith.constant 0 : index
    %c0_13 = arith.constant 0 : index
    %22 = vector.load %arg2[%c0_11, %21, %c0_12, %c0_13] : memref<1x9x16x9xf32, #tpu.memory_space<vmem>>, vector<1x1x16x9xf32>
    %23 = vector.shape_cast %22 : vector<1x1x16x9xf32> to vector<16x9xf32>
    %24 = vector.extract_strided_slice %1 {offsets = [2, 0, 0], sizes = [1, 16, 16], strides = [1, 1, 1]} : vector<4x16x16xf32> to vector<1x16x16xf32>
    %25 = vector.shape_cast %24 : vector<1x16x16xf32> to vector<16x16xf32>
    %26 = vector.extract_strided_slice %23 {offsets = [0, 0], sizes = [16, 8], strides = [1, 1]} : vector<16x9xf32> to vector<16x8xf32>
    %cst_14 = arith.constant dense<0.000000e+00> : vector<16x8xf32>
    %27 = tpu.matmul %25, %26, %cst_14 {dimension_numbers = #tpu.dot_dimension_numbers<[1], [0], [0], [1], [0, 0, 1, 1], [], []>} : vector<16x16xf32>, vector<16x8xf32>, vector<16x8xf32> -> vector<16x8xf32>
    %28 = arith.addf %18, %27 : vector<16x8xf32>
    %29 = vector.extract_strided_slice %1 {offsets = [3, 0, 0], sizes = [1, 16, 16], strides = [1, 1, 1]} : vector<4x16x16xf32> to vector<1x16x16xf32>
    %30 = vector.shape_cast %29 : vector<1x16x16xf32> to vector<16x16xf32>
    %31 = vector.extract_strided_slice %23 {offsets = [0, 1], sizes = [16, 8], strides = [1, 1]} : vector<16x9xf32> to vector<16x8xf32>
    %cst_15 = arith.constant dense<0.000000e+00> : vector<16x8xf32>
    %32 = tpu.matmul %30, %31, %cst_15 {dimension_numbers = #tpu.dot_dimension_numbers<[1], [0], [0], [1], [0, 0, 1, 1], [], []>} : vector<16x16xf32>, vector<16x8xf32>, vector<16x8xf32> -> vector<16x8xf32>
    %33 = arith.addf %28, %32 : vector<16x8xf32>
    %34 = vector.broadcast %2 : vector<16x1xf32> to vector<16x8xf32>
    %35 = arith.addf %33, %34 : vector<16x8xf32>
    %cst_16 = arith.constant 5.000000e-01 : f32
    %36 = vector.broadcast %cst_16 : f32 to vector<16x8xf32>
    %37 = arith.mulf %36, %35 : vector<16x8xf32>
    %cst_17 = arith.constant 0.707106769 : f32
    %38 = vector.broadcast %cst_17 : f32 to vector<16x8xf32>
    %39 = arith.mulf %35, %38 : vector<16x8xf32>
    %40 = math.erf %39 : vector<16x8xf32>
    %cst_18 = arith.constant 1.000000e+00 : f32
    %41 = vector.broadcast %cst_18 : f32 to vector<16x8xf32>
    %42 = arith.addf %41, %40 : vector<16x8xf32>
    %43 = arith.mulf %37, %42 : vector<16x8xf32>
    %c0_19 = arith.constant 0 : index
    %c0_20 = arith.constant 0 : index
    %c0_21 = arith.constant 0 : index
    %c0_22 = arith.constant 0 : index
    %44 = vector.load %arg5[%c0_19, %c0_20, %c0_21, %c0_22] : memref<1x8x16x8xf32, #tpu.memory_space<vmem>>, vector<1x1x16x8xf32>
    %45 = vector.shape_cast %44 : vector<1x1x16x8xf32> to vector<16x8xf32>
    %46 = vector.shape_cast %43 : vector<16x8xf32> to vector<1x1x16x8xf32>
    tpu.vector_store %arg5[%c0_19, %c0_20, %c0_21, %c0_22], %46 {strides = array<i32>} : memref<1x8x16x8xf32, #tpu.memory_space<vmem>>, vector<1x1x16x8xf32>,
    %cst_23 = arith.constant 0.000000e+00 : f32
    %47 = vector.broadcast %cst_23 : f32 to vector<16x8xf32>
    %c1_i32_24 = arith.constant 1 : i32
    %48 = arith.addi %0, %c1_i32_24 : i32
    %c0_i32_25 = arith.constant 0 : i32
    %49 = arith.addi %48, %c0_i32_25 : i32
    %c0_26 = arith.constant 0 : index
    %50 = arith.index_cast %49 : i32 to index
    %c0_27 = arith.constant 0 : index
    %c0_28 = arith.constant 0 : index
    %51 = vector.load %arg2[%c0_26, %50, %c0_27, %c0_28] : memref<1x9x16x9xf32, #tpu.memory_space<vmem>>, vector<1x1x16x9xf32>
    %52 = vector.shape_cast %51 : vector<1x1x16x9xf32> to vector<16x9xf32>
    %53 = vector.extract_strided_slice %1 {offsets = [0, 0, 0], sizes = [1, 16, 16], strides = [1, 1, 1]} : vector<4x16x16xf32> to vector<1x16x16xf32>
    %54 = vector.shape_cast %53 : vector<1x16x16xf32> to vector<16x16xf32>
    %55 = vector.extract_strided_slice %52 {offsets = [0, 0], sizes = [16, 8], strides = [1, 1]} : vector<16x9xf32> to vector<16x8xf32>
    %cst_29 = arith.constant dense<0.000000e+00> : vector<16x8xf32>
    %56 = tpu.matmul %54, %55, %cst_29 {dimension_numbers = #tpu.dot_dimension_numbers<[1], [0], [0], [1], [0, 0, 1, 1], [], []>} : vector<16x16xf32>, vector<16x8xf32>, vector<16x8xf32> -> vector<16x8xf32>
    %57 = arith.addf %47, %56 : vector<16x8xf32>
    %58 = vector.extract_strided_slice %1 {offsets = [1, 0, 0], sizes = [1, 16, 16], strides = [1, 1, 1]} : vector<4x16x16xf32> to vector<1x16x16xf32>
    %59 = vector.shape_cast %58 : vector<1x16x16xf32> to vector<16x16xf32>
    %60 = vector.extract_strided_slice %52 {offsets = [0, 1], sizes = [16, 8], strides = [1, 1]} : vector<16x9xf32> to vector<16x8xf32>
    %cst_30 = arith.constant dense<0.000000e+00> : vector<16x8xf32>
    %61 = tpu.matmul %59, %60, %cst_30 {dimension_numbers = #tpu.dot_dimension_numbers<[1], [0], [0], [1], [0, 0, 1, 1], [], []>} : vector<16x16xf32>, vector<16x8xf32>, vector<16x8xf32> -> vector<16x8xf32>
    %62 = arith.addf %57, %61 : vector<16x8xf32>
    %c1_i32_31 = arith.constant 1 : i32
    %63 = arith.addi %0, %c1_i32_31 : i32
    %c1_i32_32 = arith.constant 1 : i32
    %64 = arith.addi %63, %c1_i32_32 : i32
    %c0_33 = arith.constant 0 : index
    %65 = arith.index_cast %64 : i32 to index
    %c0_34 = arith.constant 0 : index
    %c0_35 = arith.constant 0 : index
    %66 = vector.load %arg2[%c0_33, %65, %c0_34, %c0_35] : memref<1x9x16x9xf32, #tpu.memory_space<vmem>>, vector<1x1x16x9xf32>
    %67 = vector.shape_cast %66 : vector<1x1x16x9xf32> to vector<16x9xf32>
    %68 = vector.extract_strided_slice %1 {offsets = [2, 0, 0], sizes = [1, 16, 16], strides = [1, 1, 1]} : vector<4x16x16xf32> to vector<1x16x16xf32>
    %69 = vector.shape_cast %68 : vector<1x16x16xf32> to vector<16x16xf32>
    %70 = vector.extract_strided_slice %67 {offsets = [0, 0], sizes = [16, 8], strides = [1, 1]} : vector<16x9xf32> to vector<16x8xf32>
    %cst_36 = arith.constant dense<0.000000e+00> : vector<16x8xf32>
    %71 = tpu.matmul %69, %70, %cst_36 {dimension_numbers = #tpu.dot_dimension_numbers<[1], [0], [0], [1], [0, 0, 1, 1], [], []>} : vector<16x16xf32>, vector<16x8xf32>, vector<16x8xf32> -> vector<16x8xf32>
    %72 = arith.addf %62, %71 : vector<16x8xf32>
    %73 = vector.extract_strided_slice %1 {offsets = [3, 0, 0], sizes = [1, 16, 16], strides = [1, 1, 1]} : vector<4x16x16xf32> to vector<1x16x16xf32>
    %74 = vector.shape_cast %73 : vector<1x16x16xf32> to vector<16x16xf32>
    %75 = vector.extract_strided_slice %67 {offsets = [0, 1], sizes = [16, 8], strides = [1, 1]} : vector<16x9xf32> to vector<16x8xf32>
    %cst_37 = arith.constant dense<0.000000e+00> : vector<16x8xf32>
    %76 = tpu.matmul %74, %75, %cst_37 {dimension_numbers = #tpu.dot_dimension_numbers<[1], [0], [0], [1], [0, 0, 1, 1], [], []>} : vector<16x16xf32>, vector<16x8xf32>, vector<16x8xf32> -> vector<16x8xf32>
    %77 = arith.addf %72, %76 : vector<16x8xf32>
    %78 = vector.broadcast %2 : vector<16x1xf32> to vector<16x8xf32>
    %79 = arith.addf %77, %78 : vector<16x8xf32>
    %cst_38 = arith.constant 5.000000e-01 : f32
    %80 = vector.broadcast %cst_38 : f32 to vector<16x8xf32>
    %81 = arith.mulf %80, %79 : vector<16x8xf32>
    %cst_39 = arith.constant 0.707106769 : f32
    %82 = vector.broadcast %cst_39 : f32 to vector<16x8xf32>
    %83 = arith.mulf %79, %82 : vector<16x8xf32>
    %84 = math.erf %83 : vector<16x8xf32>
    %cst_40 = arith.constant 1.000000e+00 : f32
    %85 = vector.broadcast %cst_40 : f32 to vector<16x8xf32>
    %86 = arith.addf %85, %84 : vector<16x8xf32>
    %87 = arith.mulf %81, %86 : vector<16x8xf32>
    %c0_41 = arith.constant 0 : index
    %c1 = arith.constant 1 : index
    %c0_42 = arith.constant 0 : index
    %c0_43 = arith.constant 0 : index
    %88 = vector.load %arg5[%c0_41, %c1, %c0_42, %c0_43] : memref<1x8x16x8xf32, #tpu.memory_space<vmem>>, vector<1x1x16x8xf32>
    %89 = vector.shape_cast %88 : vector<1x1x16x8xf32> to vector<16x8xf32>
    %90 = vector.shape_cast %87 : vector<16x8xf32> to vector<1x1x16x8xf32>
    tpu.vector_store %arg5[%c0_41, %c1, %c0_42, %c0_43], %90 {strides = array<i32>} : memref<1x8x16x8xf32, #tpu.memory_space<vmem>>, vector<1x1x16x8xf32>,
    %cst_44 = arith.constant 0.000000e+00 : f32
    %91 = vector.broadcast %cst_44 : f32 to vector<16x8xf32>
    %c2_i32 = arith.constant 2 : i32
    %92 = arith.addi %0, %c2_i32 : i32
    %c0_i32_45 = arith.constant 0 : i32
    %93 = arith.addi %92, %c0_i32_45 : i32
    %c0_46 = arith.constant 0 : index
    %94 = arith.index_cast %93 : i32 to index
    %c0_47 = arith.constant 0 : index
    %c0_48 = arith.constant 0 : index
    %95 = vector.load %arg2[%c0_46, %94, %c0_47, %c0_48] : memref<1x9x16x9xf32, #tpu.memory_space<vmem>>, vector<1x1x16x9xf32>
    %96 = vector.shape_cast %95 : vector<1x1x16x9xf32> to vector<16x9xf32>
    %97 = vector.extract_strided_slice %1 {offsets = [0, 0, 0], sizes = [1, 16, 16], strides = [1, 1, 1]} : vector<4x16x16xf32> to vector<1x16x16xf32>
    %98 = vector.shape_cast %97 : vector<1x16x16xf32> to vector<16x16xf32>
    %99 = vector.extract_strided_slice %96 {offsets = [0, 0], sizes = [16, 8], strides = [1, 1]} : vector<16x9xf32> to vector<16x8xf32>
    %cst_49 = arith.constant dense<0.000000e+00> : vector<16x8xf32>
    %100 = tpu.matmul %98, %99, %cst_49 {dimension_numbers = #tpu.dot_dimension_numbers<[1], [0], [0], [1], [0, 0, 1, 1], [], []>} : vector<16x16xf32>, vector<16x8xf32>, vector<16x8xf32> -> vector<16x8xf32>
    %101 = arith.addf %91, %100 : vector<16x8xf32>
    %102 = vector.extract_strided_slice %1 {offsets = [1, 0, 0], sizes = [1, 16, 16], strides = [1, 1, 1]} : vector<4x16x16xf32> to vector<1x16x16xf32>
    %103 = vector.shape_cast %102 : vector<1x16x16xf32> to vector<16x16xf32>
    %104 = vector.extract_strided_slice %96 {offsets = [0, 1], sizes = [16, 8], strides = [1, 1]} : vector<16x9xf32> to vector<16x8xf32>
    %cst_50 = arith.constant dense<0.000000e+00> : vector<16x8xf32>
    %105 = tpu.matmul %103, %104, %cst_50 {dimension_numbers = #tpu.dot_dimension_numbers<[1], [0], [0], [1], [0, 0, 1, 1], [], []>} : vector<16x16xf32>, vector<16x8xf32>, vector<16x8xf32> -> vector<16x8xf32>
    %106 = arith.addf %101, %105 : vector<16x8xf32>
    %c2_i32_51 = arith.constant 2 : i32
    %107 = arith.addi %0, %c2_i32_51 : i32
    %c1_i32_52 = arith.constant 1 : i32
    %108 = arith.addi %107, %c1_i32_52 : i32
    %c0_53 = arith.constant 0 : index
    %109 = arith.index_cast %108 : i32 to index
    %c0_54 = arith.constant 0 : index
    %c0_55 = arith.constant 0 : index
    %110 = vector.load %arg2[%c0_53, %109, %c0_54, %c0_55] : memref<1x9x16x9xf32, #tpu.memory_space<vmem>>, vector<1x1x16x9xf32>
    %111 = vector.shape_cast %110 : vector<1x1x16x9xf32> to vector<16x9xf32>
    %112 = vector.extract_strided_slice %1 {offsets = [2, 0, 0], sizes = [1, 16, 16], strides = [1, 1, 1]} : vector<4x16x16xf32> to vector<1x16x16xf32>
    %113 = vector.shape_cast %112 : vector<1x16x16xf32> to vector<16x16xf32>
    %114 = vector.extract_strided_slice %111 {offsets = [0, 0], sizes = [16, 8], strides = [1, 1]} : vector<16x9xf32> to vector<16x8xf32>
    %cst_56 = arith.constant dense<0.000000e+00> : vector<16x8xf32>
    %115 = tpu.matmul %113, %114, %cst_56 {dimension_numbers = #tpu.dot_dimension_numbers<[1], [0], [0], [1], [0, 0, 1, 1], [], []>} : vector<16x16xf32>, vector<16x8xf32>, vector<16x8xf32> -> vector<16x8xf32>
    %116 = arith.addf %106, %115 : vector<16x8xf32>
    %117 = vector.extract_strided_slice %1 {offsets = [3, 0, 0], sizes = [1, 16, 16], strides = [1, 1, 1]} : vector<4x16x16xf32> to vector<1x16x16xf32>
    %118 = vector.shape_cast %117 : vector<1x16x16xf32> to vector<16x16xf32>
    %119 = vector.extract_strided_slice %111 {offsets = [0, 1], sizes = [16, 8], strides = [1, 1]} : vector<16x9xf32> to vector<16x8xf32>
    %cst_57 = arith.constant dense<0.000000e+00> : vector<16x8xf32>
    %120 = tpu.matmul %118, %119, %cst_57 {dimension_numbers = #tpu.dot_dimension_numbers<[1], [0], [0], [1], [0, 0, 1, 1], [], []>} : vector<16x16xf32>, vector<16x8xf32>, vector<16x8xf32> -> vector<16x8xf32>
    %121 = arith.addf %116, %120 : vector<16x8xf32>
    %122 = vector.broadcast %2 : vector<16x1xf32> to vector<16x8xf32>
    %123 = arith.addf %121, %122 : vector<16x8xf32>
    %cst_58 = arith.constant 5.000000e-01 : f32
    %124 = vector.broadcast %cst_58 : f32 to vector<16x8xf32>
    %125 = arith.mulf %124, %123 : vector<16x8xf32>
    %cst_59 = arith.constant 0.707106769 : f32
    %126 = vector.broadcast %cst_59 : f32 to vector<16x8xf32>
    %127 = arith.mulf %123, %126 : vector<16x8xf32>
    %128 = math.erf %127 : vector<16x8xf32>
    %cst_60 = arith.constant 1.000000e+00 : f32
    %129 = vector.broadcast %cst_60 : f32 to vector<16x8xf32>
    %130 = arith.addf %129, %128 : vector<16x8xf32>
    %131 = arith.mulf %125, %130 : vector<16x8xf32>
    %c0_61 = arith.constant 0 : index
    %c2 = arith.constant 2 : index
    %c0_62 = arith.constant 0 : index
    %c0_63 = arith.constant 0 : index
    %132 = vector.load %arg5[%c0_61, %c2, %c0_62, %c0_63] : memref<1x8x16x8xf32, #tpu.memory_space<vmem>>, vector<1x1x16x8xf32>
    %133 = vector.shape_cast %132 : vector<1x1x16x8xf32> to vector<16x8xf32>
    %134 = vector.shape_cast %131 : vector<16x8xf32> to vector<1x1x16x8xf32>
    tpu.vector_store %arg5[%c0_61, %c2, %c0_62, %c0_63], %134 {strides = array<i32>} : memref<1x8x16x8xf32, #tpu.memory_space<vmem>>, vector<1x1x16x8xf32>,
    %cst_64 = arith.constant 0.000000e+00 : f32
    %135 = vector.broadcast %cst_64 : f32 to vector<16x8xf32>
    %c3_i32 = arith.constant 3 : i32
    %136 = arith.addi %0, %c3_i32 : i32
    %c0_i32_65 = arith.constant 0 : i32
    %137 = arith.addi %136, %c0_i32_65 : i32
    %c0_66 = arith.constant 0 : index
    %138 = arith.index_cast %137 : i32 to index
    %c0_67 = arith.constant 0 : index
    %c0_68 = arith.constant 0 : index
    %139 = vector.load %arg2[%c0_66, %138, %c0_67, %c0_68] : memref<1x9x16x9xf32, #tpu.memory_space<vmem>>, vector<1x1x16x9xf32>
    %140 = vector.shape_cast %139 : vector<1x1x16x9xf32> to vector<16x9xf32>
    %141 = vector.extract_strided_slice %1 {offsets = [0, 0, 0], sizes = [1, 16, 16], strides = [1, 1, 1]} : vector<4x16x16xf32> to vector<1x16x16xf32>
    %142 = vector.shape_cast %141 : vector<1x16x16xf32> to vector<16x16xf32>
    %143 = vector.extract_strided_slice %140 {offsets = [0, 0], sizes = [16, 8], strides = [1, 1]} : vector<16x9xf32> to vector<16x8xf32>
    %cst_69 = arith.constant dense<0.000000e+00> : vector<16x8xf32>
    %144 = tpu.matmul %142, %143, %cst_69 {dimension_numbers = #tpu.dot_dimension_numbers<[1], [0], [0], [1], [0, 0, 1, 1], [], []>} : vector<16x16xf32>, vector<16x8xf32>, vector<16x8xf32> -> vector<16x8xf32>
    %145 = arith.addf %135, %144 : vector<16x8xf32>
    %146 = vector.extract_strided_slice %1 {offsets = [1, 0, 0], sizes = [1, 16, 16], strides = [1, 1, 1]} : vector<4x16x16xf32> to vector<1x16x16xf32>
    %147 = vector.shape_cast %146 : vector<1x16x16xf32> to vector<16x16xf32>
    %148 = vector.extract_strided_slice %140 {offsets = [0, 1], sizes = [16, 8], strides = [1, 1]} : vector<16x9xf32> to vector<16x8xf32>
    %cst_70 = arith.constant dense<0.000000e+00> : vector<16x8xf32>
    %149 = tpu.matmul %147, %148, %cst_70 {dimension_numbers = #tpu.dot_dimension_numbers<[1], [0], [0], [1], [0, 0, 1, 1], [], []>} : vector<16x16xf32>, vector<16x8xf32>, vector<16x8xf32> -> vector<16x8xf32>
    %150 = arith.addf %145, %149 : vector<16x8xf32>
    %c3_i32_71 = arith.constant 3 : i32
    %151 = arith.addi %0, %c3_i32_71 : i32
    %c1_i32_72 = arith.constant 1 : i32
    %152 = arith.addi %151, %c1_i32_72 : i32
    %c0_73 = arith.constant 0 : index
    %153 = arith.index_cast %152 : i32 to index
    %c0_74 = arith.constant 0 : index
    %c0_75 = arith.constant 0 : index
    %154 = vector.load %arg2[%c0_73, %153, %c0_74, %c0_75] : memref<1x9x16x9xf32, #tpu.memory_space<vmem>>, vector<1x1x16x9xf32>
    %155 = vector.shape_cast %154 : vector<1x1x16x9xf32> to vector<16x9xf32>
    %156 = vector.extract_strided_slice %1 {offsets = [2, 0, 0], sizes = [1, 16, 16], strides = [1, 1, 1]} : vector<4x16x16xf32> to vector<1x16x16xf32>
    %157 = vector.shape_cast %156 : vector<1x16x16xf32> to vector<16x16xf32>
    %158 = vector.extract_strided_slice %155 {offsets = [0, 0], sizes = [16, 8], strides = [1, 1]} : vector<16x9xf32> to vector<16x8xf32>
    %cst_76 = arith.constant dense<0.000000e+00> : vector<16x8xf32>
    %159 = tpu.matmul %157, %158, %cst_76 {dimension_numbers = #tpu.dot_dimension_numbers<[1], [0], [0], [1], [0, 0, 1, 1], [], []>} : vector<16x16xf32>, vector<16x8xf32>, vector<16x8xf32> -> vector<16x8xf32>
    %160 = arith.addf %150, %159 : vector<16x8xf32>
    %161 = vector.extract_strided_slice %1 {offsets = [3, 0, 0], sizes = [1, 16, 16], strides = [1, 1, 1]} : vector<4x16x16xf32> to vector<1x16x16xf32>
    %162 = vector.shape_cast %161 : vector<1x16x16xf32> to vector<16x16xf32>
    %163 = vector.extract_strided_slice %155 {offsets = [0, 1], sizes = [16, 8], strides = [1, 1]} : vector<16x9xf32> to vector<16x8xf32>
    %cst_77 = arith.constant dense<0.000000e+00> : vector<16x8xf32>
    %164 = tpu.matmul %162, %163, %cst_77 {dimension_numbers = #tpu.dot_dimension_numbers<[1], [0], [0], [1], [0, 0, 1, 1], [], []>} : vector<16x16xf32>, vector<16x8xf32>, vector<16x8xf32> -> vector<16x8xf32>
    %165 = arith.addf %160, %164 : vector<16x8xf32>
    %166 = vector.broadcast %2 : vector<16x1xf32> to vector<16x8xf32>
    %167 = arith.addf %165, %166 : vector<16x8xf32>
    %cst_78 = arith.constant 5.000000e-01 : f32
    %168 = vector.broadcast %cst_78 : f32 to vector<16x8xf32>
    %169 = arith.mulf %168, %167 : vector<16x8xf32>
    %cst_79 = arith.constant 0.707106769 : f32
    %170 = vector.broadcast %cst_79 : f32 to vector<16x8xf32>
    %171 = arith.mulf %167, %170 : vector<16x8xf32>
    %172 = math.erf %171 : vector<16x8xf32>
    %cst_80 = arith.constant 1.000000e+00 : f32
    %173 = vector.broadcast %cst_80 : f32 to vector<16x8xf32>
    %174 = arith.addf %173, %172 : vector<16x8xf32>
    %175 = arith.mulf %169, %174 : vector<16x8xf32>
    %c0_81 = arith.constant 0 : index
    %c3 = arith.constant 3 : index
    %c0_82 = arith.constant 0 : index
    %c0_83 = arith.constant 0 : index
    %176 = vector.load %arg5[%c0_81, %c3, %c0_82, %c0_83] : memref<1x8x16x8xf32, #tpu.memory_space<vmem>>, vector<1x1x16x8xf32>
    %177 = vector.shape_cast %176 : vector<1x1x16x8xf32> to vector<16x8xf32>
    %178 = vector.shape_cast %175 : vector<16x8xf32> to vector<1x1x16x8xf32>
    tpu.vector_store %arg5[%c0_81, %c3, %c0_82, %c0_83], %178 {strides = array<i32>} : memref<1x8x16x8xf32, #tpu.memory_space<vmem>>, vector<1x1x16x8xf32>,
    %cst_84 = arith.constant 0.000000e+00 : f32
    %179 = vector.broadcast %cst_84 : f32 to vector<16x8xf32>
    %c4_i32 = arith.constant 4 : i32
    %180 = arith.addi %0, %c4_i32 : i32
    %c0_i32_85 = arith.constant 0 : i32
    %181 = arith.addi %180, %c0_i32_85 : i32
    %c0_86 = arith.constant 0 : index
    %182 = arith.index_cast %181 : i32 to index
    %c0_87 = arith.constant 0 : index
    %c0_88 = arith.constant 0 : index
    %183 = vector.load %arg2[%c0_86, %182, %c0_87, %c0_88] : memref<1x9x16x9xf32, #tpu.memory_space<vmem>>, vector<1x1x16x9xf32>
    %184 = vector.shape_cast %183 : vector<1x1x16x9xf32> to vector<16x9xf32>
    %185 = vector.extract_strided_slice %1 {offsets = [0, 0, 0], sizes = [1, 16, 16], strides = [1, 1, 1]} : vector<4x16x16xf32> to vector<1x16x16xf32>
    %186 = vector.shape_cast %185 : vector<1x16x16xf32> to vector<16x16xf32>
    %187 = vector.extract_strided_slice %184 {offsets = [0, 0], sizes = [16, 8], strides = [1, 1]} : vector<16x9xf32> to vector<16x8xf32>
    %cst_89 = arith.constant dense<0.000000e+00> : vector<16x8xf32>
    %188 = tpu.matmul %186, %187, %cst_89 {dimension_numbers = #tpu.dot_dimension_numbers<[1], [0], [0], [1], [0, 0, 1, 1], [], []>} : vector<16x16xf32>, vector<16x8xf32>, vector<16x8xf32> -> vector<16x8xf32>
    %189 = arith.addf %179, %188 : vector<16x8xf32>
    %190 = vector.extract_strided_slice %1 {offsets = [1, 0, 0], sizes = [1, 16, 16], strides = [1, 1, 1]} : vector<4x16x16xf32> to vector<1x16x16xf32>
    %191 = vector.shape_cast %190 : vector<1x16x16xf32> to vector<16x16xf32>
    %192 = vector.extract_strided_slice %184 {offsets = [0, 1], sizes = [16, 8], strides = [1, 1]} : vector<16x9xf32> to vector<16x8xf32>
    %cst_90 = arith.constant dense<0.000000e+00> : vector<16x8xf32>
    %193 = tpu.matmul %191, %192, %cst_90 {dimension_numbers = #tpu.dot_dimension_numbers<[1], [0], [0], [1], [0, 0, 1, 1], [], []>} : vector<16x16xf32>, vector<16x8xf32>, vector<16x8xf32> -> vector<16x8xf32>
    %194 = arith.addf %189, %193 : vector<16x8xf32>
    %c4_i32_91 = arith.constant 4 : i32
    %195 = arith.addi %0, %c4_i32_91 : i32
    %c1_i32_92 = arith.constant 1 : i32
    %196 = arith.addi %195, %c1_i32_92 : i32
    %c0_93 = arith.constant 0 : index
    %197 = arith.index_cast %196 : i32 to index
    %c0_94 = arith.constant 0 : index
    %c0_95 = arith.constant 0 : index
    %198 = vector.load %arg2[%c0_93, %197, %c0_94, %c0_95] : memref<1x9x16x9xf32, #tpu.memory_space<vmem>>, vector<1x1x16x9xf32>
    %199 = vector.shape_cast %198 : vector<1x1x16x9xf32> to vector<16x9xf32>
    %200 = vector.extract_strided_slice %1 {offsets = [2, 0, 0], sizes = [1, 16, 16], strides = [1, 1, 1]} : vector<4x16x16xf32> to vector<1x16x16xf32>
    %201 = vector.shape_cast %200 : vector<1x16x16xf32> to vector<16x16xf32>
    %202 = vector.extract_strided_slice %199 {offsets = [0, 0], sizes = [16, 8], strides = [1, 1]} : vector<16x9xf32> to vector<16x8xf32>
    %cst_96 = arith.constant dense<0.000000e+00> : vector<16x8xf32>
    %203 = tpu.matmul %201, %202, %cst_96 {dimension_numbers = #tpu.dot_dimension_numbers<[1], [0], [0], [1], [0, 0, 1, 1], [], []>} : vector<16x16xf32>, vector<16x8xf32>, vector<16x8xf32> -> vector<16x8xf32>
    %204 = arith.addf %194, %203 : vector<16x8xf32>
    %205 = vector.extract_strided_slice %1 {offsets = [3, 0, 0], sizes = [1, 16, 16], strides = [1, 1, 1]} : vector<4x16x16xf32> to vector<1x16x16xf32>
    %206 = vector.shape_cast %205 : vector<1x16x16xf32> to vector<16x16xf32>
    %207 = vector.extract_strided_slice %199 {offsets = [0, 1], sizes = [16, 8], strides = [1, 1]} : vector<16x9xf32> to vector<16x8xf32>
    %cst_97 = arith.constant dense<0.000000e+00> : vector<16x8xf32>
    %208 = tpu.matmul %206, %207, %cst_97 {dimension_numbers = #tpu.dot_dimension_numbers<[1], [0], [0], [1], [0, 0, 1, 1], [], []>} : vector<16x16xf32>, vector<16x8xf32>, vector<16x8xf32> -> vector<16x8xf32>
    %209 = arith.addf %204, %208 : vector<16x8xf32>
    %210 = vector.broadcast %2 : vector<16x1xf32> to vector<16x8xf32>
    %211 = arith.addf %209, %210 : vector<16x8xf32>
    %cst_98 = arith.constant 5.000000e-01 : f32
    %212 = vector.broadcast %cst_98 : f32 to vector<16x8xf32>
    %213 = arith.mulf %212, %211 : vector<16x8xf32>
    %cst_99 = arith.constant 0.707106769 : f32
    %214 = vector.broadcast %cst_99 : f32 to vector<16x8xf32>
    %215 = arith.mulf %211, %214 : vector<16x8xf32>
    %216 = math.erf %215 : vector<16x8xf32>
    %cst_100 = arith.constant 1.000000e+00 : f32
    %217 = vector.broadcast %cst_100 : f32 to vector<16x8xf32>
    %218 = arith.addf %217, %216 : vector<16x8xf32>
    %219 = arith.mulf %213, %218 : vector<16x8xf32>
    %c0_101 = arith.constant 0 : index
    %c4 = arith.constant 4 : index
    %c0_102 = arith.constant 0 : index
    %c0_103 = arith.constant 0 : index
    %220 = vector.load %arg5[%c0_101, %c4, %c0_102, %c0_103] : memref<1x8x16x8xf32, #tpu.memory_space<vmem>>, vector<1x1x16x8xf32>
    %221 = vector.shape_cast %220 : vector<1x1x16x8xf32> to vector<16x8xf32>
    %222 = vector.shape_cast %219 : vector<16x8xf32> to vector<1x1x16x8xf32>
    tpu.vector_store %arg5[%c0_101, %c4, %c0_102, %c0_103], %222 {strides = array<i32>} : memref<1x8x16x8xf32, #tpu.memory_space<vmem>>, vector<1x1x16x8xf32>,
    %cst_104 = arith.constant 0.000000e+00 : f32
    %223 = vector.broadcast %cst_104 : f32 to vector<16x8xf32>
    %c5_i32 = arith.constant 5 : i32
    %224 = arith.addi %0, %c5_i32 : i32
    %c0_i32_105 = arith.constant 0 : i32
    %225 = arith.addi %224, %c0_i32_105 : i32
    %c0_106 = arith.constant 0 : index
    %226 = arith.index_cast %225 : i32 to index
    %c0_107 = arith.constant 0 : index
    %c0_108 = arith.constant 0 : index
    %227 = vector.load %arg2[%c0_106, %226, %c0_107, %c0_108] : memref<1x9x16x9xf32, #tpu.memory_space<vmem>>, vector<1x1x16x9xf32>
    %228 = vector.shape_cast %227 : vector<1x1x16x9xf32> to vector<16x9xf32>
    %229 = vector.extract_strided_slice %1 {offsets = [0, 0, 0], sizes = [1, 16, 16], strides = [1, 1, 1]} : vector<4x16x16xf32> to vector<1x16x16xf32>
    %230 = vector.shape_cast %229 : vector<1x16x16xf32> to vector<16x16xf32>
    %231 = vector.extract_strided_slice %228 {offsets = [0, 0], sizes = [16, 8], strides = [1, 1]} : vector<16x9xf32> to vector<16x8xf32>
    %cst_109 = arith.constant dense<0.000000e+00> : vector<16x8xf32>
    %232 = tpu.matmul %230, %231, %cst_109 {dimension_numbers = #tpu.dot_dimension_numbers<[1], [0], [0], [1], [0, 0, 1, 1], [], []>} : vector<16x16xf32>, vector<16x8xf32>, vector<16x8xf32> -> vector<16x8xf32>
    %233 = arith.addf %223, %232 : vector<16x8xf32>
    %234 = vector.extract_strided_slice %1 {offsets = [1, 0, 0], sizes = [1, 16, 16], strides = [1, 1, 1]} : vector<4x16x16xf32> to vector<1x16x16xf32>
    %235 = vector.shape_cast %234 : vector<1x16x16xf32> to vector<16x16xf32>
    %236 = vector.extract_strided_slice %228 {offsets = [0, 1], sizes = [16, 8], strides = [1, 1]} : vector<16x9xf32> to vector<16x8xf32>
    %cst_110 = arith.constant dense<0.000000e+00> : vector<16x8xf32>
    %237 = tpu.matmul %235, %236, %cst_110 {dimension_numbers = #tpu.dot_dimension_numbers<[1], [0], [0], [1], [0, 0, 1, 1], [], []>} : vector<16x16xf32>, vector<16x8xf32>, vector<16x8xf32> -> vector<16x8xf32>
    %238 = arith.addf %233, %237 : vector<16x8xf32>
    %c5_i32_111 = arith.constant 5 : i32
    %239 = arith.addi %0, %c5_i32_111 : i32
    %c1_i32_112 = arith.constant 1 : i32
    %240 = arith.addi %239, %c1_i32_112 : i32
    %c0_113 = arith.constant 0 : index
    %241 = arith.index_cast %240 : i32 to index
    %c0_114 = arith.constant 0 : index
    %c0_115 = arith.constant 0 : index
    %242 = vector.load %arg2[%c0_113, %241, %c0_114, %c0_115] : memref<1x9x16x9xf32, #tpu.memory_space<vmem>>, vector<1x1x16x9xf32>
    %243 = vector.shape_cast %242 : vector<1x1x16x9xf32> to vector<16x9xf32>
    %244 = vector.extract_strided_slice %1 {offsets = [2, 0, 0], sizes = [1, 16, 16], strides = [1, 1, 1]} : vector<4x16x16xf32> to vector<1x16x16xf32>
    %245 = vector.shape_cast %244 : vector<1x16x16xf32> to vector<16x16xf32>
    %246 = vector.extract_strided_slice %243 {offsets = [0, 0], sizes = [16, 8], strides = [1, 1]} : vector<16x9xf32> to vector<16x8xf32>
    %cst_116 = arith.constant dense<0.000000e+00> : vector<16x8xf32>
    %247 = tpu.matmul %245, %246, %cst_116 {dimension_numbers = #tpu.dot_dimension_numbers<[1], [0], [0], [1], [0, 0, 1, 1], [], []>} : vector<16x16xf32>, vector<16x8xf32>, vector<16x8xf32> -> vector<16x8xf32>
    %248 = arith.addf %238, %247 : vector<16x8xf32>
    %249 = vector.extract_strided_slice %1 {offsets = [3, 0, 0], sizes = [1, 16, 16], strides = [1, 1, 1]} : vector<4x16x16xf32> to vector<1x16x16xf32>
    %250 = vector.shape_cast %249 : vector<1x16x16xf32> to vector<16x16xf32>
    %251 = vector.extract_strided_slice %243 {offsets = [0, 1], sizes = [16, 8], strides = [1, 1]} : vector<16x9xf32> to vector<16x8xf32>
    %cst_117 = arith.constant dense<0.000000e+00> : vector<16x8xf32>
    %252 = tpu.matmul %250, %251, %cst_117 {dimension_numbers = #tpu.dot_dimension_numbers<[1], [0], [0], [1], [0, 0, 1, 1], [], []>} : vector<16x16xf32>, vector<16x8xf32>, vector<16x8xf32> -> vector<16x8xf32>
    %253 = arith.addf %248, %252 : vector<16x8xf32>
    %254 = vector.broadcast %2 : vector<16x1xf32> to vector<16x8xf32>
    %255 = arith.addf %253, %254 : vector<16x8xf32>
    %cst_118 = arith.constant 5.000000e-01 : f32
    %256 = vector.broadcast %cst_118 : f32 to vector<16x8xf32>
    %257 = arith.mulf %256, %255 : vector<16x8xf32>
    %cst_119 = arith.constant 0.707106769 : f32
    %258 = vector.broadcast %cst_119 : f32 to vector<16x8xf32>
    %259 = arith.mulf %255, %258 : vector<16x8xf32>
    %260 = math.erf %259 : vector<16x8xf32>
    %cst_120 = arith.constant 1.000000e+00 : f32
    %261 = vector.broadcast %cst_120 : f32 to vector<16x8xf32>
    %262 = arith.addf %261, %260 : vector<16x8xf32>
    %263 = arith.mulf %257, %262 : vector<16x8xf32>
    %c0_121 = arith.constant 0 : index
    %c5 = arith.constant 5 : index
    %c0_122 = arith.constant 0 : index
    %c0_123 = arith.constant 0 : index
    %264 = vector.load %arg5[%c0_121, %c5, %c0_122, %c0_123] : memref<1x8x16x8xf32, #tpu.memory_space<vmem>>, vector<1x1x16x8xf32>
    %265 = vector.shape_cast %264 : vector<1x1x16x8xf32> to vector<16x8xf32>
    %266 = vector.shape_cast %263 : vector<16x8xf32> to vector<1x1x16x8xf32>
    tpu.vector_store %arg5[%c0_121, %c5, %c0_122, %c0_123], %266 {strides = array<i32>} : memref<1x8x16x8xf32, #tpu.memory_space<vmem>>, vector<1x1x16x8xf32>,
    %cst_124 = arith.constant 0.000000e+00 : f32
    %267 = vector.broadcast %cst_124 : f32 to vector<16x8xf32>
    %c6_i32 = arith.constant 6 : i32
    %268 = arith.addi %0, %c6_i32 : i32
    %c0_i32_125 = arith.constant 0 : i32
    %269 = arith.addi %268, %c0_i32_125 : i32
    %c0_126 = arith.constant 0 : index
    %270 = arith.index_cast %269 : i32 to index
    %c0_127 = arith.constant 0 : index
    %c0_128 = arith.constant 0 : index
    %271 = vector.load %arg2[%c0_126, %270, %c0_127, %c0_128] : memref<1x9x16x9xf32, #tpu.memory_space<vmem>>, vector<1x1x16x9xf32>
    %272 = vector.shape_cast %271 : vector<1x1x16x9xf32> to vector<16x9xf32>
    %273 = vector.extract_strided_slice %1 {offsets = [0, 0, 0], sizes = [1, 16, 16], strides = [1, 1, 1]} : vector<4x16x16xf32> to vector<1x16x16xf32>
    %274 = vector.shape_cast %273 : vector<1x16x16xf32> to vector<16x16xf32>
    %275 = vector.extract_strided_slice %272 {offsets = [0, 0], sizes = [16, 8], strides = [1, 1]} : vector<16x9xf32> to vector<16x8xf32>
    %cst_129 = arith.constant dense<0.000000e+00> : vector<16x8xf32>
    %276 = tpu.matmul %274, %275, %cst_129 {dimension_numbers = #tpu.dot_dimension_numbers<[1], [0], [0], [1], [0, 0, 1, 1], [], []>} : vector<16x16xf32>, vector<16x8xf32>, vector<16x8xf32> -> vector<16x8xf32>
    %277 = arith.addf %267, %276 : vector<16x8xf32>
    %278 = vector.extract_strided_slice %1 {offsets = [1, 0, 0], sizes = [1, 16, 16], strides = [1, 1, 1]} : vector<4x16x16xf32> to vector<1x16x16xf32>
    %279 = vector.shape_cast %278 : vector<1x16x16xf32> to vector<16x16xf32>
    %280 = vector.extract_strided_slice %272 {offsets = [0, 1], sizes = [16, 8], strides = [1, 1]} : vector<16x9xf32> to vector<16x8xf32>
    %cst_130 = arith.constant dense<0.000000e+00> : vector<16x8xf32>
    %281 = tpu.matmul %279, %280, %cst_130 {dimension_numbers = #tpu.dot_dimension_numbers<[1], [0], [0], [1], [0, 0, 1, 1], [], []>} : vector<16x16xf32>, vector<16x8xf32>, vector<16x8xf32> -> vector<16x8xf32>
    %282 = arith.addf %277, %281 : vector<16x8xf32>
    %c6_i32_131 = arith.constant 6 : i32
    %283 = arith.addi %0, %c6_i32_131 : i32
    %c1_i32_132 = arith.constant 1 : i32
    %284 = arith.addi %283, %c1_i32_132 : i32
    %c0_133 = arith.constant 0 : index
    %285 = arith.index_cast %284 : i32 to index
    %c0_134 = arith.constant 0 : index
    %c0_135 = arith.constant 0 : index
    %286 = vector.load %arg2[%c0_133, %285, %c0_134, %c0_135] : memref<1x9x16x9xf32, #tpu.memory_space<vmem>>, vector<1x1x16x9xf32>
    %287 = vector.shape_cast %286 : vector<1x1x16x9xf32> to vector<16x9xf32>
    %288 = vector.extract_strided_slice %1 {offsets = [2, 0, 0], sizes = [1, 16, 16], strides = [1, 1, 1]} : vector<4x16x16xf32> to vector<1x16x16xf32>
    %289 = vector.shape_cast %288 : vector<1x16x16xf32> to vector<16x16xf32>
    %290 = vector.extract_strided_slice %287 {offsets = [0, 0], sizes = [16, 8], strides = [1, 1]} : vector<16x9xf32> to vector<16x8xf32>
    %cst_136 = arith.constant dense<0.000000e+00> : vector<16x8xf32>
    %291 = tpu.matmul %289, %290, %cst_136 {dimension_numbers = #tpu.dot_dimension_numbers<[1], [0], [0], [1], [0, 0, 1, 1], [], []>} : vector<16x16xf32>, vector<16x8xf32>, vector<16x8xf32> -> vector<16x8xf32>
    %292 = arith.addf %282, %291 : vector<16x8xf32>
    %293 = vector.extract_strided_slice %1 {offsets = [3, 0, 0], sizes = [1, 16, 16], strides = [1, 1, 1]} : vector<4x16x16xf32> to vector<1x16x16xf32>
    %294 = vector.shape_cast %293 : vector<1x16x16xf32> to vector<16x16xf32>
    %295 = vector.extract_strided_slice %287 {offsets = [0, 1], sizes = [16, 8], strides = [1, 1]} : vector<16x9xf32> to vector<16x8xf32>
    %cst_137 = arith.constant dense<0.000000e+00> : vector<16x8xf32>
    %296 = tpu.matmul %294, %295, %cst_137 {dimension_numbers = #tpu.dot_dimension_numbers<[1], [0], [0], [1], [0, 0, 1, 1], [], []>} : vector<16x16xf32>, vector<16x8xf32>, vector<16x8xf32> -> vector<16x8xf32>
    %297 = arith.addf %292, %296 : vector<16x8xf32>
    %298 = vector.broadcast %2 : vector<16x1xf32> to vector<16x8xf32>
    %299 = arith.addf %297, %298 : vector<16x8xf32>
    %cst_138 = arith.constant 5.000000e-01 : f32
    %300 = vector.broadcast %cst_138 : f32 to vector<16x8xf32>
    %301 = arith.mulf %300, %299 : vector<16x8xf32>
    %cst_139 = arith.constant 0.707106769 : f32
    %302 = vector.broadcast %cst_139 : f32 to vector<16x8xf32>
    %303 = arith.mulf %299, %302 : vector<16x8xf32>
    %304 = math.erf %303 : vector<16x8xf32>
    %cst_140 = arith.constant 1.000000e+00 : f32
    %305 = vector.broadcast %cst_140 : f32 to vector<16x8xf32>
    %306 = arith.addf %305, %304 : vector<16x8xf32>
    %307 = arith.mulf %301, %306 : vector<16x8xf32>
    %c0_141 = arith.constant 0 : index
    %c6 = arith.constant 6 : index
    %c0_142 = arith.constant 0 : index
    %c0_143 = arith.constant 0 : index
    %308 = vector.load %arg5[%c0_141, %c6, %c0_142, %c0_143] : memref<1x8x16x8xf32, #tpu.memory_space<vmem>>, vector<1x1x16x8xf32>
    %309 = vector.shape_cast %308 : vector<1x1x16x8xf32> to vector<16x8xf32>
    %310 = vector.shape_cast %307 : vector<16x8xf32> to vector<1x1x16x8xf32>
    tpu.vector_store %arg5[%c0_141, %c6, %c0_142, %c0_143], %310 {strides = array<i32>} : memref<1x8x16x8xf32, #tpu.memory_space<vmem>>, vector<1x1x16x8xf32>,
    %cst_144 = arith.constant 0.000000e+00 : f32
    %311 = vector.broadcast %cst_144 : f32 to vector<16x8xf32>
    %c7_i32 = arith.constant 7 : i32
    %312 = arith.addi %0, %c7_i32 : i32
    %c0_i32_145 = arith.constant 0 : i32
    %313 = arith.addi %312, %c0_i32_145 : i32
    %c0_146 = arith.constant 0 : index
    %314 = arith.index_cast %313 : i32 to index
    %c0_147 = arith.constant 0 : index
    %c0_148 = arith.constant 0 : index
    %315 = vector.load %arg2[%c0_146, %314, %c0_147, %c0_148] : memref<1x9x16x9xf32, #tpu.memory_space<vmem>>, vector<1x1x16x9xf32>
    %316 = vector.shape_cast %315 : vector<1x1x16x9xf32> to vector<16x9xf32>
    %317 = vector.extract_strided_slice %1 {offsets = [0, 0, 0], sizes = [1, 16, 16], strides = [1, 1, 1]} : vector<4x16x16xf32> to vector<1x16x16xf32>
    %318 = vector.shape_cast %317 : vector<1x16x16xf32> to vector<16x16xf32>
    %319 = vector.extract_strided_slice %316 {offsets = [0, 0], sizes = [16, 8], strides = [1, 1]} : vector<16x9xf32> to vector<16x8xf32>
    %cst_149 = arith.constant dense<0.000000e+00> : vector<16x8xf32>
    %320 = tpu.matmul %318, %319, %cst_149 {dimension_numbers = #tpu.dot_dimension_numbers<[1], [0], [0], [1], [0, 0, 1, 1], [], []>} : vector<16x16xf32>, vector<16x8xf32>, vector<16x8xf32> -> vector<16x8xf32>
    %321 = arith.addf %311, %320 : vector<16x8xf32>
    %322 = vector.extract_strided_slice %1 {offsets = [1, 0, 0], sizes = [1, 16, 16], strides = [1, 1, 1]} : vector<4x16x16xf32> to vector<1x16x16xf32>
    %323 = vector.shape_cast %322 : vector<1x16x16xf32> to vector<16x16xf32>
    %324 = vector.extract_strided_slice %316 {offsets = [0, 1], sizes = [16, 8], strides = [1, 1]} : vector<16x9xf32> to vector<16x8xf32>
    %cst_150 = arith.constant dense<0.000000e+00> : vector<16x8xf32>
    %325 = tpu.matmul %323, %324, %cst_150 {dimension_numbers = #tpu.dot_dimension_numbers<[1], [0], [0], [1], [0, 0, 1, 1], [], []>} : vector<16x16xf32>, vector<16x8xf32>, vector<16x8xf32> -> vector<16x8xf32>
    %326 = arith.addf %321, %325 : vector<16x8xf32>
    %c7_i32_151 = arith.constant 7 : i32
    %327 = arith.addi %0, %c7_i32_151 : i32
    %c1_i32_152 = arith.constant 1 : i32
    %328 = arith.addi %327, %c1_i32_152 : i32
    %c0_153 = arith.constant 0 : index
    %329 = arith.index_cast %328 : i32 to index
    %c0_154 = arith.constant 0 : index
    %c0_155 = arith.constant 0 : index
    %330 = vector.load %arg2[%c0_153, %329, %c0_154, %c0_155] : memref<1x9x16x9xf32, #tpu.memory_space<vmem>>, vector<1x1x16x9xf32>
    %331 = vector.shape_cast %330 : vector<1x1x16x9xf32> to vector<16x9xf32>
    %332 = vector.extract_strided_slice %1 {offsets = [2, 0, 0], sizes = [1, 16, 16], strides = [1, 1, 1]} : vector<4x16x16xf32> to vector<1x16x16xf32>
    %333 = vector.shape_cast %332 : vector<1x16x16xf32> to vector<16x16xf32>
    %334 = vector.extract_strided_slice %331 {offsets = [0, 0], sizes = [16, 8], strides = [1, 1]} : vector<16x9xf32> to vector<16x8xf32>
    %cst_156 = arith.constant dense<0.000000e+00> : vector<16x8xf32>
    %335 = tpu.matmul %333, %334, %cst_156 {dimension_numbers = #tpu.dot_dimension_numbers<[1], [0], [0], [1], [0, 0, 1, 1], [], []>} : vector<16x16xf32>, vector<16x8xf32>, vector<16x8xf32> -> vector<16x8xf32>
    %336 = arith.addf %326, %335 : vector<16x8xf32>
    %337 = vector.extract_strided_slice %1 {offsets = [3, 0, 0], sizes = [1, 16, 16], strides = [1, 1, 1]} : vector<4x16x16xf32> to vector<1x16x16xf32>
    %338 = vector.shape_cast %337 : vector<1x16x16xf32> to vector<16x16xf32>
    %339 = vector.extract_strided_slice %331 {offsets = [0, 1], sizes = [16, 8], strides = [1, 1]} : vector<16x9xf32> to vector<16x8xf32>
    %cst_157 = arith.constant dense<0.000000e+00> : vector<16x8xf32>
    %340 = tpu.matmul %338, %339, %cst_157 {dimension_numbers = #tpu.dot_dimension_numbers<[1], [0], [0], [1], [0, 0, 1, 1], [], []>} : vector<16x16xf32>, vector<16x8xf32>, vector<16x8xf32> -> vector<16x8xf32>
    %341 = arith.addf %336, %340 : vector<16x8xf32>
    %342 = vector.broadcast %2 : vector<16x1xf32> to vector<16x8xf32>
    %343 = arith.addf %341, %342 : vector<16x8xf32>
    %cst_158 = arith.constant 5.000000e-01 : f32
    %344 = vector.broadcast %cst_158 : f32 to vector<16x8xf32>
    %345 = arith.mulf %344, %343 : vector<16x8xf32>
    %cst_159 = arith.constant 0.707106769 : f32
    %346 = vector.broadcast %cst_159 : f32 to vector<16x8xf32>
    %347 = arith.mulf %343, %346 : vector<16x8xf32>
    %348 = math.erf %347 : vector<16x8xf32>
    %cst_160 = arith.constant 1.000000e+00 : f32
    %349 = vector.broadcast %cst_160 : f32 to vector<16x8xf32>
    %350 = arith.addf %349, %348 : vector<16x8xf32>
    %351 = arith.mulf %345, %350 : vector<16x8xf32>
    %c0_161 = arith.constant 0 : index
    %c7 = arith.constant 7 : index
    %c0_162 = arith.constant 0 : index
    %c0_163 = arith.constant 0 : index
    %352 = vector.load %arg5[%c0_161, %c7, %c0_162, %c0_163] : memref<1x8x16x8xf32, #tpu.memory_space<vmem>>, vector<1x1x16x8xf32>
    %353 = vector.shape_cast %352 : vector<1x1x16x8xf32> to vector<16x8xf32>
    %354 = vector.shape_cast %351 : vector<16x8xf32> to vector<1x1x16x8xf32>
    tpu.vector_store %arg5[%c0_161, %c7, %c0_162, %c0_163], %354 {strides = array<i32>} : memref<1x8x16x8xf32, #tpu.memory_space<vmem>>, vector<1x1x16x8xf32>,
    return
  }
  func.func @transform_0(%arg0: i32, %arg1: i32) -> (i32, i32, i32, i32) {
    %c0_i32 = arith.constant 0 : i32
    %c0_i32_0 = arith.constant 0 : i32
    %c0_i32_1 = arith.constant 0 : i32
    %c0_i32_2 = arith.constant 0 : i32
    return %arg0, %c0_i32, %c0_i32_0, %c0_i32_1 : i32, i32, i32, i32
  }
  func.func @transform_1(%arg0: i32, %arg1: i32) -> (i32, i32, i32) {
    %c0_i32 = arith.constant 0 : i32
    %c0_i32_0 = arith.constant 0 : i32
    %c0_i32_1 = arith.constant 0 : i32
    %c0_i32_2 = arith.constant 0 : i32
    return %c0_i32, %c0_i32_0, %c0_i32_1 : i32, i32, i32
  }
  func.func @transform_2(%arg0: i32, %arg1: i32) -> (i32, i32) {
    %c0_i32 = arith.constant 0 : i32
    %c0_i32_0 = arith.constant 0 : i32
    %c0_i32_1 = arith.constant 0 : i32
    return %c0_i32, %c0_i32_0 : i32, i32
  }
  func.func @transform_3(%arg0: i32, %arg1: i32) -> (i32, i32, i32, i32) {
    %c0_i32 = arith.constant 0 : i32
    %c0_i32_0 = arith.constant 0 : i32
    %c0_i32_1 = arith.constant 0 : i32
    return %arg0, %arg1, %c0_i32, %c0_i32_0 : i32, i32, i32, i32
  }
}

module attributes {stable_mosaic.version = 11 : i64} {
  func.func @_conv_s2d_kernel(%arg0: i32, %arg1: i32, %arg2: memref<1x5x64x5xf32, #tpu.memory_space<vmem>>, %arg3: memref<4x32x64xf32, #tpu.memory_space<vmem>>, %arg4: memref<32x1xf32, #tpu.memory_space<vmem>>, %arg5: memref<1x4x32x4xf32, #tpu.memory_space<vmem>>) attributes {dimension_semantics = [#tpu.dimension_semantics<parallel>, #tpu.dimension_semantics<parallel>], iteration_bounds = array<i64: 2, 1>, scalar_prefetch = 0 : i64, scratch_operands = 0 : i64, tpu.core_type = #tpu.core_type<tc>, window_params = [{transform_indices = @transform_0, window_bounds = array<i64: 1, 5, 64, 5>}, {pipeline_mode = #tpu.pipeline_mode<synchronous>, transform_indices = @transform_1, window_bounds = array<i64: 4, 32, 64>}, {pipeline_mode = #tpu.pipeline_mode<synchronous>, transform_indices = @transform_2, window_bounds = array<i64: 32, 1>}, {transform_indices = @transform_3, window_bounds = array<i64: 1, 4, 32, 4>}]} {
    %c4_i32 = arith.constant 4 : i32
    %0 = arith.muli %arg1, %c4_i32 : i32
    %c0 = arith.constant 0 : index
    %c0_0 = arith.constant 0 : index
    %c0_1 = arith.constant 0 : index
    %1 = vector.load %arg3[%c0, %c0_0, %c0_1] : memref<4x32x64xf32, #tpu.memory_space<vmem>>, vector<4x32x64xf32>
    %c0_2 = arith.constant 0 : index
    %c0_3 = arith.constant 0 : index
    %2 = vector.load %arg4[%c0_2, %c0_3] : memref<32x1xf32, #tpu.memory_space<vmem>>, vector<32x1xf32>
    %cst = arith.constant 0.000000e+00 : f32
    %3 = vector.broadcast %cst : f32 to vector<32x4xf32>
    %c0_i32 = arith.constant 0 : i32
    %4 = arith.addi %0, %c0_i32 : i32
    %c0_i32_4 = arith.constant 0 : i32
    %5 = arith.addi %4, %c0_i32_4 : i32
    %c0_5 = arith.constant 0 : index
    %6 = arith.index_cast %5 : i32 to index
    %c0_6 = arith.constant 0 : index
    %c0_7 = arith.constant 0 : index
    %7 = vector.load %arg2[%c0_5, %6, %c0_6, %c0_7] : memref<1x5x64x5xf32, #tpu.memory_space<vmem>>, vector<1x1x64x5xf32>
    %8 = vector.shape_cast %7 : vector<1x1x64x5xf32> to vector<64x5xf32>
    %9 = vector.extract_strided_slice %1 {offsets = [0, 0, 0], sizes = [1, 32, 64], strides = [1, 1, 1]} : vector<4x32x64xf32> to vector<1x32x64xf32>
    %10 = vector.shape_cast %9 : vector<1x32x64xf32> to vector<32x64xf32>
    %11 = vector.extract_strided_slice %8 {offsets = [0, 0], sizes = [64, 4], strides = [1, 1]} : vector<64x5xf32> to vector<64x4xf32>
    %cst_8 = arith.constant dense<0.000000e+00> : vector<32x4xf32>
    %12 = tpu.matmul %10, %11, %cst_8 {dimension_numbers = #tpu.dot_dimension_numbers<[1], [0], [0], [1], [0, 0, 1, 1], [], []>} : vector<32x64xf32>, vector<64x4xf32>, vector<32x4xf32> -> vector<32x4xf32>
    %13 = arith.addf %3, %12 : vector<32x4xf32>
    %14 = vector.extract_strided_slice %1 {offsets = [1, 0, 0], sizes = [1, 32, 64], strides = [1, 1, 1]} : vector<4x32x64xf32> to vector<1x32x64xf32>
    %15 = vector.shape_cast %14 : vector<1x32x64xf32> to vector<32x64xf32>
    %16 = vector.extract_strided_slice %8 {offsets = [0, 1], sizes = [64, 4], strides = [1, 1]} : vector<64x5xf32> to vector<64x4xf32>
    %cst_9 = arith.constant dense<0.000000e+00> : vector<32x4xf32>
    %17 = tpu.matmul %15, %16, %cst_9 {dimension_numbers = #tpu.dot_dimension_numbers<[1], [0], [0], [1], [0, 0, 1, 1], [], []>} : vector<32x64xf32>, vector<64x4xf32>, vector<32x4xf32> -> vector<32x4xf32>
    %18 = arith.addf %13, %17 : vector<32x4xf32>
    %c0_i32_10 = arith.constant 0 : i32
    %19 = arith.addi %0, %c0_i32_10 : i32
    %c1_i32 = arith.constant 1 : i32
    %20 = arith.addi %19, %c1_i32 : i32
    %c0_11 = arith.constant 0 : index
    %21 = arith.index_cast %20 : i32 to index
    %c0_12 = arith.constant 0 : index
    %c0_13 = arith.constant 0 : index
    %22 = vector.load %arg2[%c0_11, %21, %c0_12, %c0_13] : memref<1x5x64x5xf32, #tpu.memory_space<vmem>>, vector<1x1x64x5xf32>
    %23 = vector.shape_cast %22 : vector<1x1x64x5xf32> to vector<64x5xf32>
    %24 = vector.extract_strided_slice %1 {offsets = [2, 0, 0], sizes = [1, 32, 64], strides = [1, 1, 1]} : vector<4x32x64xf32> to vector<1x32x64xf32>
    %25 = vector.shape_cast %24 : vector<1x32x64xf32> to vector<32x64xf32>
    %26 = vector.extract_strided_slice %23 {offsets = [0, 0], sizes = [64, 4], strides = [1, 1]} : vector<64x5xf32> to vector<64x4xf32>
    %cst_14 = arith.constant dense<0.000000e+00> : vector<32x4xf32>
    %27 = tpu.matmul %25, %26, %cst_14 {dimension_numbers = #tpu.dot_dimension_numbers<[1], [0], [0], [1], [0, 0, 1, 1], [], []>} : vector<32x64xf32>, vector<64x4xf32>, vector<32x4xf32> -> vector<32x4xf32>
    %28 = arith.addf %18, %27 : vector<32x4xf32>
    %29 = vector.extract_strided_slice %1 {offsets = [3, 0, 0], sizes = [1, 32, 64], strides = [1, 1, 1]} : vector<4x32x64xf32> to vector<1x32x64xf32>
    %30 = vector.shape_cast %29 : vector<1x32x64xf32> to vector<32x64xf32>
    %31 = vector.extract_strided_slice %23 {offsets = [0, 1], sizes = [64, 4], strides = [1, 1]} : vector<64x5xf32> to vector<64x4xf32>
    %cst_15 = arith.constant dense<0.000000e+00> : vector<32x4xf32>
    %32 = tpu.matmul %30, %31, %cst_15 {dimension_numbers = #tpu.dot_dimension_numbers<[1], [0], [0], [1], [0, 0, 1, 1], [], []>} : vector<32x64xf32>, vector<64x4xf32>, vector<32x4xf32> -> vector<32x4xf32>
    %33 = arith.addf %28, %32 : vector<32x4xf32>
    %34 = vector.broadcast %2 : vector<32x1xf32> to vector<32x4xf32>
    %35 = arith.addf %33, %34 : vector<32x4xf32>
    %c0_16 = arith.constant 0 : index
    %c0_17 = arith.constant 0 : index
    %c0_18 = arith.constant 0 : index
    %c0_19 = arith.constant 0 : index
    %36 = vector.load %arg5[%c0_16, %c0_17, %c0_18, %c0_19] : memref<1x4x32x4xf32, #tpu.memory_space<vmem>>, vector<1x1x32x4xf32>
    %37 = vector.shape_cast %36 : vector<1x1x32x4xf32> to vector<32x4xf32>
    %38 = vector.shape_cast %35 : vector<32x4xf32> to vector<1x1x32x4xf32>
    tpu.vector_store %arg5[%c0_16, %c0_17, %c0_18, %c0_19], %38 {strides = array<i32>} : memref<1x4x32x4xf32, #tpu.memory_space<vmem>>, vector<1x1x32x4xf32>,
    %cst_20 = arith.constant 0.000000e+00 : f32
    %39 = vector.broadcast %cst_20 : f32 to vector<32x4xf32>
    %c1_i32_21 = arith.constant 1 : i32
    %40 = arith.addi %0, %c1_i32_21 : i32
    %c0_i32_22 = arith.constant 0 : i32
    %41 = arith.addi %40, %c0_i32_22 : i32
    %c0_23 = arith.constant 0 : index
    %42 = arith.index_cast %41 : i32 to index
    %c0_24 = arith.constant 0 : index
    %c0_25 = arith.constant 0 : index
    %43 = vector.load %arg2[%c0_23, %42, %c0_24, %c0_25] : memref<1x5x64x5xf32, #tpu.memory_space<vmem>>, vector<1x1x64x5xf32>
    %44 = vector.shape_cast %43 : vector<1x1x64x5xf32> to vector<64x5xf32>
    %45 = vector.extract_strided_slice %1 {offsets = [0, 0, 0], sizes = [1, 32, 64], strides = [1, 1, 1]} : vector<4x32x64xf32> to vector<1x32x64xf32>
    %46 = vector.shape_cast %45 : vector<1x32x64xf32> to vector<32x64xf32>
    %47 = vector.extract_strided_slice %44 {offsets = [0, 0], sizes = [64, 4], strides = [1, 1]} : vector<64x5xf32> to vector<64x4xf32>
    %cst_26 = arith.constant dense<0.000000e+00> : vector<32x4xf32>
    %48 = tpu.matmul %46, %47, %cst_26 {dimension_numbers = #tpu.dot_dimension_numbers<[1], [0], [0], [1], [0, 0, 1, 1], [], []>} : vector<32x64xf32>, vector<64x4xf32>, vector<32x4xf32> -> vector<32x4xf32>
    %49 = arith.addf %39, %48 : vector<32x4xf32>
    %50 = vector.extract_strided_slice %1 {offsets = [1, 0, 0], sizes = [1, 32, 64], strides = [1, 1, 1]} : vector<4x32x64xf32> to vector<1x32x64xf32>
    %51 = vector.shape_cast %50 : vector<1x32x64xf32> to vector<32x64xf32>
    %52 = vector.extract_strided_slice %44 {offsets = [0, 1], sizes = [64, 4], strides = [1, 1]} : vector<64x5xf32> to vector<64x4xf32>
    %cst_27 = arith.constant dense<0.000000e+00> : vector<32x4xf32>
    %53 = tpu.matmul %51, %52, %cst_27 {dimension_numbers = #tpu.dot_dimension_numbers<[1], [0], [0], [1], [0, 0, 1, 1], [], []>} : vector<32x64xf32>, vector<64x4xf32>, vector<32x4xf32> -> vector<32x4xf32>
    %54 = arith.addf %49, %53 : vector<32x4xf32>
    %c1_i32_28 = arith.constant 1 : i32
    %55 = arith.addi %0, %c1_i32_28 : i32
    %c1_i32_29 = arith.constant 1 : i32
    %56 = arith.addi %55, %c1_i32_29 : i32
    %c0_30 = arith.constant 0 : index
    %57 = arith.index_cast %56 : i32 to index
    %c0_31 = arith.constant 0 : index
    %c0_32 = arith.constant 0 : index
    %58 = vector.load %arg2[%c0_30, %57, %c0_31, %c0_32] : memref<1x5x64x5xf32, #tpu.memory_space<vmem>>, vector<1x1x64x5xf32>
    %59 = vector.shape_cast %58 : vector<1x1x64x5xf32> to vector<64x5xf32>
    %60 = vector.extract_strided_slice %1 {offsets = [2, 0, 0], sizes = [1, 32, 64], strides = [1, 1, 1]} : vector<4x32x64xf32> to vector<1x32x64xf32>
    %61 = vector.shape_cast %60 : vector<1x32x64xf32> to vector<32x64xf32>
    %62 = vector.extract_strided_slice %59 {offsets = [0, 0], sizes = [64, 4], strides = [1, 1]} : vector<64x5xf32> to vector<64x4xf32>
    %cst_33 = arith.constant dense<0.000000e+00> : vector<32x4xf32>
    %63 = tpu.matmul %61, %62, %cst_33 {dimension_numbers = #tpu.dot_dimension_numbers<[1], [0], [0], [1], [0, 0, 1, 1], [], []>} : vector<32x64xf32>, vector<64x4xf32>, vector<32x4xf32> -> vector<32x4xf32>
    %64 = arith.addf %54, %63 : vector<32x4xf32>
    %65 = vector.extract_strided_slice %1 {offsets = [3, 0, 0], sizes = [1, 32, 64], strides = [1, 1, 1]} : vector<4x32x64xf32> to vector<1x32x64xf32>
    %66 = vector.shape_cast %65 : vector<1x32x64xf32> to vector<32x64xf32>
    %67 = vector.extract_strided_slice %59 {offsets = [0, 1], sizes = [64, 4], strides = [1, 1]} : vector<64x5xf32> to vector<64x4xf32>
    %cst_34 = arith.constant dense<0.000000e+00> : vector<32x4xf32>
    %68 = tpu.matmul %66, %67, %cst_34 {dimension_numbers = #tpu.dot_dimension_numbers<[1], [0], [0], [1], [0, 0, 1, 1], [], []>} : vector<32x64xf32>, vector<64x4xf32>, vector<32x4xf32> -> vector<32x4xf32>
    %69 = arith.addf %64, %68 : vector<32x4xf32>
    %70 = vector.broadcast %2 : vector<32x1xf32> to vector<32x4xf32>
    %71 = arith.addf %69, %70 : vector<32x4xf32>
    %c0_35 = arith.constant 0 : index
    %c1 = arith.constant 1 : index
    %c0_36 = arith.constant 0 : index
    %c0_37 = arith.constant 0 : index
    %72 = vector.load %arg5[%c0_35, %c1, %c0_36, %c0_37] : memref<1x4x32x4xf32, #tpu.memory_space<vmem>>, vector<1x1x32x4xf32>
    %73 = vector.shape_cast %72 : vector<1x1x32x4xf32> to vector<32x4xf32>
    %74 = vector.shape_cast %71 : vector<32x4xf32> to vector<1x1x32x4xf32>
    tpu.vector_store %arg5[%c0_35, %c1, %c0_36, %c0_37], %74 {strides = array<i32>} : memref<1x4x32x4xf32, #tpu.memory_space<vmem>>, vector<1x1x32x4xf32>,
    %cst_38 = arith.constant 0.000000e+00 : f32
    %75 = vector.broadcast %cst_38 : f32 to vector<32x4xf32>
    %c2_i32 = arith.constant 2 : i32
    %76 = arith.addi %0, %c2_i32 : i32
    %c0_i32_39 = arith.constant 0 : i32
    %77 = arith.addi %76, %c0_i32_39 : i32
    %c0_40 = arith.constant 0 : index
    %78 = arith.index_cast %77 : i32 to index
    %c0_41 = arith.constant 0 : index
    %c0_42 = arith.constant 0 : index
    %79 = vector.load %arg2[%c0_40, %78, %c0_41, %c0_42] : memref<1x5x64x5xf32, #tpu.memory_space<vmem>>, vector<1x1x64x5xf32>
    %80 = vector.shape_cast %79 : vector<1x1x64x5xf32> to vector<64x5xf32>
    %81 = vector.extract_strided_slice %1 {offsets = [0, 0, 0], sizes = [1, 32, 64], strides = [1, 1, 1]} : vector<4x32x64xf32> to vector<1x32x64xf32>
    %82 = vector.shape_cast %81 : vector<1x32x64xf32> to vector<32x64xf32>
    %83 = vector.extract_strided_slice %80 {offsets = [0, 0], sizes = [64, 4], strides = [1, 1]} : vector<64x5xf32> to vector<64x4xf32>
    %cst_43 = arith.constant dense<0.000000e+00> : vector<32x4xf32>
    %84 = tpu.matmul %82, %83, %cst_43 {dimension_numbers = #tpu.dot_dimension_numbers<[1], [0], [0], [1], [0, 0, 1, 1], [], []>} : vector<32x64xf32>, vector<64x4xf32>, vector<32x4xf32> -> vector<32x4xf32>
    %85 = arith.addf %75, %84 : vector<32x4xf32>
    %86 = vector.extract_strided_slice %1 {offsets = [1, 0, 0], sizes = [1, 32, 64], strides = [1, 1, 1]} : vector<4x32x64xf32> to vector<1x32x64xf32>
    %87 = vector.shape_cast %86 : vector<1x32x64xf32> to vector<32x64xf32>
    %88 = vector.extract_strided_slice %80 {offsets = [0, 1], sizes = [64, 4], strides = [1, 1]} : vector<64x5xf32> to vector<64x4xf32>
    %cst_44 = arith.constant dense<0.000000e+00> : vector<32x4xf32>
    %89 = tpu.matmul %87, %88, %cst_44 {dimension_numbers = #tpu.dot_dimension_numbers<[1], [0], [0], [1], [0, 0, 1, 1], [], []>} : vector<32x64xf32>, vector<64x4xf32>, vector<32x4xf32> -> vector<32x4xf32>
    %90 = arith.addf %85, %89 : vector<32x4xf32>
    %c2_i32_45 = arith.constant 2 : i32
    %91 = arith.addi %0, %c2_i32_45 : i32
    %c1_i32_46 = arith.constant 1 : i32
    %92 = arith.addi %91, %c1_i32_46 : i32
    %c0_47 = arith.constant 0 : index
    %93 = arith.index_cast %92 : i32 to index
    %c0_48 = arith.constant 0 : index
    %c0_49 = arith.constant 0 : index
    %94 = vector.load %arg2[%c0_47, %93, %c0_48, %c0_49] : memref<1x5x64x5xf32, #tpu.memory_space<vmem>>, vector<1x1x64x5xf32>
    %95 = vector.shape_cast %94 : vector<1x1x64x5xf32> to vector<64x5xf32>
    %96 = vector.extract_strided_slice %1 {offsets = [2, 0, 0], sizes = [1, 32, 64], strides = [1, 1, 1]} : vector<4x32x64xf32> to vector<1x32x64xf32>
    %97 = vector.shape_cast %96 : vector<1x32x64xf32> to vector<32x64xf32>
    %98 = vector.extract_strided_slice %95 {offsets = [0, 0], sizes = [64, 4], strides = [1, 1]} : vector<64x5xf32> to vector<64x4xf32>
    %cst_50 = arith.constant dense<0.000000e+00> : vector<32x4xf32>
    %99 = tpu.matmul %97, %98, %cst_50 {dimension_numbers = #tpu.dot_dimension_numbers<[1], [0], [0], [1], [0, 0, 1, 1], [], []>} : vector<32x64xf32>, vector<64x4xf32>, vector<32x4xf32> -> vector<32x4xf32>
    %100 = arith.addf %90, %99 : vector<32x4xf32>
    %101 = vector.extract_strided_slice %1 {offsets = [3, 0, 0], sizes = [1, 32, 64], strides = [1, 1, 1]} : vector<4x32x64xf32> to vector<1x32x64xf32>
    %102 = vector.shape_cast %101 : vector<1x32x64xf32> to vector<32x64xf32>
    %103 = vector.extract_strided_slice %95 {offsets = [0, 1], sizes = [64, 4], strides = [1, 1]} : vector<64x5xf32> to vector<64x4xf32>
    %cst_51 = arith.constant dense<0.000000e+00> : vector<32x4xf32>
    %104 = tpu.matmul %102, %103, %cst_51 {dimension_numbers = #tpu.dot_dimension_numbers<[1], [0], [0], [1], [0, 0, 1, 1], [], []>} : vector<32x64xf32>, vector<64x4xf32>, vector<32x4xf32> -> vector<32x4xf32>
    %105 = arith.addf %100, %104 : vector<32x4xf32>
    %106 = vector.broadcast %2 : vector<32x1xf32> to vector<32x4xf32>
    %107 = arith.addf %105, %106 : vector<32x4xf32>
    %c0_52 = arith.constant 0 : index
    %c2 = arith.constant 2 : index
    %c0_53 = arith.constant 0 : index
    %c0_54 = arith.constant 0 : index
    %108 = vector.load %arg5[%c0_52, %c2, %c0_53, %c0_54] : memref<1x4x32x4xf32, #tpu.memory_space<vmem>>, vector<1x1x32x4xf32>
    %109 = vector.shape_cast %108 : vector<1x1x32x4xf32> to vector<32x4xf32>
    %110 = vector.shape_cast %107 : vector<32x4xf32> to vector<1x1x32x4xf32>
    tpu.vector_store %arg5[%c0_52, %c2, %c0_53, %c0_54], %110 {strides = array<i32>} : memref<1x4x32x4xf32, #tpu.memory_space<vmem>>, vector<1x1x32x4xf32>,
    %cst_55 = arith.constant 0.000000e+00 : f32
    %111 = vector.broadcast %cst_55 : f32 to vector<32x4xf32>
    %c3_i32 = arith.constant 3 : i32
    %112 = arith.addi %0, %c3_i32 : i32
    %c0_i32_56 = arith.constant 0 : i32
    %113 = arith.addi %112, %c0_i32_56 : i32
    %c0_57 = arith.constant 0 : index
    %114 = arith.index_cast %113 : i32 to index
    %c0_58 = arith.constant 0 : index
    %c0_59 = arith.constant 0 : index
    %115 = vector.load %arg2[%c0_57, %114, %c0_58, %c0_59] : memref<1x5x64x5xf32, #tpu.memory_space<vmem>>, vector<1x1x64x5xf32>
    %116 = vector.shape_cast %115 : vector<1x1x64x5xf32> to vector<64x5xf32>
    %117 = vector.extract_strided_slice %1 {offsets = [0, 0, 0], sizes = [1, 32, 64], strides = [1, 1, 1]} : vector<4x32x64xf32> to vector<1x32x64xf32>
    %118 = vector.shape_cast %117 : vector<1x32x64xf32> to vector<32x64xf32>
    %119 = vector.extract_strided_slice %116 {offsets = [0, 0], sizes = [64, 4], strides = [1, 1]} : vector<64x5xf32> to vector<64x4xf32>
    %cst_60 = arith.constant dense<0.000000e+00> : vector<32x4xf32>
    %120 = tpu.matmul %118, %119, %cst_60 {dimension_numbers = #tpu.dot_dimension_numbers<[1], [0], [0], [1], [0, 0, 1, 1], [], []>} : vector<32x64xf32>, vector<64x4xf32>, vector<32x4xf32> -> vector<32x4xf32>
    %121 = arith.addf %111, %120 : vector<32x4xf32>
    %122 = vector.extract_strided_slice %1 {offsets = [1, 0, 0], sizes = [1, 32, 64], strides = [1, 1, 1]} : vector<4x32x64xf32> to vector<1x32x64xf32>
    %123 = vector.shape_cast %122 : vector<1x32x64xf32> to vector<32x64xf32>
    %124 = vector.extract_strided_slice %116 {offsets = [0, 1], sizes = [64, 4], strides = [1, 1]} : vector<64x5xf32> to vector<64x4xf32>
    %cst_61 = arith.constant dense<0.000000e+00> : vector<32x4xf32>
    %125 = tpu.matmul %123, %124, %cst_61 {dimension_numbers = #tpu.dot_dimension_numbers<[1], [0], [0], [1], [0, 0, 1, 1], [], []>} : vector<32x64xf32>, vector<64x4xf32>, vector<32x4xf32> -> vector<32x4xf32>
    %126 = arith.addf %121, %125 : vector<32x4xf32>
    %c3_i32_62 = arith.constant 3 : i32
    %127 = arith.addi %0, %c3_i32_62 : i32
    %c1_i32_63 = arith.constant 1 : i32
    %128 = arith.addi %127, %c1_i32_63 : i32
    %c0_64 = arith.constant 0 : index
    %129 = arith.index_cast %128 : i32 to index
    %c0_65 = arith.constant 0 : index
    %c0_66 = arith.constant 0 : index
    %130 = vector.load %arg2[%c0_64, %129, %c0_65, %c0_66] : memref<1x5x64x5xf32, #tpu.memory_space<vmem>>, vector<1x1x64x5xf32>
    %131 = vector.shape_cast %130 : vector<1x1x64x5xf32> to vector<64x5xf32>
    %132 = vector.extract_strided_slice %1 {offsets = [2, 0, 0], sizes = [1, 32, 64], strides = [1, 1, 1]} : vector<4x32x64xf32> to vector<1x32x64xf32>
    %133 = vector.shape_cast %132 : vector<1x32x64xf32> to vector<32x64xf32>
    %134 = vector.extract_strided_slice %131 {offsets = [0, 0], sizes = [64, 4], strides = [1, 1]} : vector<64x5xf32> to vector<64x4xf32>
    %cst_67 = arith.constant dense<0.000000e+00> : vector<32x4xf32>
    %135 = tpu.matmul %133, %134, %cst_67 {dimension_numbers = #tpu.dot_dimension_numbers<[1], [0], [0], [1], [0, 0, 1, 1], [], []>} : vector<32x64xf32>, vector<64x4xf32>, vector<32x4xf32> -> vector<32x4xf32>
    %136 = arith.addf %126, %135 : vector<32x4xf32>
    %137 = vector.extract_strided_slice %1 {offsets = [3, 0, 0], sizes = [1, 32, 64], strides = [1, 1, 1]} : vector<4x32x64xf32> to vector<1x32x64xf32>
    %138 = vector.shape_cast %137 : vector<1x32x64xf32> to vector<32x64xf32>
    %139 = vector.extract_strided_slice %131 {offsets = [0, 1], sizes = [64, 4], strides = [1, 1]} : vector<64x5xf32> to vector<64x4xf32>
    %cst_68 = arith.constant dense<0.000000e+00> : vector<32x4xf32>
    %140 = tpu.matmul %138, %139, %cst_68 {dimension_numbers = #tpu.dot_dimension_numbers<[1], [0], [0], [1], [0, 0, 1, 1], [], []>} : vector<32x64xf32>, vector<64x4xf32>, vector<32x4xf32> -> vector<32x4xf32>
    %141 = arith.addf %136, %140 : vector<32x4xf32>
    %142 = vector.broadcast %2 : vector<32x1xf32> to vector<32x4xf32>
    %143 = arith.addf %141, %142 : vector<32x4xf32>
    %c0_69 = arith.constant 0 : index
    %c3 = arith.constant 3 : index
    %c0_70 = arith.constant 0 : index
    %c0_71 = arith.constant 0 : index
    %144 = vector.load %arg5[%c0_69, %c3, %c0_70, %c0_71] : memref<1x4x32x4xf32, #tpu.memory_space<vmem>>, vector<1x1x32x4xf32>
    %145 = vector.shape_cast %144 : vector<1x1x32x4xf32> to vector<32x4xf32>
    %146 = vector.shape_cast %143 : vector<32x4xf32> to vector<1x1x32x4xf32>
    tpu.vector_store %arg5[%c0_69, %c3, %c0_70, %c0_71], %146 {strides = array<i32>} : memref<1x4x32x4xf32, #tpu.memory_space<vmem>>, vector<1x1x32x4xf32>,
    return
  }
  func.func @transform_0(%arg0: i32, %arg1: i32) -> (i32, i32, i32, i32) {
    %c0_i32 = arith.constant 0 : i32
    %c0_i32_0 = arith.constant 0 : i32
    %c0_i32_1 = arith.constant 0 : i32
    %c0_i32_2 = arith.constant 0 : i32
    return %arg0, %c0_i32, %c0_i32_0, %c0_i32_1 : i32, i32, i32, i32
  }
  func.func @transform_1(%arg0: i32, %arg1: i32) -> (i32, i32, i32) {
    %c0_i32 = arith.constant 0 : i32
    %c0_i32_0 = arith.constant 0 : i32
    %c0_i32_1 = arith.constant 0 : i32
    %c0_i32_2 = arith.constant 0 : i32
    return %c0_i32, %c0_i32_0, %c0_i32_1 : i32, i32, i32
  }
  func.func @transform_2(%arg0: i32, %arg1: i32) -> (i32, i32) {
    %c0_i32 = arith.constant 0 : i32
    %c0_i32_0 = arith.constant 0 : i32
    %c0_i32_1 = arith.constant 0 : i32
    return %c0_i32, %c0_i32_0 : i32, i32
  }
  func.func @transform_3(%arg0: i32, %arg1: i32) -> (i32, i32, i32, i32) {
    %c0_i32 = arith.constant 0 : i32
    %c0_i32_0 = arith.constant 0 : i32
    %c0_i32_1 = arith.constant 0 : i32
    return %arg0, %arg1, %c0_i32, %c0_i32_0 : i32, i32, i32, i32
  }
}

</mosaic_0001>

<llo_original>
// kernel: recnext_stem.3
$region0: #{recnext_stem.3}
  #allocation0 [shape = 'u32[]', space=smem, size = 0x4, offset = 0x4, fixed_abs, tag = 'smem constant byte address 0x4 - core index']
  #allocation1 [shape = 'u32[144,128]{1,0:T(1,128)}', space=vmem, size = 0x12000, scoped, tag = 'internal scratch']
  %s0 = inlined_call_operand.vmem [shape: f32[2,5,64,5], index: 0, kind: input, shape index: {}]
  %s1 = inlined_call_operand.vmem [shape: f32[4,32,64], index: 1, kind: input, shape index: {}]
  %s2 = inlined_call_operand.vmem [shape: f32[32,1], index: 2, kind: input, shape index: {}]
  %s3 = inlined_call_operand.vmem [shape: f32[2,4,32,4], index: 3, kind: output, shape index: {}]
  %s4 = sld [smem:[#allocation0]]
  $region45: #{recnext_stem.3} parent=0
    _
  %s6 = ssub.s32 1, %s4
  %s7 = scalar_select 0, %s6, %s4
  loop: start=0, step=1, limit=4
  $region2: #{recnext_stem.3} parent=0 // loop_pre_header
    _
  $region3: #{recnext_stem.3} parent=0 // loop_header
    %s9 = sphi 0, %s13
    %p10 = scmp.ge.s32.totalorder %s9, 4
    %s16 = sphi 0, %s28
    %s17 = sphi 0, %s24
    %s18 = sphi 0, %s16
    %s19 = sphi 0, %s17
    %s20 = sphi 0, %s18
    %s21 = sphi 0, %s19
    %s31 = sphi 0, %s33
    %s34 = sphi 0, %s31
    %s35 = sphi 0, %s34
    %s51 = sphi 0, %s35
    %s55 = sphi 0, %s55
    %s57 = sphi 0, %s55
    %s58 = sphi 0, %s57
    %s72 = sphi 0, %s58
    %s76 = sphi 0, %s76
    %s78 = sphi 0, %s76
    %s79 = sphi 0, %s78
    %s93 = sphi 0, %s79
    %s101 = sphi 0, %s103
    %s104 = sphi 0, %s101
    %s105 = sphi 0, %s104
    %s121 = sphi 0, %s105
  $region4: #{recnext_stem.3} parent=0 // loop_header_branch
    %12 = sbr.rel (%p10) target = $region8
  $region5: #{recnext_stem.3} parent=0 // loop_body
    %s14 = ssub.s32 %s9, 1
    %s15 = ssub.s32 %s9, 2
    %s22 = sadd.s32 1, %s17
    %p23 = scmp.ge.s32.totalorder %s22, 1
    %s24 = scalar_select %p23, 0, %s22
    %s25 = sadd.s32 1, %s16
    %s26 = scalar_select %p23, %s25, %s16
    %p27 = scmp.ge.s32.totalorder %s26, 2
    %s28 = scalar_select %p27, 0, %s26
    %s29 = ssub.s32 %s16, %s28
    %p30 = scmp.eq.s32.totalorder %s29, 0
    %s32 = sadd.s32 %s31, 1
    %s33 = scalar_select %p30, %s31, %s32
    %p36 = pneg %p30
    %p37 = scmp.eq.s32.totalorder %s9, 1
    %p38 = por %p36, %p37
    %p39 = scmp.ne.s32.totalorder %s31, %s34
    %p40 = scmp.eq.s32.totalorder %s9, 0
    %p41 = por %p39, %p40
    %p42 = scmp.ne.s32.totalorder %s31, %s34
    %p43 = scmp.eq.s32.totalorder %s14, 1
    %p44 = por %p42, %p43
    %p45 = scmp.ne.s32.totalorder %s34, %s35
    %p46 = scmp.eq.s32.totalorder %s14, 0
    %p47 = por %p45, %p46
    %p48 = scmp.ne.s32.totalorder %s34, %s35
    %p49 = scmp.eq.s32.totalorder %s15, 1
    %p50 = por %p48, %p49
    %p52 = scmp.ne.s32.totalorder %s35, %s51
    %p53 = scmp.eq.s32.totalorder %s15, 0
    %p54 = por %p52, %p53
    %s56 = sadd.s32 %s55, 1
    %p59 = scmp.eq.s32.totalorder %s9, 1
    %p60 = scmp.ne.s32.totalorder %s55, %s57
    %p61 = scmp.eq.s32.totalorder %s9, 0
    %p62 = por %p60, %p61
    %p63 = scmp.ne.s32.totalorder %s55, %s57
    %p64 = scmp.eq.s32.totalorder %s14, 1
    %p65 = por %p63, %p64
    %p66 = scmp.ne.s32.totalorder %s57, %s58
    %p67 = scmp.eq.s32.totalorder %s14, 0
    %p68 = por %p66, %p67
    %p69 = scmp.ne.s32.totalorder %s57, %s58
    %p70 = scmp.eq.s32.totalorder %s15, 1
    %p71 = por %p69, %p70
    %p73 = scmp.ne.s32.totalorder %s58, %s72
    %p74 = scmp.eq.s32.totalorder %s15, 0
    %p75 = por %p73, %p74
    %s77 = sadd.s32 %s76, 1
    %p80 = scmp.eq.s32.totalorder %s9, 1
    %p81 = scmp.ne.s32.totalorder %s76, %s78
    %p82 = scmp.eq.s32.totalorder %s9, 0
    %p83 = por %p81, %p82
    %p84 = scmp.ne.s32.totalorder %s76, %s78
    %p85 = scmp.eq.s32.totalorder %s14, 1
    %p86 = por %p84, %p85
    %p87 = scmp.ne.s32.totalorder %s78, %s79
    %p88 = scmp.eq.s32.totalorder %s14, 0
    %p89 = por %p87, %p88
    %p90 = scmp.ne.s32.totalorder %s78, %s79
    %p91 = scmp.eq.s32.totalorder %s15, 1
    %p92 = por %p90, %p91
    %p94 = scmp.ne.s32.totalorder %s79, %s93
    %p95 = scmp.eq.s32.totalorder %s15, 0
    %p96 = por %p94, %p95
    %s97 = ssub.s32 %s16, %s28
    %s98 = ssub.s32 %s17, %s24
    %s99 = sor.u32 %s97, %s98
    %p100 = scmp.eq.s32.totalorder %s99, 0
    %s102 = sadd.s32 %s101, 1
    %s103 = scalar_select %p100, %s101, %s102
    %p106 = pneg %p100
    %p107 = scmp.eq.s32.totalorder %s9, 1
    %p108 = por %p106, %p107
    %p109 = scmp.ne.s32.totalorder %s101, %s104
    %p110 = scmp.eq.s32.totalorder %s9, 0
    %p111 = por %p109, %p110
    %p112 = scmp.ne.s32.totalorder %s101, %s104
    %p113 = scmp.eq.s32.totalorder %s14, 1
    %p114 = por %p112, %p113
    %p115 = scmp.ne.s32.totalorder %s104, %s105
    %p116 = scmp.eq.s32.totalorder %s14, 0
    %p117 = por %p115, %p116
    %p118 = scmp.ne.s32.totalorder %s104, %s105
    %p119 = scmp.eq.s32.totalorder %s15, 1
    %p120 = por %p118, %p119
    %p122 = scmp.ne.s32.totalorder %s105, %s121
    %p123 = scmp.eq.s32.totalorder %s15, 0
    %p124 = por %p122, %p123
    %p125 = scmp.le.s32.totalorder 1, %s9
    %p126 = scmp.lt.s32.totalorder %s9, 3
    %p127 = pnand %p125, %p126
    %p128 = pneg %p127
    // Predicated region
    $region9: #{recnext_stem.3} parent=5 // pred_check
      _
    $region10: #{recnext_stem.3} parent=5 // pred_check_branch
      %130 = sbr.rel (%p127) target = $region12
    $region11: #{recnext_stem.3} parent=5 // pred_region
      %s131 = ssub.s32 %s9, 1
      // Predicated region
      $region13: #{recnext_stem.3} parent=11 // pred_check
        %p132 = pneg %p68
      $region14: #{recnext_stem.3} parent=11 // pred_check_branch
        %134 = sbr.rel (%p132) target = $region16
      $region15: #{recnext_stem.3} parent=11 // pred_region
        _
      $region16: #{recnext_stem.3} parent=11 // pred_fallthru
        _
      // Predicated region
      $region17: #{recnext_stem.3} parent=11 // pred_check
        %p135 = pneg %p89
      $region18: #{recnext_stem.3} parent=11 // pred_check_branch
        %137 = sbr.rel (%p135) target = $region20
      $region19: #{recnext_stem.3} parent=11 // pred_region
        _
      $region20: #{recnext_stem.3} parent=11 // pred_fallthru
        _
    $region12: #{recnext_stem.3} parent=5 // pred_fallthru
      _
    %p138 = scmp.lt.s32.totalorder %s9, 2
    // Predicated region
    $region21: #{recnext_stem.3} parent=5 // pred_check
      %p139 = pneg %p138
    $region22: #{recnext_stem.3} parent=5 // pred_check_branch
      %141 = sbr.rel (%p139) target = $region24
    $region23: #{recnext_stem.3} parent=5 // pred_region
      // Predicated region
      $region25: #{recnext_stem.3} parent=23 // pred_check
        %p142 = pneg %p41
      $region26: #{recnext_stem.3} parent=23 // pred_check_branch
        %144 = sbr.rel (%p142) target = $region28
      $region27: #{recnext_stem.3} parent=23 // pred_region
        %p145 = scmp.lt.s32.totalorder %s16, 1
        %s146 = scalar_select %p145, %s16, 1
        %s147 = smul.addr %s146, 40
        %s148 = smul.addr %s147, 8
        %s149 = scalar_lea.vmem %s0, %s148
      $region28: #{recnext_stem.3} parent=23 // pred_fallthru
        _
    $region24: #{recnext_stem.3} parent=5 // pred_fallthru
      _
    %p150 = scmp.le.s32.totalorder 1, %s9
    %p151 = scmp.lt.s32.totalorder %s9, 3
    %p152 = pnand %p150, %p151
    %p153 = pneg %p152
    // Predicated region
    $region29: #{recnext_stem.3} parent=5 // pred_check
      _
    $region30: #{recnext_stem.3} parent=5 // pred_check_branch
      %155 = sbr.rel (%p152) target = $region32
    $region31: #{recnext_stem.3} parent=5 // pred_region
      %s156 = ssub.s32 %s9, 1
      %p157 = scmp.lt.s32.totalorder %s18, 1
      %s158 = scalar_select %p157, %s18, 1
      %s159 = smul.addr %s158, 40
      %s160 = smul.addr %s159, 8
      %s161 = scalar_lea.vmem %s0, %s160
      %p162 = pneg %p47
      %p163 = pneg %p44
      %p164 = pneg %p68
      %p165 = pneg %p65
      %p166 = pneg %p89
      %p167 = pneg %p86
      %p168 = pneg %p117
      %p169 = pneg %p114
      %s170 = smul.u32 4, %s19
      %p171 = scmp.lt.s32.totalorder %s18, 1
      %s172 = scalar_select %p171, %s18, 1
      %p173 = scmp.lt.s32.totalorder %s170, 3
      %s174 = scalar_select %p173, %s170, 3
      %s175 = smul.addr %s174, 4
      %s176 = smul.addr %s172, 16
      %s177 = sadd.s32 %s175, %s176
      %s178 = smul.addr %s177, 8
      %s179 = scalar_lea.vmem %s3, %s178
      %p180 = scmp.lt.s32.totalorder %s18, 1
      %s181 = scalar_select %p180, %s18, 1
      %s182 = smul.addr %s181, 40
      %s183 = smul.addr %s182, 8
      %s184 = scalar_lea.vmem %s0, %s183
      %s185 = smul.u32 4, %s19
      %p186 = scmp.lt.s32.totalorder %s18, 1
      %s187 = scalar_select %p186, %s18, 1
      %p188 = scmp.lt.s32.totalorder %s185, 3
      %s189 = scalar_select %p188, %s185, 3
      %s190 = smul.addr %s189, 4
      %s191 = smul.addr %s187, 16
      %s192 = sadd.s32 %s190, %s191
      %s193 = smul.addr %s192, 8
      %s194 = scalar_lea.vmem %s3, %s193
      %s195 = smul.u32 4, %s19
      %s196 = smul.u32 %s19, 4
      %v197 = vld [vmem:[%s1] sm:$0xff]
      %v198 = vld [vmem:[%s1 + $0x8] sm:$0xff]
      %v199 = vld [vmem:[%s1 + $0x10] sm:$0xff]
      %v200 = vld [vmem:[%s1 + $0x18] sm:$0xff]
      %v201 = vld [vmem:[%s1 + $0x20] sm:$0xff]
      %v202 = vld [vmem:[%s1 + $0x28] sm:$0xff]
      %v203 = vld [vmem:[%s1 + $0x30] sm:$0xff]
      %v204 = vld [vmem:[%s1 + $0x38] sm:$0xff]
      %v205 = vld [vmem:[%s1 + $0x40] sm:$0xff]
      %v206 = vld [vmem:[%s1 + $0x48] sm:$0xff]
      %v207 = vld [vmem:[%s1 + $0x50] sm:$0xff]
      %v208 = vld [vmem:[%s1 + $0x58] sm:$0xff]
      %v209 = vld [vmem:[%s1 + $0x60] sm:$0xff]
      %v210 = vld [vmem:[%s1 + $0x68] sm:$0xff]
      %v211 = vld [vmem:[%s1 + $0x70] sm:$0xff]
      %v212 = vld [vmem:[%s1 + $0x78] sm:$0xff]
      %v213 = vld [vmem:[%s2] sm:$0xff]
      %v214 = vld [vmem:[%s2 + $0x8] sm:$0xff]
      %v215 = vld [vmem:[%s2 + $0x10] sm:$0xff]
      %v216 = vld [vmem:[%s2 + $0x18] sm:$0xff]
      %s217 = smul.u32 %s196, 64
      %s218 = scalar_lea.vmem %s184, %s217
      %v219 = vld [vmem:[%s218] sm:$0xff]
      %v220 = vld [vmem:[%s218 + $0x8] sm:$0xff]
      %v221 = vld [vmem:[%s218 + $0x10] sm:$0xff]
      %v222 = vld [vmem:[%s218 + $0x18] sm:$0xff]
      %v223 = vld [vmem:[%s218 + $0x20] sm:$0xff]
      %v224 = vld [vmem:[%s218 + $0x28] sm:$0xff]
      %v225 = vld [vmem:[%s218 + $0x30] sm:$0xff]
      %v226 = vld [vmem:[%s218 + $0x38] sm:$0xff]
      %235 = vrot.lane.b32.xlu0 %v219, 127
      %v236 = vpop.permute.xlu0 %235
      %237 = vrot.lane.b32.xlu0 %v220, 127
      %v238 = vpop.permute.xlu0 %237
      %239 = vrot.lane.b32.xlu0 %v221, 127
      %v240 = vpop.permute.xlu0 %239
      %241 = vrot.lane.b32.xlu0 %v222, 127
      %v242 = vpop.permute.xlu0 %241
      %243 = vrot.lane.b32.xlu0 %v223, 127
      %v244 = vpop.permute.xlu0 %243
      %245 = vrot.lane.b32.xlu0 %v224, 127
      %v246 = vpop.permute.xlu0 %245
      %247 = vrot.lane.b32.xlu0 %v225, 127
      %v248 = vpop.permute.xlu0 %247
      %249 = vrot.lane.b32.xlu0 %v226, 127
      %v250 = vpop.permute.xlu0 %249
      %vm259 = vcmask 523264
      %v261 = vsel %vm259, %v201, 0
      %v264 = vsel %vm259, %v202, 0
      %v267 = vsel %vm259, %v203, 0
      %v270 = vsel %vm259, %v204, 0
      %272 = vmatprep.subr.mxu0 0.0
      %273 = vmatpush1.msra.mxu0 %v236
      %274 = vmatprep.subr.mxu0 0.0
      %275 = vmatpush1.msra.mxu0 %v238
      %276 = vmatprep.subr.mxu0 0.0
      %277 = vmatpush1.msra.mxu0 %v240
      %278 = vmatprep.subr.mxu0 0.0
      %279 = vmatpush1.msra.mxu0 %v242
      %280 = vmatprep.subr.mxu0 0.0
      %281 = vmatpush1.msra.mxu0 %v244
      %282 = vmatprep.subr.mxu0 0.0
      %283 = vmatpush1.msra.mxu0 %v246
      %284 = vmatprep.subr.mxu0 0.0
      %285 = vmatpush1.msra.mxu0 %v248
      %286 = vmatprep.subr.mxu0 0.0
      %287 = vmatpush1.msra.mxu0 %v250
      %288 = vmatprep.subr.mxu0 0.0
      %289 = vmatpush1.msra.mxu0 0.0
      %290 = vmatprep.subr.mxu0 0.0
      %291 = vmatpush1.msra.mxu0 0.0
      %292 = vmatprep.subr.mxu0 0.0
      %293 = vmatpush1.msra.mxu0 0.0
      %294 = vmatprep.subr.mxu0 0.0
      %295 = vmatpush1.msra.mxu0 0.0
      %296 = vmatprep.subr.mxu0 0.0
      %297 = vmatpush1.msra.mxu0 0.0
      %298 = vmatprep.subr.mxu0 0.0
      %299 = vmatpush1.msra.mxu0 0.0
      %300 = vmatprep.subr.mxu0 0.0
      %301 = vmatpush1.msra.mxu0 0.0
      %302 = vmatprep.subr.mxu0 0.0
      %303 = vmatpush1.msra.mxu0 0.0
      %304 = vmatprep.subr.mxu0 0.0
      %305 = vmatpush1.msra.mxu0 0.0
      %306 = vmatprep.subr.mxu0 0.0
      %307 = vmatpush1.msra.mxu0 0.0
      %308 = vmatprep.subr.mxu0 0.0
      %309 = vmatpush1.msra.mxu0 0.0
      %310 = vmatprep.subr.mxu0 0.0
      %311 = vmatpush1.msra.mxu0 0.0
      %312 = vmatprep.subr.mxu0 0.0
      %313 = vmatpush1.msra.mxu0 0.0
      %314 = vmatprep.subr.mxu0 0.0
      %315 = vmatpush1.msra.mxu0 0.0
      %316 = vmatprep.subr.mxu0 0.0
      %317 = vmatpush1.msra.mxu0 0.0
      %318 = vmatprep.subr.mxu0 0.0
      %319 = vmatpush1.msra.mxu0 0.0
      %320 = vmatprep.subr.mxu0 0.0
      %321 = vmatpush1.msra.mxu0 0.0
      %322 = vmatprep.subr.mxu0 0.0
      %323 = vmatpush1.msra.mxu0 0.0
      %324 = vmatprep.subr.mxu0 0.0
      %325 = vmatpush1.msra.mxu0 0.0
      %326 = vmatprep.subr.mxu0 0.0
      %327 = vmatpush1.msra.mxu0 0.0
      %328 = vmatprep.subr.mxu0 0.0
      %329 = vmatpush1.msra.mxu0 0.0
      %330 = vmatprep.subr.mxu0 0.0
      %331 = vmatpush1.msra.mxu0 0.0
      %332 = vmatprep.subr.mxu0 0.0
      %333 = vmatpush1.msra.mxu0 0.0
      %334 = vmatprep.subr.mxu0 0.0
      %335 = vmatpush1.msra.mxu0 0.0
      %336 = vmatprep.mubr.f32.mxu0 0.0
      %337 = vmatmul.mubr.f32.gmra.mrb[0].mxu0 %v261
      %v338 = vpop.f32.mrb[0].mxu0
      %v339 = vadd.f32 0.0, %v338
      %v340 = vpop.f32.mrb[0].mxu0
      %341 = vmatprep.mubr.f32.mxu0 0.0
      %342 = vmatmul.mubr.f32.gmra.mrb[0].mxu0 %v264
      %v343 = vpop.f32.mrb[0].mxu0
      %v344 = vadd.f32 0.0, %v343
      %v345 = vpop.f32.mrb[0].mxu0
      %346 = vmatprep.mubr.f32.mxu0 0.0
      %347 = vmatmul.mubr.f32.gmra.mrb[0].mxu0 %v267
      %v348 = vpop.f32.mrb[0].mxu0
      %v349 = vadd.f32 0.0, %v348
      %v350 = vpop.f32.mrb[0].mxu0
      %351 = vmatprep.mubr.f32.mxu0 0.0
      %352 = vmatmul.mubr.f32.gmra.mrb[0].mxu0 %v270
      %v353 = vpop.f32.mrb[0].mxu0
      %v354 = vadd.f32 0.0, %v353
      %v355 = vpop.f32.mrb[0].mxu0
      %356 = vdwg.mxu0
      %v358 = vsel %vm259, %v197, 0
      %v361 = vsel %vm259, %v198, 0
      %v364 = vsel %vm259, %v199, 0
      %v367 = vsel %vm259, %v200, 0
      %369 = vmatprep.subr.mxu0 0.0
      %370 = vmatpush1.msra.mxu0 %v219
      %371 = vmatprep.subr.mxu0 0.0
      %372 = vmatpush1.msra.mxu0 %v220
      %373 = vmatprep.subr.mxu0 0.0
      %374 = vmatpush1.msra.mxu0 %v221
      %375 = vmatprep.subr.mxu0 0.0
      %376 = vmatpush1.msra.mxu0 %v222
      %377 = vmatprep.subr.mxu0 0.0
      %378 = vmatpush1.msra.mxu0 %v223
      %379 = vmatprep.subr.mxu0 0.0
      %380 = vmatpush1.msra.mxu0 %v224
      %381 = vmatprep.subr.mxu0 0.0
      %382 = vmatpush1.msra.mxu0 %v225
      %383 = vmatprep.subr.mxu0 0.0
      %384 = vmatpush1.msra.mxu0 %v226
      %385 = vmatprep.subr.mxu0 0.0
      %386 = vmatpush1.msra.mxu0 0.0
      %387 = vmatprep.subr.mxu0 0.0
      %388 = vmatpush1.msra.mxu0 0.0
      %389 = vmatprep.subr.mxu0 0.0
      %390 = vmatpush1.msra.mxu0 0.0
      %391 = vmatprep.subr.mxu0 0.0
      %392 = vmatpush1.msra.mxu0 0.0
      %393 = vmatprep.subr.mxu0 0.0
      %394 = vmatpush1.msra.mxu0 0.0
      %395 = vmatprep.subr.mxu0 0.0
      %396 = vmatpush1.msra.mxu0 0.0
      %397 = vmatprep.subr.mxu0 0.0
      %398 = vmatpush1.msra.mxu0 0.0
      %399 = vmatprep.subr.mxu0 0.0
      %400 = vmatpush1.msra.mxu0 0.0
      %401 = vmatprep.subr.mxu0 0.0
      %402 = vmatpush1.msra.mxu0 0.0
      %403 = vmatprep.subr.mxu0 0.0
      %404 = vmatpush1.msra.mxu0 0.0
      %405 = vmatprep.subr.mxu0 0.0
      %406 = vmatpush1.msra.mxu0 0.0
      %407 = vmatprep.subr.mxu0 0.0
      %408 = vmatpush1.msra.mxu0 0.0
      %409 = vmatprep.subr.mxu0 0.0
      %410 = vmatpush1.msra.mxu0 0.0
      %411 = vmatprep.subr.mxu0 0.0
      %412 = vmatpush1.msra.mxu0 0.0
      %413 = vmatprep.subr.mxu0 0.0
      %414 = vmatpush1.msra.mxu0 0.0
      %415 = vmatprep.subr.mxu0 0.0
      %416 = vmatpush1.msra.mxu0 0.0
      %417 = vmatprep.subr.mxu0 0.0
      %418 = vmatpush1.msra.mxu0 0.0
      %419 = vmatprep.subr.mxu0 0.0
      %420 = vmatpush1.msra.mxu0 0.0
      %421 = vmatprep.subr.mxu0 0.0
      %422 = vmatpush1.msra.mxu0 0.0
      %423 = vmatprep.subr.mxu0 0.0
      %424 = vmatpush1.msra.mxu0 0.0
      %425 = vmatprep.subr.mxu0 0.0
      %426 = vmatpush1.msra.mxu0 0.0
      %427 = vmatprep.subr.mxu0 0.0
      %428 = vmatpush1.msra.mxu0 0.0
      %429 = vmatprep.subr.mxu0 0.0
      %430 = vmatpush1.msra.mxu0 0.0
      %431 = vmatprep.subr.mxu0 0.0
      %432 = vmatpush1.msra.mxu0 0.0
      %433 = vmatprep.mubr.f32.mxu0 0.0
      %434 = vmatmul.mubr.f32.gmra.mrb[0].mxu0 %v358
      %v435 = vpop.f32.mrb[0].mxu0
      %v436 = vadd.f32 %v339, %v435
      %v437 = vpop.f32.mrb[0].mxu0
      %438 = vmatprep.mubr.f32.mxu0 0.0
      %439 = vmatmul.mubr.f32.gmra.mrb[0].mxu0 %v361
      %v440 = vpop.f32.mrb[0].mxu0
      %v441 = vadd.f32 %v344, %v440
      %v442 = vpop.f32.mrb[0].mxu0
      %443 = vmatprep.mubr.f32.mxu0 0.0
      %444 = vmatmul.mubr.f32.gmra.mrb[0].mxu0 %v364
      %v445 = vpop.f32.mrb[0].mxu0
      %v446 = vadd.f32 %v349, %v445
      %v447 = vpop.f32.mrb[0].mxu0
      %448 = vmatprep.mubr.f32.mxu0 0.0
      %449 = vmatmul.mubr.f32.gmra.mrb[0].mxu0 %v367
      %v450 = vpop.f32.mrb[0].mxu0
      %v451 = vadd.f32 %v354, %v450
      %v452 = vpop.f32.mrb[0].mxu0
      %453 = vdwg.mxu0
      %s454 = sadd.s32 %s196, 1
      %s455 = smul.u32 %s454, 64
      %s456 = scalar_lea.vmem %s184, %s455
      %v457 = vld [vmem:[%s456] sm:$0xff]
      %v458 = vld [vmem:[%s456 + $0x8] sm:$0xff]
      %v459 = vld [vmem:[%s456 + $0x10] sm:$0xff]
      %v460 = vld [vmem:[%s456 + $0x18] sm:$0xff]
      %v461 = vld [vmem:[%s456 + $0x20] sm:$0xff]
      %v462 = vld [vmem:[%s456 + $0x28] sm:$0xff]
      %v463 = vld [vmem:[%s456 + $0x30] sm:$0xff]
      %v464 = vld [vmem:[%s456 + $0x38] sm:$0xff]
      %v466 = vsel %vm259, %v205, 0
      %v469 = vsel %vm259, %v206, 0
      %v472 = vsel %vm259, %v207, 0
      %v475 = vsel %vm259, %v208, 0
      %477 = vmatprep.subr.mxu0 0.0
      %478 = vmatpush1.msra.mxu0 %v457
      %479 = vmatprep.subr.mxu0 0.0
      %480 = vmatpush1.msra.mxu0 %v458
      %481 = vmatprep.subr.mxu0 0.0
      %482 = vmatpush1.msra.mxu0 %v459
      %483 = vmatprep.subr.mxu0 0.0
      %484 = vmatpush1.msra.mxu0 %v460
      %485 = vmatprep.subr.mxu0 0.0
      %486 = vmatpush1.msra.mxu0 %v461
      %487 = vmatprep.subr.mxu0 0.0
      %488 = vmatpush1.msra.mxu0 %v462
      %489 = vmatprep.subr.mxu0 0.0
      %490 = vmatpush1.msra.mxu0 %v463
      %491 = vmatprep.subr.mxu0 0.0
      %492 = vmatpush1.msra.mxu0 %v464
      %493 = vmatprep.subr.mxu0 0.0
      %494 = vmatpush1.msra.mxu0 0.0
      %495 = vmatprep.subr.mxu0 0.0
      %496 = vmatpush1.msra.mxu0 0.0
      %497 = vmatprep.subr.mxu0 0.0
      %498 = vmatpush1.msra.mxu0 0.0
      %499 = vmatprep.subr.mxu0 0.0
      %500 = vmatpush1.msra.mxu0 0.0
      %501 = vmatprep.subr.mxu0 0.0
      %502 = vmatpush1.msra.mxu0 0.0
      %503 = vmatprep.subr.mxu0 0.0
      %504 = vmatpush1.msra.mxu0 0.0
      %505 = vmatprep.subr.mxu0 0.0
      %506 = vmatpush1.msra.mxu0 0.0
      %507 = vmatprep.subr.mxu0 0.0
      %508 = vmatpush1.msra.mxu0 0.0
      %509 = vmatprep.subr.mxu0 0.0
      %510 = vmatpush1.msra.mxu0 0.0
      %511 = vmatprep.subr.mxu0 0.0
      %512 = vmatpush1.msra.mxu0 0.0
      %513 = vmatprep.subr.mxu0 0.0
      %514 = vmatpush1.msra.mxu0 0.0
      %515 = vmatprep.subr.mxu0 0.0
      %516 = vmatpush1.msra.mxu0 0.0
      %517 = vmatprep.subr.mxu0 0.0
      %518 = vmatpush1.msra.mxu0 0.0
      %519 = vmatprep.subr.mxu0 0.0
      %520 = vmatpush1.msra.mxu0 0.0
      %521 = vmatprep.subr.mxu0 0.0
      %522 = vmatpush1.msra.mxu0 0.0
      %523 = vmatprep.subr.mxu0 0.0
      %524 = vmatpush1.msra.mxu0 0.0
      %525 = vmatprep.subr.mxu0 0.0
      %526 = vmatpush1.msra.mxu0 0.0
      %527 = vmatprep.subr.mxu0 0.0
      %528 = vmatpush1.msra.mxu0 0.0
      %529 = vmatprep.subr.mxu0 0.0
      %530 = vmatpush1.msra.mxu0 0.0
      %531 = vmatprep.subr.mxu0 0.0
      %532 = vmatpush1.msra.mxu0 0.0
      %533 = vmatprep.subr.mxu0 0.0
      %534 = vmatpush1.msra.mxu0 0.0
      %535 = vmatprep.subr.mxu0 0.0
      %536 = vmatpush1.msra.mxu0 0.0
      %537 = vmatprep.subr.mxu0 0.0
      %538 = vmatpush1.msra.mxu0 0.0
      %539 = vmatprep.subr.mxu0 0.0
      %540 = vmatpush1.msra.mxu0 0.0
      %541 = vmatprep.mubr.f32.mxu0 0.0
      %542 = vmatmul.mubr.f32.gmra.mrb[0].mxu0 %v466
      %v543 = vpop.f32.mrb[0].mxu0
      %v544 = vadd.f32 0.0, %v543
      %v545 = vpop.f32.mrb[0].mxu0
      %546 = vmatprep.mubr.f32.mxu0 0.0
      %547 = vmatmul.mubr.f32.gmra.mrb[0].mxu0 %v469
      %v548 = vpop.f32.mrb[0].mxu0
      %v549 = vadd.f32 0.0, %v548
      %v550 = vpop.f32.mrb[0].mxu0
      %551 = vmatprep.mubr.f32.mxu0 0.0
      %552 = vmatmul.mubr.f32.gmra.mrb[0].mxu0 %v472
      %v553 = vpop.f32.mrb[0].mxu0
      %v554 = vadd.f32 0.0, %v553
      %v555 = vpop.f32.mrb[0].mxu0
      %556 = vmatprep.mubr.f32.mxu0 0.0
      %557 = vmatmul.mubr.f32.gmra.mrb[0].mxu0 %v475
      %v558 = vpop.f32.mrb[0].mxu0
      %v559 = vadd.f32 0.0, %v558
      %v560 = vpop.f32.mrb[0].mxu0
      %561 = vdwg.mxu0
      %v562 = vadd.f32 %v436, %v544
      %v563 = vadd.f32 %v441, %v549
      %v564 = vadd.f32 %v446, %v554
      %v565 = vadd.f32 %v451, %v559
      %574 = vrot.lane.b32.xlu0 %v457, 127
      %v575 = vpop.permute.xlu0 %574
      %576 = vrot.lane.b32.xlu0 %v458, 127
      %v577 = vpop.permute.xlu0 %576
      %578 = vrot.lane.b32.xlu0 %v459, 127
      %v579 = vpop.permute.xlu0 %578
      %580 = vrot.lane.b32.xlu0 %v460, 127
      %v581 = vpop.permute.xlu0 %580
      %582 = vrot.lane.b32.xlu0 %v461, 127
      %v583 = vpop.permute.xlu0 %582
      %584 = vrot.lane.b32.xlu0 %v462, 127
      %v585 = vpop.permute.xlu0 %584
      %586 = vrot.lane.b32.xlu0 %v463, 127
      %v587 = vpop.permute.xlu0 %586
      %588 = vrot.lane.b32.xlu0 %v464, 127
      %v589 = vpop.permute.xlu0 %588
      %v599 = vsel %vm259, %v209, 0
      %v602 = vsel %vm259, %v210, 0
      %v605 = vsel %vm259, %v211, 0
      %v608 = vsel %vm259, %v212, 0
      %610 = vmatprep.subr.mxu0 0.0
      %611 = vmatpush1.msra.mxu0 %v575
      %612 = vmatprep.subr.mxu0 0.0
      %613 = vmatpush1.msra.mxu0 %v577
      %614 = vmatprep.subr.mxu0 0.0
      %615 = vmatpush1.msra.mxu0 %v579
      %616 = vmatprep.subr.mxu0 0.0
      %617 = vmatpush1.msra.mxu0 %v581
      %618 = vmatprep.subr.mxu0 0.0
      %619 = vmatpush1.msra.mxu0 %v583
      %620 = vmatprep.subr.mxu0 0.0
      %621 = vmatpush1.msra.mxu0 %v585
      %622 = vmatprep.subr.mxu0 0.0
      %623 = vmatpush1.msra.mxu0 %v587
      %624 = vmatprep.subr.mxu0 0.0
      %625 = vmatpush1.msra.mxu0 %v589
      %626 = vmatprep.subr.mxu0 0.0
      %627 = vmatpush1.msra.mxu0 0.0
      %628 = vmatprep.subr.mxu0 0.0
      %629 = vmatpush1.msra.mxu0 0.0
      %630 = vmatprep.subr.mxu0 0.0
      %631 = vmatpush1.msra.mxu0 0.0
      %632 = vmatprep.subr.mxu0 0.0
      %633 = vmatpush1.msra.mxu0 0.0
      %634 = vmatprep.subr.mxu0 0.0
      %635 = vmatpush1.msra.mxu0 0.0
      %636 = vmatprep.subr.mxu0 0.0
      %637 = vmatpush1.msra.mxu0 0.0
      %638 = vmatprep.subr.mxu0 0.0
      %639 = vmatpush1.msra.mxu0 0.0
      %640 = vmatprep.subr.mxu0 0.0
      %641 = vmatpush1.msra.mxu0 0.0
      %642 = vmatprep.subr.mxu0 0.0
      %643 = vmatpush1.msra.mxu0 0.0
      %644 = vmatprep.subr.mxu0 0.0
      %645 = vmatpush1.msra.mxu0 0.0
      %646 = vmatprep.subr.mxu0 0.0
      %647 = vmatpush1.msra.mxu0 0.0
      %648 = vmatprep.subr.mxu0 0.0
      %649 = vmatpush1.msra.mxu0 0.0
      %650 = vmatprep.subr.mxu0 0.0
      %651 = vmatpush1.msra.mxu0 0.0
      %652 = vmatprep.subr.mxu0 0.0
      %653 = vmatpush1.msra.mxu0 0.0
      %654 = vmatprep.subr.mxu0 0.0
      %655 = vmatpush1.msra.mxu0 0.0
      %656 = vmatprep.subr.mxu0 0.0
      %657 = vmatpush1.msra.mxu0 0.0
      %658 = vmatprep.subr.mxu0 0.0
      %659 = vmatpush1.msra.mxu0 0.0
      %660 = vmatprep.subr.mxu0 0.0
      %661 = vmatpush1.msra.mxu0 0.0
      %662 = vmatprep.subr.mxu0 0.0
      %663 = vmatpush1.msra.mxu0 0.0
      %664 = vmatprep.subr.mxu0 0.0
      %665 = vmatpush1.msra.mxu0 0.0
      %666 = vmatprep.subr.mxu0 0.0
      %667 = vmatpush1.msra.mxu0 0.0
      %668 = vmatprep.subr.mxu0 0.0
      %669 = vmatpush1.msra.mxu0 0.0
      %670 = vmatprep.subr.mxu0 0.0
      %671 = vmatpush1.msra.mxu0 0.0
      %672 = vmatprep.subr.mxu0 0.0
      %673 = vmatpush1.msra.mxu0 0.0
      %674 = vmatprep.mubr.f32.mxu0 0.0
      %675 = vmatmul.mubr.f32.gmra.mrb[0].mxu0 %v599
      %v676 = vpop.f32.mrb[0].mxu0
      %v677 = vadd.f32 0.0, %v676
      %v678 = vpop.f32.mrb[0].mxu0
      %679 = vmatprep.mubr.f32.mxu0 0.0
      %680 = vmatmul.mubr.f32.gmra.mrb[0].mxu0 %v602
      %v681 = vpop.f32.mrb[0].mxu0
      %v682 = vadd.f32 0.0, %v681
      %v683 = vpop.f32.mrb[0].mxu0
      %684 = vmatprep.mubr.f32.mxu0 0.0
      %685 = vmatmul.mubr.f32.gmra.mrb[0].mxu0 %v605
      %v686 = vpop.f32.mrb[0].mxu0
      %v687 = vadd.f32 0.0, %v686
      %v688 = vpop.f32.mrb[0].mxu0
      %689 = vmatprep.mubr.f32.mxu0 0.0
      %690 = vmatmul.mubr.f32.gmra.mrb[0].mxu0 %v608
      %v691 = vpop.f32.mrb[0].mxu0
      %v692 = vadd.f32 0.0, %v691
      %v693 = vpop.f32.mrb[0].mxu0
      %694 = vdwg.mxu0
      %v695 = vadd.f32 %v562, %v677
      %v696 = vadd.f32 %v563, %v682
      %v697 = vadd.f32 %v564, %v687
      %v698 = vadd.f32 %v565, %v692
      %700 = vset.pattern.permute.xlu0 0
      %701 = vperm.xlu0 %700, %v213
      %v702 = vpop.permute.xlu0 %701
      %705 = vset.pattern.permute.xlu0 0
      %706 = vperm.xlu0 %705, %v214
      %v707 = vpop.permute.xlu0 %706
      %710 = vset.pattern.permute.xlu0 0
      %711 = vperm.xlu0 %710, %v215
      %v712 = vpop.permute.xlu0 %711
      %715 = vset.pattern.permute.xlu0 0
      %716 = vperm.xlu0 %715, %v216
      %v717 = vpop.permute.xlu0 %716
      %v719 = vadd.f32 %v695, %v702
      %v720 = vadd.f32 %v696, %v707
      %v721 = vadd.f32 %v697, %v712
      %v722 = vadd.f32 %v698, %v717
      %vm723 = vcmask 31744
      %724 = vst.msk [vmem:[%s194] sm:$0xff] %vm723, %v719
      %725 = vst.msk [vmem:[%s194 + $0x8] sm:$0xff] %vm723, %v720
      %726 = vst.msk [vmem:[%s194 + $0x10] sm:$0xff] %vm723, %v721
      %727 = vst.msk [vmem:[%s194 + $0x18] sm:$0xff] %vm723, %v722
      %v728 = vld [vmem:[%s456] sm:$0xff]
      %v729 = vld [vmem:[%s456 + $0x8] sm:$0xff]
      %v730 = vld [vmem:[%s456 + $0x10] sm:$0xff]
      %v731 = vld [vmem:[%s456 + $0x18] sm:$0xff]
      %v732 = vld [vmem:[%s456 + $0x20] sm:$0xff]
      %v733 = vld [vmem:[%s456 + $0x28] sm:$0xff]
      %v734 = vld [vmem:[%s456 + $0x30] sm:$0xff]
      %v735 = vld [vmem:[%s456 + $0x38] sm:$0xff]
      %744 = vrot.lane.b32.xlu0 %v728, 127
      %v745 = vpop.permute.xlu0 %744
      %746 = vrot.lane.b32.xlu0 %v729, 127
      %v747 = vpop.permute.xlu0 %746
      %748 = vrot.lane.b32.xlu0 %v730, 127
      %v749 = vpop.permute.xlu0 %748
      %750 = vrot.lane.b32.xlu0 %v731, 127
      %v751 = vpop.permute.xlu0 %750
      %752 = vrot.lane.b32.xlu0 %v732, 127
      %v753 = vpop.permute.xlu0 %752
      %754 = vrot.lane.b32.xlu0 %v733, 127
      %v755 = vpop.permute.xlu0 %754
      %756 = vrot.lane.b32.xlu0 %v734, 127
      %v757 = vpop.permute.xlu0 %756
      %758 = vrot.lane.b32.xlu0 %v735, 127
      %v759 = vpop.permute.xlu0 %758
      %768 = vmatprep.subr.mxu0 0.0
      %769 = vmatpush1.msra.mxu0 %v745
      %770 = vmatprep.subr.mxu0 0.0
      %771 = vmatpush1.msra.mxu0 %v747
      %772 = vmatprep.subr.mxu0 0.0
      %773 = vmatpush1.msra.mxu0 %v749
      %774 = vmatprep.subr.mxu0 0.0
      %775 = vmatpush1.msra.mxu0 %v751
      %776 = vmatprep.subr.mxu0 0.0
      %777 = vmatpush1.msra.mxu0 %v753
      %778 = vmatprep.subr.mxu0 0.0
      %779 = vmatpush1.msra.mxu0 %v755
      %780 = vmatprep.subr.mxu0 0.0
      %781 = vmatpush1.msra.mxu0 %v757
      %782 = vmatprep.subr.mxu0 0.0
      %783 = vmatpush1.msra.mxu0 %v759
      %784 = vmatprep.subr.mxu0 0.0
      %785 = vmatpush1.msra.mxu0 0.0
      %786 = vmatprep.subr.mxu0 0.0
      %787 = vmatpush1.msra.mxu0 0.0
      %788 = vmatprep.subr.mxu0 0.0
      %789 = vmatpush1.msra.mxu0 0.0
      %790 = vmatprep.subr.mxu0 0.0
      %791 = vmatpush1.msra.mxu0 0.0
      %792 = vmatprep.subr.mxu0 0.0
      %793 = vmatpush1.msra.mxu0 0.0
      %794 = vmatprep.subr.mxu0 0.0
      %795 = vmatpush1.msra.mxu0 0.0
      %796 = vmatprep.subr.mxu0 0.0
      %797 = vmatpush1.msra.mxu0 0.0
      %798 = vmatprep.subr.mxu0 0.0
      %799 = vmatpush1.msra.mxu0 0.0
      %800 = vmatprep.subr.mxu0 0.0
      %801 = vmatpush1.msra.mxu0 0.0
      %802 = vmatprep.subr.mxu0 0.0
      %803 = vmatpush1.msra.mxu0 0.0
      %804 = vmatprep.subr.mxu0 0.0
      %805 = vmatpush1.msra.mxu0 0.0
      %806 = vmatprep.subr.mxu0 0.0
      %807 = vmatpush1.msra.mxu0 0.0
      %808 = vmatprep.subr.mxu0 0.0
      %809 = vmatpush1.msra.mxu0 0.0
      %810 = vmatprep.subr.mxu0 0.0
      %811 = vmatpush1.msra.mxu0 0.0
      %812 = vmatprep.subr.mxu0 0.0
      %813 = vmatpush1.msra.mxu0 0.0
      %814 = vmatprep.subr.mxu0 0.0
      %815 = vmatpush1.msra.mxu0 0.0
      %816 = vmatprep.subr.mxu0 0.0
      %817 = vmatpush1.msra.mxu0 0.0
      %818 = vmatprep.subr.mxu0 0.0
      %819 = vmatpush1.msra.mxu0 0.0
      %820 = vmatprep.subr.mxu0 0.0
      %821 = vmatpush1.msra.mxu0 0.0
      %822 = vmatprep.subr.mxu0 0.0
      %823 = vmatpush1.msra.mxu0 0.0
      %824 = vmatprep.subr.mxu0 0.0
      %825 = vmatpush1.msra.mxu0 0.0
      %826 = vmatprep.subr.mxu0 0.0
      %827 = vmatpush1.msra.mxu0 0.0
      %828 = vmatprep.subr.mxu0 0.0
      %829 = vmatpush1.msra.mxu0 0.0
      %830 = vmatprep.subr.mxu0 0.0
      %831 = vmatpush1.msra.mxu0 0.0
      %832 = vmatprep.mubr.f32.mxu0 0.0
      %833 = vmatmul.mubr.f32.gmra.mrb[0].mxu0 %v261
      %v834 = vpop.f32.mrb[0].mxu0
      %v835 = vadd.f32 0.0, %v834
      %v836 = vpop.f32.mrb[0].mxu0
      %837 = vmatprep.mubr.f32.mxu0 0.0
      %838 = vmatmul.mubr.f32.gmra.mrb[0].mxu0 %v264
      %v839 = vpop.f32.mrb[0].mxu0
      %v840 = vadd.f32 0.0, %v839
      %v841 = vpop.f32.mrb[0].mxu0
      %842 = vmatprep.mubr.f32.mxu0 0.0
      %843 = vmatmul.mubr.f32.gmra.mrb[0].mxu0 %v267
      %v844 = vpop.f32.mrb[0].mxu0
      %v845 = vadd.f32 0.0, %v844
      %v846 = vpop.f32.mrb[0].mxu0
      %847 = vmatprep.mubr.f32.mxu0 0.0
      %848 = vmatmul.mubr.f32.gmra.mrb[0].mxu0 %v270
      %v849 = vpop.f32.mrb[0].mxu0
      %v850 = vadd.f32 0.0, %v849
      %v851 = vpop.f32.mrb[0].mxu0
      %852 = vdwg.mxu0
      %853 = vmatprep.subr.mxu0 0.0
      %854 = vmatpush1.msra.mxu0 %v728
      %855 = vmatprep.subr.mxu0 0.0
      %856 = vmatpush1.msra.mxu0 %v729
      %857 = vmatprep.subr.mxu0 0.0
      %858 = vmatpush1.msra.mxu0 %v730
      %859 = vmatprep.subr.mxu0 0.0
      %860 = vmatpush1.msra.mxu0 %v731
      %861 = vmatprep.subr.mxu0 0.0
      %862 = vmatpush1.msra.mxu0 %v732
      %863 = vmatprep.subr.mxu0 0.0
      %864 = vmatpush1.msra.mxu0 %v733
      %865 = vmatprep.subr.mxu0 0.0
      %866 = vmatpush1.msra.mxu0 %v734
      %867 = vmatprep.subr.mxu0 0.0
      %868 = vmatpush1.msra.mxu0 %v735
      %869 = vmatprep.subr.mxu0 0.0
      %870 = vmatpush1.msra.mxu0 0.0
      %871 = vmatprep.subr.mxu0 0.0
      %872 = vmatpush1.msra.mxu0 0.0
      %873 = vmatprep.subr.mxu0 0.0
      %874 = vmatpush1.msra.mxu0 0.0
      %875 = vmatprep.subr.mxu0 0.0
      %876 = vmatpush1.msra.mxu0 0.0
      %877 = vmatprep.subr.mxu0 0.0
      %878 = vmatpush1.msra.mxu0 0.0
      %879 = vmatprep.subr.mxu0 0.0
      %880 = vmatpush1.msra.mxu0 0.0
      %881 = vmatprep.subr.mxu0 0.0
      %882 = vmatpush1.msra.mxu0 0.0
      %883 = vmatprep.subr.mxu0 0.0
      %884 = vmatpush1.msra.mxu0 0.0
      %885 = vmatprep.subr.mxu0 0.0
      %886 = vmatpush1.msra.mxu0 0.0
      %887 = vmatprep.subr.mxu0 0.0
      %888 = vmatpush1.msra.mxu0 0.0
      %889 = vmatprep.subr.mxu0 0.0
      %890 = vmatpush1.msra.mxu0 0.0
      %891 = vmatprep.subr.mxu0 0.0
      %892 = vmatpush1.msra.mxu0 0.0
      %893 = vmatprep.subr.mxu0 0.0
      %894 = vmatpush1.msra.mxu0 0.0
      %895 = vmatprep.subr.mxu0 0.0
      %896 = vmatpush1.msra.mxu0 0.0
      %897 = vmatprep.subr.mxu0 0.0
      %898 = vmatpush1.msra.mxu0 0.0
      %899 = vmatprep.subr.mxu0 0.0
      %900 = vmatpush1.msra.mxu0 0.0
      %901 = vmatprep.subr.mxu0 0.0
      %902 = vmatpush1.msra.mxu0 0.0
      %903 = vmatprep.subr.mxu0 0.0
      %904 = vmatpush1.msra.mxu0 0.0
      %905 = vmatprep.subr.mxu0 0.0
      %906 = vmatpush1.msra.mxu0 0.0
      %907 = vmatprep.subr.mxu0 0.0
      %908 = vmatpush1.msra.mxu0 0.0
      %909 = vmatprep.subr.mxu0 0.0
      %910 = vmatpush1.msra.mxu0 0.0
      %911 = vmatprep.subr.mxu0 0.0
      %912 = vmatpush1.msra.mxu0 0.0
      %913 = vmatprep.subr.mxu0 0.0
      %914 = vmatpush1.msra.mxu0 0.0
      %915 = vmatprep.subr.mxu0 0.0
      %916 = vmatpush1.msra.mxu0 0.0
      %917 = vmatprep.mubr.f32.mxu0 0.0
      %918 = vmatmul.mubr.f32.gmra.mrb[0].mxu0 %v358
      %v919 = vpop.f32.mrb[0].mxu0
      %v920 = vadd.f32 %v835, %v919
      %v921 = vpop.f32.mrb[0].mxu0
      %922 = vmatprep.mubr.f32.mxu0 0.0
      %923 = vmatmul.mubr.f32.gmra.mrb[0].mxu0 %v361
      %v924 = vpop.f32.mrb[0].mxu0
      %v925 = vadd.f32 %v840, %v924
      %v926 = vpop.f32.mrb[0].mxu0
      %927 = vmatprep.mubr.f32.mxu0 0.0
      %928 = vmatmul.mubr.f32.gmra.mrb[0].mxu0 %v364
      %v929 = vpop.f32.mrb[0].mxu0
      %v930 = vadd.f32 %v845, %v929
      %v931 = vpop.f32.mrb[0].mxu0
      %932 = vmatprep.mubr.f32.mxu0 0.0
      %933 = vmatmul.mubr.f32.gmra.mrb[0].mxu0 %v367
      %v934 = vpop.f32.mrb[0].mxu0
      %v935 = vadd.f32 %v850, %v934
      %v936 = vpop.f32.mrb[0].mxu0
      %937 = vdwg.mxu0
      %s938 = sadd.s32 %s196, 2
      %s939 = smul.u32 %s938, 64
      %s940 = scalar_lea.vmem %s184, %s939
      %v941 = vld [vmem:[%s940] sm:$0xff]
      %v942 = vld [vmem:[%s940 + $0x8] sm:$0xff]
      %v943 = vld [vmem:[%s940 + $0x10] sm:$0xff]
      %v944 = vld [vmem:[%s940 + $0x18] sm:$0xff]
      %v945 = vld [vmem:[%s940 + $0x20] sm:$0xff]
      %v946 = vld [vmem:[%s940 + $0x28] sm:$0xff]
      %v947 = vld [vmem:[%s940 + $0x30] sm:$0xff]
      %v948 = vld [vmem:[%s940 + $0x38] sm:$0xff]
      %949 = vmatprep.subr.mxu0 0.0
      %950 = vmatpush1.msra.mxu0 %v941
      %951 = vmatprep.subr.mxu0 0.0
      %952 = vmatpush1.msra.mxu0 %v942
      %953 = vmatprep.subr.mxu0 0.0
      %954 = vmatpush1.msra.mxu0 %v943
      %955 = vmatprep.subr.mxu0 0.0
      %956 = vmatpush1.msra.mxu0 %v944
      %957 = vmatprep.subr.mxu0 0.0
      %958 = vmatpush1.msra.mxu0 %v945
      %959 = vmatprep.subr.mxu0 0.0
      %960 = vmatpush1.msra.mxu0 %v946
      %961 = vmatprep.subr.mxu0 0.0
      %962 = vmatpush1.msra.mxu0 %v947
      %963 = vmatprep.subr.mxu0 0.0
      %964 = vmatpush1.msra.mxu0 %v948
      %965 = vmatprep.subr.mxu0 0.0
      %966 = vmatpush1.msra.mxu0 0.0
      %967 = vmatprep.subr.mxu0 0.0
      %968 = vmatpush1.msra.mxu0 0.0
      %969 = vmatprep.subr.mxu0 0.0
      %970 = vmatpush1.msra.mxu0 0.0
      %971 = vmatprep.subr.mxu0 0.0
      %972 = vmatpush1.msra.mxu0 0.0
      %973 = vmatprep.subr.mxu0 0.0
      %974 = vmatpush1.msra.mxu0 0.0
      %975 = vmatprep.subr.mxu0 0.0
      %976 = vmatpush1.msra.mxu0 0.0
      %977 = vmatprep.subr.mxu0 0.0
      %978 = vmatpush1.msra.mxu0 0.0
      %979 = vmatprep.subr.mxu0 0.0
      %980 = vmatpush1.msra.mxu0 0.0
      %981 = vmatprep.subr.mxu0 0.0
      %982 = vmatpush1.msra.mxu0 0.0
      %983 = vmatprep.subr.mxu0 0.0
      %984 = vmatpush1.msra.mxu0 0.0
      %985 = vmatprep.subr.mxu0 0.0
      %986 = vmatpush1.msra.mxu0 0.0
      %987 = vmatprep.subr.mxu0 0.0
      %988 = vmatpush1.msra.mxu0 0.0
      %989 = vmatprep.subr.mxu0 0.0
      %990 = vmatpush1.msra.mxu0 0.0
      %991 = vmatprep.subr.mxu0 0.0
      %992 = vmatpush1.msra.mxu0 0.0
      %993 = vmatprep.subr.mxu0 0.0
      %994 = vmatpush1.msra.mxu0 0.0
      %995 = vmatprep.subr.mxu0 0.0
      %996 = vmatpush1.msra.mxu0 0.0
      %997 = vmatprep.subr.mxu0 0.0
      %998 = vmatpush1.msra.mxu0 0.0
      %999 = vmatprep.subr.mxu0 0.0
      %1000 = vmatpush1.msra.mxu0 0.0
      %1001 = vmatprep.subr.mxu0 0.0
      %1002 = vmatpush1.msra.mxu0 0.0
      %1003 = vmatprep.subr.mxu0 0.0
      %1004 = vmatpush1.msra.mxu0 0.0
      %1005 = vmatprep.subr.mxu0 0.0
      %1006 = vmatpush1.msra.mxu0 0.0
      %1007 = vmatprep.subr.mxu0 0.0
      %1008 = vmatpush1.msra.mxu0 0.0
      %1009 = vmatprep.subr.mxu0 0.0
      %1010 = vmatpush1.msra.mxu0 0.0
      %1011 = vmatprep.subr.mxu0 0.0
      %1012 = vmatpush1.msra.mxu0 0.0
      %1013 = vmatprep.mubr.f32.mxu0 0.0
      %1014 = vmatmul.mubr.f32.gmra.mrb[0].mxu0 %v466
      %v1015 = vpop.f32.mrb[0].mxu0
      %v1016 = vadd.f32 0.0, %v1015
      %v1017 = vpop.f32.mrb[0].mxu0
      %1018 = vmatprep.mubr.f32.mxu0 0.0
      %1019 = vmatmul.mubr.f32.gmra.mrb[0].mxu0 %v469
      %v1020 = vpop.f32.mrb[0].mxu0
      %v1021 = vadd.f32 0.0, %v1020
      %v1022 = vpop.f32.mrb[0].mxu0
      %1023 = vmatprep.mubr.f32.mxu0 0.0
      %1024 = vmatmul.mubr.f32.gmra.mrb[0].mxu0 %v472
      %v1025 = vpop.f32.mrb[0].mxu0
      %v1026 = vadd.f32 0.0, %v1025
      %v1027 = vpop.f32.mrb[0].mxu0
      %1028 = vmatprep.mubr.f32.mxu0 0.0
      %1029 = vmatmul.mubr.f32.gmra.mrb[0].mxu0 %v475
      %v1030 = vpop.f32.mrb[0].mxu0
      %v1031 = vadd.f32 0.0, %v1030
      %v1032 = vpop.f32.mrb[0].mxu0
      %1033 = vdwg.mxu0
      %v1034 = vadd.f32 %v920, %v1016
      %v1035 = vadd.f32 %v925, %v1021
      %v1036 = vadd.f32 %v930, %v1026
      %v1037 = vadd.f32 %v935, %v1031
      %1046 = vrot.lane.b32.xlu0 %v941, 127
      %v1047 = vpop.permute.xlu0 %1046
      %1048 = vrot.lane.b32.xlu0 %v942, 127
      %v1049 = vpop.permute.xlu0 %1048
      %1050 = vrot.lane.b32.xlu0 %v943, 127
      %v1051 = vpop.permute.xlu0 %1050
      %1052 = vrot.lane.b32.xlu0 %v944, 127
      %v1053 = vpop.permute.xlu0 %1052
      %1054 = vrot.lane.b32.xlu0 %v945, 127
      %v1055 = vpop.permute.xlu0 %1054
      %1056 = vrot.lane.b32.xlu0 %v946, 127
      %v1057 = vpop.permute.xlu0 %1056
      %1058 = vrot.lane.b32.xlu0 %v947, 127
      %v1059 = vpop.permute.xlu0 %1058
      %1060 = vrot.lane.b32.xlu0 %v948, 127
      %v1061 = vpop.permute.xlu0 %1060
      %1070 = vmatprep.subr.mxu0 0.0
      %1071 = vmatpush1.msra.mxu0 %v1047
      %1072 = vmatprep.subr.mxu0 0.0
      %1073 = vmatpush1.msra.mxu0 %v1049
      %1074 = vmatprep.subr.mxu0 0.0
      %1075 = vmatpush1.msra.mxu0 %v1051
      %1076 = vmatprep.subr.mxu0 0.0
      %1077 = vmatpush1.msra.mxu0 %v1053
      %1078 = vmatprep.subr.mxu0 0.0
      %1079 = vmatpush1.msra.mxu0 %v1055
      %1080 = vmatprep.subr.mxu0 0.0
      %1081 = vmatpush1.msra.mxu0 %v1057
      %1082 = vmatprep.subr.mxu0 0.0
      %1083 = vmatpush1.msra.mxu0 %v1059
      %1084 = vmatprep.subr.mxu0 0.0
      %1085 = vmatpush1.msra.mxu0 %v1061
      %1086 = vmatprep.subr.mxu0 0.0
      %1087 = vmatpush1.msra.mxu0 0.0
      %1088 = vmatprep.subr.mxu0 0.0
      %1089 = vmatpush1.msra.mxu0 0.0
      %1090 = vmatprep.subr.mxu0 0.0
      %1091 = vmatpush1.msra.mxu0 0.0
      %1092 = vmatprep.subr.mxu0 0.0
      %1093 = vmatpush1.msra.mxu0 0.0
      %1094 = vmatprep.subr.mxu0 0.0
      %1095 = vmatpush1.msra.mxu0 0.0
      %1096 = vmatprep.subr.mxu0 0.0
      %1097 = vmatpush1.msra.mxu0 0.0
      %1098 = vmatprep.subr.mxu0 0.0
      %1099 = vmatpush1.msra.mxu0 0.0
      %1100 = vmatprep.subr.mxu0 0.0
      %1101 = vmatpush1.msra.mxu0 0.0
      %1102 = vmatprep.subr.mxu0 0.0
      %1103 = vmatpush1.msra.mxu0 0.0
      %1104 = vmatprep.subr.mxu0 0.0
      %1105 = vmatpush1.msra.mxu0 0.0
      %1106 = vmatprep.subr.mxu0 0.0
      %1107 = vmatpush1.msra.mxu0 0.0
      %1108 = vmatprep.subr.mxu0 0.0
      %1109 = vmatpush1.msra.mxu0 0.0
      %1110 = vmatprep.subr.mxu0 0.0
      %1111 = vmatpush1.msra.mxu0 0.0
      %1112 = vmatprep.subr.mxu0 0.0
      %1113 = vmatpush1.msra.mxu0 0.0
      %1114 = vmatprep.subr.mxu0 0.0
      %1115 = vmatpush1.msra.mxu0 0.0
      %1116 = vmatprep.subr.mxu0 0.0
      %1117 = vmatpush1.msra.mxu0 0.0
      %1118 = vmatprep.subr.mxu0 0.0
      %1119 = vmatpush1.msra.mxu0 0.0
      %1120 = vmatprep.subr.mxu0 0.0
      %1121 = vmatpush1.msra.mxu0 0.0
      %1122 = vmatprep.subr.mxu0 0.0
      %1123 = vmatpush1.msra.mxu0 0.0
      %1124 = vmatprep.subr.mxu0 0.0
      %1125 = vmatpush1.msra.mxu0 0.0
      %1126 = vmatprep.subr.mxu0 0.0
      %1127 = vmatpush1.msra.mxu0 0.0
      %1128 = vmatprep.subr.mxu0 0.0
      %1129 = vmatpush1.msra.mxu0 0.0
      %1130 = vmatprep.subr.mxu0 0.0
      %1131 = vmatpush1.msra.mxu0 0.0
      %1132 = vmatprep.subr.mxu0 0.0
      %1133 = vmatpush1.msra.mxu0 0.0
      %1134 = vmatprep.mubr.f32.mxu0 0.0
      %1135 = vmatmul.mubr.f32.gmra.mrb[0].mxu0 %v599
      %v1136 = vpop.f32.mrb[0].mxu0
      %v1137 = vadd.f32 0.0, %v1136
      %v1138 = vpop.f32.mrb[0].mxu0
      %1139 = vmatprep.mubr.f32.mxu0 0.0
      %1140 = vmatmul.mubr.f32.gmra.mrb[0].mxu0 %v602
      %v1141 = vpop.f32.mrb[0].mxu0
      %v1142 = vadd.f32 0.0, %v1141
      %v1143 = vpop.f32.mrb[0].mxu0
      %1144 = vmatprep.mubr.f32.mxu0 0.0
      %1145 = vmatmul.mubr.f32.gmra.mrb[0].mxu0 %v605
      %v1146 = vpop.f32.mrb[0].mxu0
      %v1147 = vadd.f32 0.0, %v1146
      %v1148 = vpop.f32.mrb[0].mxu0
      %1149 = vmatprep.mubr.f32.mxu0 0.0
      %1150 = vmatmul.mubr.f32.gmra.mrb[0].mxu0 %v608
      %v1151 = vpop.f32.mrb[0].mxu0
      %v1152 = vadd.f32 0.0, %v1151
      %v1153 = vpop.f32.mrb[0].mxu0
      %1154 = vdwg.mxu0
      %v1155 = vadd.f32 %v1034, %v1137
      %v1156 = vadd.f32 %v1035, %v1142
      %v1157 = vadd.f32 %v1036, %v1147
      %v1158 = vadd.f32 %v1037, %v1152
      %v1159 = vadd.f32 %v1155, %v702
      %v1160 = vadd.f32 %v1156, %v707
      %v1161 = vadd.f32 %v1157, %v712
      %v1162 = vadd.f32 %v1158, %v717
      %s1163 = scalar_lea.vmem %s194, 32
      %1164 = vst.msk [vmem:[%s1163] sm:$0xff] %vm723, %v1159
      %1165 = vst.msk [vmem:[%s1163 + $0x8] sm:$0xff] %vm723, %v1160
      %1166 = vst.msk [vmem:[%s1163 + $0x10] sm:$0xff] %vm723, %v1161
      %1167 = vst.msk [vmem:[%s1163 + $0x18] sm:$0xff] %vm723, %v1162
      %v1168 = vld [vmem:[%s940] sm:$0xff]
      %v1169 = vld [vmem:[%s940 + $0x8] sm:$0xff]
      %v1170 = vld [vmem:[%s940 + $0x10] sm:$0xff]
      %v1171 = vld [vmem:[%s940 + $0x18] sm:$0xff]
      %v1172 = vld [vmem:[%s940 + $0x20] sm:$0xff]
      %v1173 = vld [vmem:[%s940 + $0x28] sm:$0xff]
      %v1174 = vld [vmem:[%s940 + $0x30] sm:$0xff]
      %v1175 = vld [vmem:[%s940 + $0x38] sm:$0xff]
      %1184 = vrot.lane.b32.xlu0 %v1168, 127
      %v1185 = vpop.permute.xlu0 %1184
      %1186 = vrot.lane.b32.xlu0 %v1169, 127
      %v1187 = vpop.permute.xlu0 %1186
      %1188 = vrot.lane.b32.xlu0 %v1170, 127
      %v1189 = vpop.permute.xlu0 %1188
      %1190 = vrot.lane.b32.xlu0 %v1171, 127
      %v1191 = vpop.permute.xlu0 %1190
      %1192 = vrot.lane.b32.xlu0 %v1172, 127
      %v1193 = vpop.permute.xlu0 %1192
      %1194 = vrot.lane.b32.xlu0 %v1173, 127
      %v1195 = vpop.permute.xlu0 %1194
      %1196 = vrot.lane.b32.xlu0 %v1174, 127
      %v1197 = vpop.permute.xlu0 %1196
      %1198 = vrot.lane.b32.xlu0 %v1175, 127
      %v1199 = vpop.permute.xlu0 %1198
      %1208 = vmatprep.subr.mxu0 0.0
      %1209 = vmatpush1.msra.mxu0 %v1185
      %1210 = vmatprep.subr.mxu0 0.0
      %1211 = vmatpush1.msra.mxu0 %v1187
      %1212 = vmatprep.subr.mxu0 0.0
      %1213 = vmatpush1.msra.mxu0 %v1189
      %1214 = vmatprep.subr.mxu0 0.0
      %1215 = vmatpush1.msra.mxu0 %v1191
      %1216 = vmatprep.subr.mxu0 0.0
      %1217 = vmatpush1.msra.mxu0 %v1193
      %1218 = vmatprep.subr.mxu0 0.0
      %1219 = vmatpush1.msra.mxu0 %v1195
      %1220 = vmatprep.subr.mxu0 0.0
      %1221 = vmatpush1.msra.mxu0 %v1197
      %1222 = vmatprep.subr.mxu0 0.0
      %1223 = vmatpush1.msra.mxu0 %v1199
      %1224 = vmatprep.subr.mxu0 0.0
      %1225 = vmatpush1.msra.mxu0 0.0
      %1226 = vmatprep.subr.mxu0 0.0
      %1227 = vmatpush1.msra.mxu0 0.0
      %1228 = vmatprep.subr.mxu0 0.0
      %1229 = vmatpush1.msra.mxu0 0.0
      %1230 = vmatprep.subr.mxu0 0.0
      %1231 = vmatpush1.msra.mxu0 0.0
      %1232 = vmatprep.subr.mxu0 0.0
      %1233 = vmatpush1.msra.mxu0 0.0
      %1234 = vmatprep.subr.mxu0 0.0
      %1235 = vmatpush1.msra.mxu0 0.0
      %1236 = vmatprep.subr.mxu0 0.0
      %1237 = vmatpush1.msra.mxu0 0.0
      %1238 = vmatprep.subr.mxu0 0.0
      %1239 = vmatpush1.msra.mxu0 0.0
      %1240 = vmatprep.subr.mxu0 0.0
      %1241 = vmatpush1.msra.mxu0 0.0
      %1242 = vmatprep.subr.mxu0 0.0
      %1243 = vmatpush1.msra.mxu0 0.0
      %1244 = vmatprep.subr.mxu0 0.0
      %1245 = vmatpush1.msra.mxu0 0.0
      %1246 = vmatprep.subr.mxu0 0.0
      %1247 = vmatpush1.msra.mxu0 0.0
      %1248 = vmatprep.subr.mxu0 0.0
      %1249 = vmatpush1.msra.mxu0 0.0
      %1250 = vmatprep.subr.mxu0 0.0
      %1251 = vmatpush1.msra.mxu0 0.0
      %1252 = vmatprep.subr.mxu0 0.0
      %1253 = vmatpush1.msra.mxu0 0.0
      %1254 = vmatprep.subr.mxu0 0.0
      %1255 = vmatpush1.msra.mxu0 0.0
      %1256 = vmatprep.subr.mxu0 0.0
      %1257 = vmatpush1.msra.mxu0 0.0
      %1258 = vmatprep.subr.mxu0 0.0
      %1259 = vmatpush1.msra.mxu0 0.0
      %1260 = vmatprep.subr.mxu0 0.0
      %1261 = vmatpush1.msra.mxu0 0.0
      %1262 = vmatprep.subr.mxu0 0.0
      %1263 = vmatpush1.msra.mxu0 0.0
      %1264 = vmatprep.subr.mxu0 0.0
      %1265 = vmatpush1.msra.mxu0 0.0
      %1266 = vmatprep.subr.mxu0 0.0
      %1267 = vmatpush1.msra.mxu0 0.0
      %1268 = vmatprep.subr.mxu0 0.0
      %1269 = vmatpush1.msra.mxu0 0.0
      %1270 = vmatprep.subr.mxu0 0.0
      %1271 = vmatpush1.msra.mxu0 0.0
      %1272 = vmatprep.mubr.f32.mxu0 0.0
      %1273 = vmatmul.mubr.f32.gmra.mrb[0].mxu0 %v261
      %v1274 = vpop.f32.mrb[0].mxu0
      %v1275 = vadd.f32 0.0, %v1274
      %v1276 = vpop.f32.mrb[0].mxu0
      %1277 = vmatprep.mubr.f32.mxu0 0.0
      %1278 = vmatmul.mubr.f32.gmra.mrb[0].mxu0 %v264
      %v1279 = vpop.f32.mrb[0].mxu0
      %v1280 = vadd.f32 0.0, %v1279
      %v1281 = vpop.f32.mrb[0].mxu0
      %1282 = vmatprep.mubr.f32.mxu0 0.0
      %1283 = vmatmul.mubr.f32.gmra.mrb[0].mxu0 %v267
      %v1284 = vpop.f32.mrb[0].mxu0
      %v1285 = vadd.f32 0.0, %v1284
      %v1286 = vpop.f32.mrb[0].mxu0
      %1287 = vmatprep.mubr.f32.mxu0 0.0
      %1288 = vmatmul.mubr.f32.gmra.mrb[0].mxu0 %v270
      %v1289 = vpop.f32.mrb[0].mxu0
      %v1290 = vadd.f32 0.0, %v1289
      %v1291 = vpop.f32.mrb[0].mxu0
      %1292 = vdwg.mxu0
      %1293 = vmatprep.subr.mxu0 0.0
      %1294 = vmatpush1.msra.mxu0 %v1168
      %1295 = vmatprep.subr.mxu0 0.0
      %1296 = vmatpush1.msra.mxu0 %v1169
      %1297 = vmatprep.subr.mxu0 0.0
      %1298 = vmatpush1.msra.mxu0 %v1170
      %1299 = vmatprep.subr.mxu0 0.0
      %1300 = vmatpush1.msra.mxu0 %v1171
      %1301 = vmatprep.subr.mxu0 0.0
      %1302 = vmatpush1.msra.mxu0 %v1172
      %1303 = vmatprep.subr.mxu0 0.0
      %1304 = vmatpush1.msra.mxu0 %v1173
      %1305 = vmatprep.subr.mxu0 0.0
      %1306 = vmatpush1.msra.mxu0 %v1174
      %1307 = vmatprep.subr.mxu0 0.0
      %1308 = vmatpush1.msra.mxu0 %v1175
      %1309 = vmatprep.subr.mxu0 0.0
      %1310 = vmatpush1.msra.mxu0 0.0
      %1311 = vmatprep.subr.mxu0 0.0
      %1312 = vmatpush1.msra.mxu0 0.0
      %1313 = vmatprep.subr.mxu0 0.0
      %1314 = vmatpush1.msra.mxu0 0.0
      %1315 = vmatprep.subr.mxu0 0.0
      %1316 = vmatpush1.msra.mxu0 0.0
      %1317 = vmatprep.subr.mxu0 0.0
      %1318 = vmatpush1.msra.mxu0 0.0
      %1319 = vmatprep.subr.mxu0 0.0
      %1320 = vmatpush1.msra.mxu0 0.0
      %1321 = vmatprep.subr.mxu0 0.0
      %1322 = vmatpush1.msra.mxu0 0.0
      %1323 = vmatprep.subr.mxu0 0.0
      %1324 = vmatpush1.msra.mxu0 0.0
      %1325 = vmatprep.subr.mxu0 0.0
      %1326 = vmatpush1.msra.mxu0 0.0
      %1327 = vmatprep.subr.mxu0 0.0
      %1328 = vmatpush1.msra.mxu0 0.0
      %1329 = vmatprep.subr.mxu0 0.0
      %1330 = vmatpush1.msra.mxu0 0.0
      %1331 = vmatprep.subr.mxu0 0.0
      %1332 = vmatpush1.msra.mxu0 0.0
      %1333 = vmatprep.subr.mxu0 0.0
      %1334 = vmatpush1.msra.mxu0 0.0
      %1335 = vmatprep.subr.mxu0 0.0
      %1336 = vmatpush1.msra.mxu0 0.0
      %1337 = vmatprep.subr.mxu0 0.0
      %1338 = vmatpush1.msra.mxu0 0.0
      %1339 = vmatprep.subr.mxu0 0.0
      %1340 = vmatpush1.msra.mxu0 0.0
      %1341 = vmatprep.subr.mxu0 0.0
      %1342 = vmatpush1.msra.mxu0 0.0
      %1343 = vmatprep.subr.mxu0 0.0
      %1344 = vmatpush1.msra.mxu0 0.0
      %1345 = vmatprep.subr.mxu0 0.0
      %1346 = vmatpush1.msra.mxu0 0.0
      %1347 = vmatprep.subr.mxu0 0.0
      %1348 = vmatpush1.msra.mxu0 0.0
      %1349 = vmatprep.subr.mxu0 0.0
      %1350 = vmatpush1.msra.mxu0 0.0
      %1351 = vmatprep.subr.mxu0 0.0
      %1352 = vmatpush1.msra.mxu0 0.0
      %1353 = vmatprep.subr.mxu0 0.0
      %1354 = vmatpush1.msra.mxu0 0.0
      %1355 = vmatprep.subr.mxu0 0.0
      %1356 = vmatpush1.msra.mxu0 0.0
      %1357 = vmatprep.mubr.f32.mxu0 0.0
      %1358 = vmatmul.mubr.f32.gmra.mrb[0].mxu0 %v358
      %v1359 = vpop.f32.mrb[0].mxu0
      %v1360 = vadd.f32 %v1275, %v1359
      %v1361 = vpop.f32.mrb[0].mxu0
      %1362 = vmatprep.mubr.f32.mxu0 0.0
      %1363 = vmatmul.mubr.f32.gmra.mrb[0].mxu0 %v361
      %v1364 = vpop.f32.mrb[0].mxu0
      %v1365 = vadd.f32 %v1280, %v1364
      %v1366 = vpop.f32.mrb[0].mxu0
      %1367 = vmatprep.mubr.f32.mxu0 0.0
      %1368 = vmatmul.mubr.f32.gmra.mrb[0].mxu0 %v364
      %v1369 = vpop.f32.mrb[0].mxu0
      %v1370 = vadd.f32 %v1285, %v1369
      %v1371 = vpop.f32.mrb[0].mxu0
      %1372 = vmatprep.mubr.f32.mxu0 0.0
      %1373 = vmatmul.mubr.f32.gmra.mrb[0].mxu0 %v367
      %v1374 = vpop.f32.mrb[0].mxu0
      %v1375 = vadd.f32 %v1290, %v1374
      %v1376 = vpop.f32.mrb[0].mxu0
      %1377 = vdwg.mxu0
      %s1378 = sadd.s32 %s196, 3
      %s1379 = smul.u32 %s1378, 64
      %s1380 = scalar_lea.vmem %s184, %s1379
      %v1381 = vld [vmem:[%s1380] sm:$0xff]
      %v1382 = vld [vmem:[%s1380 + $0x8] sm:$0xff]
      %v1383 = vld [vmem:[%s1380 + $0x10] sm:$0xff]
      %v1384 = vld [vmem:[%s1380 + $0x18] sm:$0xff]
      %v1385 = vld [vmem:[%s1380 + $0x20] sm:$0xff]
      %v1386 = vld [vmem:[%s1380 + $0x28] sm:$0xff]
      %v1387 = vld [vmem:[%s1380 + $0x30] sm:$0xff]
      %v1388 = vld [vmem:[%s1380 + $0x38] sm:$0xff]
      %1389 = vmatprep.subr.mxu0 0.0
      %1390 = vmatpush1.msra.mxu0 %v1381
      %1391 = vmatprep.subr.mxu0 0.0
      %1392 = vmatpush1.msra.mxu0 %v1382
      %1393 = vmatprep.subr.mxu0 0.0
      %1394 = vmatpush1.msra.mxu0 %v1383
      %1395 = vmatprep.subr.mxu0 0.0
      %1396 = vmatpush1.msra.mxu0 %v1384
      %1397 = vmatprep.subr.mxu0 0.0
      %1398 = vmatpush1.msra.mxu0 %v1385
      %1399 = vmatprep.subr.mxu0 0.0
      %1400 = vmatpush1.msra.mxu0 %v1386
      %1401 = vmatprep.subr.mxu0 0.0
      %1402 = vmatpush1.msra.mxu0 %v1387
      %1403 = vmatprep.subr.mxu0 0.0
      %1404 = vmatpush1.msra.mxu0 %v1388
      %1405 = vmatprep.subr.mxu0 0.0
      %1406 = vmatpush1.msra.mxu0 0.0
      %1407 = vmatprep.subr.mxu0 0.0
      %1408 = vmatpush1.msra.mxu0 0.0
      %1409 = vmatprep.subr.mxu0 0.0
      %1410 = vmatpush1.msra.mxu0 0.0
      %1411 = vmatprep.subr.mxu0 0.0
      %1412 = vmatpush1.msra.mxu0 0.0
      %1413 = vmatprep.subr.mxu0 0.0
      %1414 = vmatpush1.msra.mxu0 0.0
      %1415 = vmatprep.subr.mxu0 0.0
      %1416 = vmatpush1.msra.mxu0 0.0
      %1417 = vmatprep.subr.mxu0 0.0
      %1418 = vmatpush1.msra.mxu0 0.0
      %1419 = vmatprep.subr.mxu0 0.0
      %1420 = vmatpush1.msra.mxu0 0.0
      %1421 = vmatprep.subr.mxu0 0.0
      %1422 = vmatpush1.msra.mxu0 0.0
      %1423 = vmatprep.subr.mxu0 0.0
      %1424 = vmatpush1.msra.mxu0 0.0
      %1425 = vmatprep.subr.mxu0 0.0
      %1426 = vmatpush1.msra.mxu0 0.0
      %1427 = vmatprep.subr.mxu0 0.0
      %1428 = vmatpush1.msra.mxu0 0.0
      %1429 = vmatprep.subr.mxu0 0.0
      %1430 = vmatpush1.msra.mxu0 0.0
      %1431 = vmatprep.subr.mxu0 0.0
      %1432 = vmatpush1.msra.mxu0 0.0
      %1433 = vmatprep.subr.mxu0 0.0
      %1434 = vmatpush1.msra.mxu0 0.0
      %1435 = vmatprep.subr.mxu0 0.0
      %1436 = vmatpush1.msra.mxu0 0.0
      %1437 = vmatprep.subr.mxu0 0.0
      %1438 = vmatpush1.msra.mxu0 0.0
      %1439 = vmatprep.subr.mxu0 0.0
      %1440 = vmatpush1.msra.mxu0 0.0
      %1441 = vmatprep.subr.mxu0 0.0
      %1442 = vmatpush1.msra.mxu0 0.0
      %1443 = vmatprep.subr.mxu0 0.0
      %1444 = vmatpush1.msra.mxu0 0.0
      %1445 = vmatprep.subr.mxu0 0.0
      %1446 = vmatpush1.msra.mxu0 0.0
      %1447 = vmatprep.subr.mxu0 0.0
      %1448 = vmatpush1.msra.mxu0 0.0
      %1449 = vmatprep.subr.mxu0 0.0
      %1450 = vmatpush1.msra.mxu0 0.0
      %1451 = vmatprep.subr.mxu0 0.0
      %1452 = vmatpush1.msra.mxu0 0.0
      %1453 = vmatprep.mubr.f32.mxu0 0.0
      %1454 = vmatmul.mubr.f32.gmra.mrb[0].mxu0 %v466
      %v1455 = vpop.f32.mrb[0].mxu0
      %v1456 = vadd.f32 0.0, %v1455
      %v1457 = vpop.f32.mrb[0].mxu0
      %1458 = vmatprep.mubr.f32.mxu0 0.0
      %1459 = vmatmul.mubr.f32.gmra.mrb[0].mxu0 %v469
      %v1460 = vpop.f32.mrb[0].mxu0
      %v1461 = vadd.f32 0.0, %v1460
      %v1462 = vpop.f32.mrb[0].mxu0
      %1463 = vmatprep.mubr.f32.mxu0 0.0
      %1464 = vmatmul.mubr.f32.gmra.mrb[0].mxu0 %v472
      %v1465 = vpop.f32.mrb[0].mxu0
      %v1466 = vadd.f32 0.0, %v1465
      %v1467 = vpop.f32.mrb[0].mxu0
      %1468 = vmatprep.mubr.f32.mxu0 0.0
      %1469 = vmatmul.mubr.f32.gmra.mrb[0].mxu0 %v475
      %v1470 = vpop.f32.mrb[0].mxu0
      %v1471 = vadd.f32 0.0, %v1470
      %v1472 = vpop.f32.mrb[0].mxu0
      %1473 = vdwg.mxu0
      %v1474 = vadd.f32 %v1360, %v1456
      %v1475 = vadd.f32 %v1365, %v1461
      %v1476 = vadd.f32 %v1370, %v1466
      %v1477 = vadd.f32 %v1375, %v1471
      %1486 = vrot.lane.b32.xlu0 %v1381, 127
      %v1487 = vpop.permute.xlu0 %1486
      %1488 = vrot.lane.b32.xlu0 %v1382, 127
      %v1489 = vpop.permute.xlu0 %1488
      %1490 = vrot.lane.b32.xlu0 %v1383, 127
      %v1491 = vpop.permute.xlu0 %1490
      %1492 = vrot.lane.b32.xlu0 %v1384, 127
      %v1493 = vpop.permute.xlu0 %1492
      %1494 = vrot.lane.b32.xlu0 %v1385, 127
      %v1495 = vpop.permute.xlu0 %1494
      %1496 = vrot.lane.b32.xlu0 %v1386, 127
      %v1497 = vpop.permute.xlu0 %1496
      %1498 = vrot.lane.b32.xlu0 %v1387, 127
      %v1499 = vpop.permute.xlu0 %1498
      %1500 = vrot.lane.b32.xlu0 %v1388, 127
      %v1501 = vpop.permute.xlu0 %1500
      %1510 = vmatprep.subr.mxu0 0.0
      %1511 = vmatpush1.msra.mxu0 %v1487
      %1512 = vmatprep.subr.mxu0 0.0
      %1513 = vmatpush1.msra.mxu0 %v1489
      %1514 = vmatprep.subr.mxu0 0.0
      %1515 = vmatpush1.msra.mxu0 %v1491
      %1516 = vmatprep.subr.mxu0 0.0
      %1517 = vmatpush1.msra.mxu0 %v1493
      %1518 = vmatprep.subr.mxu0 0.0
      %1519 = vmatpush1.msra.mxu0 %v1495
      %1520 = vmatprep.subr.mxu0 0.0
      %1521 = vmatpush1.msra.mxu0 %v1497
      %1522 = vmatprep.subr.mxu0 0.0
      %1523 = vmatpush1.msra.mxu0 %v1499
      %1524 = vmatprep.subr.mxu0 0.0
      %1525 = vmatpush1.msra.mxu0 %v1501
      %1526 = vmatprep.subr.mxu0 0.0
      %1527 = vmatpush1.msra.mxu0 0.0
      %1528 = vmatprep.subr.mxu0 0.0
      %1529 = vmatpush1.msra.mxu0 0.0
      %1530 = vmatprep.subr.mxu0 0.0
      %1531 = vmatpush1.msra.mxu0 0.0
      %1532 = vmatprep.subr.mxu0 0.0
      %1533 = vmatpush1.msra.mxu0 0.0
      %1534 = vmatprep.subr.mxu0 0.0
      %1535 = vmatpush1.msra.mxu0 0.0
      %1536 = vmatprep.subr.mxu0 0.0
      %1537 = vmatpush1.msra.mxu0 0.0
      %1538 = vmatprep.subr.mxu0 0.0
      %1539 = vmatpush1.msra.mxu0 0.0
      %1540 = vmatprep.subr.mxu0 0.0
      %1541 = vmatpush1.msra.mxu0 0.0
      %1542 = vmatprep.subr.mxu0 0.0
      %1543 = vmatpush1.msra.mxu0 0.0
      %1544 = vmatprep.subr.mxu0 0.0
      %1545 = vmatpush1.msra.mxu0 0.0
      %1546 = vmatprep.subr.mxu0 0.0
      %1547 = vmatpush1.msra.mxu0 0.0
      %1548 = vmatprep.subr.mxu0 0.0
      %1549 = vmatpush1.msra.mxu0 0.0
      %1550 = vmatprep.subr.mxu0 0.0
      %1551 = vmatpush1.msra.mxu0 0.0
      %1552 = vmatprep.subr.mxu0 0.0
      %1553 = vmatpush1.msra.mxu0 0.0
      %1554 = vmatprep.subr.mxu0 0.0
      %1555 = vmatpush1.msra.mxu0 0.0
      %1556 = vmatprep.subr.mxu0 0.0
      %1557 = vmatpush1.msra.mxu0 0.0
      %1558 = vmatprep.subr.mxu0 0.0
      %1559 = vmatpush1.msra.mxu0 0.0
      %1560 = vmatprep.subr.mxu0 0.0
      %1561 = vmatpush1.msra.mxu0 0.0
      %1562 = vmatprep.subr.mxu0 0.0
      %1563 = vmatpush1.msra.mxu0 0.0
      %1564 = vmatprep.subr.mxu0 0.0
      %1565 = vmatpush1.msra.mxu0 0.0
      %1566 = vmatprep.subr.mxu0 0.0
      %1567 = vmatpush1.msra.mxu0 0.0
      %1568 = vmatprep.subr.mxu0 0.0
      %1569 = vmatpush1.msra.mxu0 0.0
      %1570 = vmatprep.subr.mxu0 0.0
      %1571 = vmatpush1.msra.mxu0 0.0
      %1572 = vmatprep.subr.mxu0 0.0
      %1573 = vmatpush1.msra.mxu0 0.0
      %1574 = vmatprep.mubr.f32.mxu0 0.0
      %1575 = vmatmul.mubr.f32.gmra.mrb[0].mxu0 %v599
      %v1576 = vpop.f32.mrb[0].mxu0
      %v1577 = vadd.f32 0.0, %v1576
      %v1578 = vpop.f32.mrb[0].mxu0
      %1579 = vmatprep.mubr.f32.mxu0 0.0
      %1580 = vmatmul.mubr.f32.gmra.mrb[0].mxu0 %v602
      %v1581 = vpop.f32.mrb[0].mxu0
      %v1582 = vadd.f32 0.0, %v1581
      %v1583 = vpop.f32.mrb[0].mxu0
      %1584 = vmatprep.mubr.f32.mxu0 0.0
      %1585 = vmatmul.mubr.f32.gmra.mrb[0].mxu0 %v605
      %v1586 = vpop.f32.mrb[0].mxu0
      %v1587 = vadd.f32 0.0, %v1586
      %v1588 = vpop.f32.mrb[0].mxu0
      %1589 = vmatprep.mubr.f32.mxu0 0.0
      %1590 = vmatmul.mubr.f32.gmra.mrb[0].mxu0 %v608
      %v1591 = vpop.f32.mrb[0].mxu0
      %v1592 = vadd.f32 0.0, %v1591
      %v1593 = vpop.f32.mrb[0].mxu0
      %1594 = vdwg.mxu0
      %v1595 = vadd.f32 %v1474, %v1577
      %v1596 = vadd.f32 %v1475, %v1582
      %v1597 = vadd.f32 %v1476, %v1587
      %v1598 = vadd.f32 %v1477, %v1592
      %v1599 = vadd.f32 %v1595, %v702
      %v1600 = vadd.f32 %v1596, %v707
      %v1601 = vadd.f32 %v1597, %v712
      %v1602 = vadd.f32 %v1598, %v717
      %s1603 = scalar_lea.vmem %s194, 64
      %1604 = vst.msk [vmem:[%s1603] sm:$0xff] %vm723, %v1599
      %1605 = vst.msk [vmem:[%s1603 + $0x8] sm:$0xff] %vm723, %v1600
      %1606 = vst.msk [vmem:[%s1603 + $0x10] sm:$0xff] %vm723, %v1601
      %1607 = vst.msk [vmem:[%s1603 + $0x18] sm:$0xff] %vm723, %v1602
      %v1608 = vld [vmem:[%s1380] sm:$0xff]
      %v1609 = vld [vmem:[%s1380 + $0x8] sm:$0xff]
      %v1610 = vld [vmem:[%s1380 + $0x10] sm:$0xff]
      %v1611 = vld [vmem:[%s1380 + $0x18] sm:$0xff]
      %v1612 = vld [vmem:[%s1380 + $0x20] sm:$0xff]
      %v1613 = vld [vmem:[%s1380 + $0x28] sm:$0xff]
      %v1614 = vld [vmem:[%s1380 + $0x30] sm:$0xff]
      %v1615 = vld [vmem:[%s1380 + $0x38] sm:$0xff]
      %1624 = vrot.lane.b32.xlu0 %v1608, 127
      %v1625 = vpop.permute.xlu0 %1624
      %1626 = vrot.lane.b32.xlu0 %v1609, 127
      %v1627 = vpop.permute.xlu0 %1626
      %1628 = vrot.lane.b32.xlu0 %v1610, 127
      %v1629 = vpop.permute.xlu0 %1628
      %1630 = vrot.lane.b32.xlu0 %v1611, 127
      %v1631 = vpop.permute.xlu0 %1630
      %1632 = vrot.lane.b32.xlu0 %v1612, 127
      %v1633 = vpop.permute.xlu0 %1632
      %1634 = vrot.lane.b32.xlu0 %v1613, 127
      %v1635 = vpop.permute.xlu0 %1634
      %1636 = vrot.lane.b32.xlu0 %v1614, 127
      %v1637 = vpop.permute.xlu0 %1636
      %1638 = vrot.lane.b32.xlu0 %v1615, 127
      %v1639 = vpop.permute.xlu0 %1638
      %1648 = vmatprep.subr.mxu0 0.0
      %1649 = vmatpush1.msra.mxu0 %v1625
      %1650 = vmatprep.subr.mxu0 0.0
      %1651 = vmatpush1.msra.mxu0 %v1627
      %1652 = vmatprep.subr.mxu0 0.0
      %1653 = vmatpush1.msra.mxu0 %v1629
      %1654 = vmatprep.subr.mxu0 0.0
      %1655 = vmatpush1.msra.mxu0 %v1631
      %1656 = vmatprep.subr.mxu0 0.0
      %1657 = vmatpush1.msra.mxu0 %v1633
      %1658 = vmatprep.subr.mxu0 0.0
      %1659 = vmatpush1.msra.mxu0 %v1635
      %1660 = vmatprep.subr.mxu0 0.0
      %1661 = vmatpush1.msra.mxu0 %v1637
      %1662 = vmatprep.subr.mxu0 0.0
      %1663 = vmatpush1.msra.mxu0 %v1639
      %1664 = vmatprep.subr.mxu0 0.0
      %1665 = vmatpush1.msra.mxu0 0.0
      %1666 = vmatprep.subr.mxu0 0.0
      %1667 = vmatpush1.msra.mxu0 0.0
      %1668 = vmatprep.subr.mxu0 0.0
      %1669 = vmatpush1.msra.mxu0 0.0
      %1670 = vmatprep.subr.mxu0 0.0
      %1671 = vmatpush1.msra.mxu0 0.0
      %1672 = vmatprep.subr.mxu0 0.0
      %1673 = vmatpush1.msra.mxu0 0.0
      %1674 = vmatprep.subr.mxu0 0.0
      %1675 = vmatpush1.msra.mxu0 0.0
      %1676 = vmatprep.subr.mxu0 0.0
      %1677 = vmatpush1.msra.mxu0 0.0
      %1678 = vmatprep.subr.mxu0 0.0
      %1679 = vmatpush1.msra.mxu0 0.0
      %1680 = vmatprep.subr.mxu0 0.0
      %1681 = vmatpush1.msra.mxu0 0.0
      %1682 = vmatprep.subr.mxu0 0.0
      %1683 = vmatpush1.msra.mxu0 0.0
      %1684 = vmatprep.subr.mxu0 0.0
      %1685 = vmatpush1.msra.mxu0 0.0
      %1686 = vmatprep.subr.mxu0 0.0
      %1687 = vmatpush1.msra.mxu0 0.0
      %1688 = vmatprep.subr.mxu0 0.0
      %1689 = vmatpush1.msra.mxu0 0.0
      %1690 = vmatprep.subr.mxu0 0.0
      %1691 = vmatpush1.msra.mxu0 0.0
      %1692 = vmatprep.subr.mxu0 0.0
      %1693 = vmatpush1.msra.mxu0 0.0
      %1694 = vmatprep.subr.mxu0 0.0
      %1695 = vmatpush1.msra.mxu0 0.0
      %1696 = vmatprep.subr.mxu0 0.0
      %1697 = vmatpush1.msra.mxu0 0.0
      %1698 = vmatprep.subr.mxu0 0.0
      %1699 = vmatpush1.msra.mxu0 0.0
      %1700 = vmatprep.subr.mxu0 0.0
      %1701 = vmatpush1.msra.mxu0 0.0
      %1702 = vmatprep.subr.mxu0 0.0
      %1703 = vmatpush1.msra.mxu0 0.0
      %1704 = vmatprep.subr.mxu0 0.0
      %1705 = vmatpush1.msra.mxu0 0.0
      %1706 = vmatprep.subr.mxu0 0.0
      %1707 = vmatpush1.msra.mxu0 0.0
      %1708 = vmatprep.subr.mxu0 0.0
      %1709 = vmatpush1.msra.mxu0 0.0
      %1710 = vmatprep.subr.mxu0 0.0
      %1711 = vmatpush1.msra.mxu0 0.0
      %1712 = vmatprep.mubr.f32.mxu0 0.0
      %1713 = vmatmul.mubr.f32.gmra.mrb[0].mxu0 %v261
      %v1714 = vpop.f32.mrb[0].mxu0
      %v1715 = vadd.f32 0.0, %v1714
      %v1716 = vpop.f32.mrb[0].mxu0
      %1717 = vmatprep.mubr.f32.mxu0 0.0
      %1718 = vmatmul.mubr.f32.gmra.mrb[0].mxu0 %v264
      %v1719 = vpop.f32.mrb[0].mxu0
      %v1720 = vadd.f32 0.0, %v1719
      %v1721 = vpop.f32.mrb[0].mxu0
      %1722 = vmatprep.mubr.f32.mxu0 0.0
      %1723 = vmatmul.mubr.f32.gmra.mrb[0].mxu0 %v267
      %v1724 = vpop.f32.mrb[0].mxu0
      %v1725 = vadd.f32 0.0, %v1724
      %v1726 = vpop.f32.mrb[0].mxu0
      %1727 = vmatprep.mubr.f32.mxu0 0.0
      %1728 = vmatmul.mubr.f32.gmra.mrb[0].mxu0 %v270
      %v1729 = vpop.f32.mrb[0].mxu0
      %v1730 = vadd.f32 0.0, %v1729
      %v1731 = vpop.f32.mrb[0].mxu0
      %1732 = vdwg.mxu0
      %1733 = vmatprep.subr.mxu0 0.0
      %1734 = vmatpush1.msra.mxu0 %v1608
      %1735 = vmatprep.subr.mxu0 0.0
      %1736 = vmatpush1.msra.mxu0 %v1609
      %1737 = vmatprep.subr.mxu0 0.0
      %1738 = vmatpush1.msra.mxu0 %v1610
      %1739 = vmatprep.subr.mxu0 0.0
      %1740 = vmatpush1.msra.mxu0 %v1611
      %1741 = vmatprep.subr.mxu0 0.0
      %1742 = vmatpush1.msra.mxu0 %v1612
      %1743 = vmatprep.subr.mxu0 0.0
      %1744 = vmatpush1.msra.mxu0 %v1613
      %1745 = vmatprep.subr.mxu0 0.0
      %1746 = vmatpush1.msra.mxu0 %v1614
      %1747 = vmatprep.subr.mxu0 0.0
      %1748 = vmatpush1.msra.mxu0 %v1615
      %1749 = vmatprep.subr.mxu0 0.0
      %1750 = vmatpush1.msra.mxu0 0.0
      %1751 = vmatprep.subr.mxu0 0.0
      %1752 = vmatpush1.msra.mxu0 0.0
      %1753 = vmatprep.subr.mxu0 0.0
      %1754 = vmatpush1.msra.mxu0 0.0
      %1755 = vmatprep.subr.mxu0 0.0
      %1756 = vmatpush1.msra.mxu0 0.0
      %1757 = vmatprep.subr.mxu0 0.0
      %1758 = vmatpush1.msra.mxu0 0.0
      %1759 = vmatprep.subr.mxu0 0.0
      %1760 = vmatpush1.msra.mxu0 0.0
      %1761 = vmatprep.subr.mxu0 0.0
      %1762 = vmatpush1.msra.mxu0 0.0
      %1763 = vmatprep.subr.mxu0 0.0
      %1764 = vmatpush1.msra.mxu0 0.0
      %1765 = vmatprep.subr.mxu0 0.0
      %1766 = vmatpush1.msra.mxu0 0.0
      %1767 = vmatprep.subr.mxu0 0.0
      %1768 = vmatpush1.msra.mxu0 0.0
      %1769 = vmatprep.subr.mxu0 0.0
      %1770 = vmatpush1.msra.mxu0 0.0
      %1771 = vmatprep.subr.mxu0 0.0
      %1772 = vmatpush1.msra.mxu0 0.0
      %1773 = vmatprep.subr.mxu0 0.0
      %1774 = vmatpush1.msra.mxu0 0.0
      %1775 = vmatprep.subr.mxu0 0.0
      %1776 = vmatpush1.msra.mxu0 0.0
      %1777 = vmatprep.subr.mxu0 0.0
      %1778 = vmatpush1.msra.mxu0 0.0
      %1779 = vmatprep.subr.mxu0 0.0
      %1780 = vmatpush1.msra.mxu0 0.0
      %1781 = vmatprep.subr.mxu0 0.0
      %1782 = vmatpush1.msra.mxu0 0.0
      %1783 = vmatprep.subr.mxu0 0.0
      %1784 = vmatpush1.msra.mxu0 0.0
      %1785 = vmatprep.subr.mxu0 0.0
      %1786 = vmatpush1.msra.mxu0 0.0
      %1787 = vmatprep.subr.mxu0 0.0
      %1788 = vmatpush1.msra.mxu0 0.0
      %1789 = vmatprep.subr.mxu0 0.0
      %1790 = vmatpush1.msra.mxu0 0.0
      %1791 = vmatprep.subr.mxu0 0.0
      %1792 = vmatpush1.msra.mxu0 0.0
      %1793 = vmatprep.subr.mxu0 0.0
      %1794 = vmatpush1.msra.mxu0 0.0
      %1795 = vmatprep.subr.mxu0 0.0
      %1796 = vmatpush1.msra.mxu0 0.0
      %1797 = vmatprep.mubr.f32.mxu0 0.0
      %1798 = vmatmul.mubr.f32.gmra.mrb[0].mxu0 %v358
      %v1799 = vpop.f32.mrb[0].mxu0
      %v1800 = vadd.f32 %v1715, %v1799
      %v1801 = vpop.f32.mrb[0].mxu0
      %1802 = vmatprep.mubr.f32.mxu0 0.0
      %1803 = vmatmul.mubr.f32.gmra.mrb[0].mxu0 %v361
      %v1804 = vpop.f32.mrb[0].mxu0
      %v1805 = vadd.f32 %v1720, %v1804
      %v1806 = vpop.f32.mrb[0].mxu0
      %1807 = vmatprep.mubr.f32.mxu0 0.0
      %1808 = vmatmul.mubr.f32.gmra.mrb[0].mxu0 %v364
      %v1809 = vpop.f32.mrb[0].mxu0
      %v1810 = vadd.f32 %v1725, %v1809
      %v1811 = vpop.f32.mrb[0].mxu0
      %1812 = vmatprep.mubr.f32.mxu0 0.0
      %1813 = vmatmul.mubr.f32.gmra.mrb[0].mxu0 %v367
      %v1814 = vpop.f32.mrb[0].mxu0
      %v1815 = vadd.f32 %v1730, %v1814
      %v1816 = vpop.f32.mrb[0].mxu0
      %1817 = vdwg.mxu0
      %s1818 = sadd.s32 %s196, 4
      %s1819 = smul.u32 %s1818, 64
      %s1820 = scalar_lea.vmem %s184, %s1819
      %v1821 = vld [vmem:[%s1820] sm:$0xff]
      %v1822 = vld [vmem:[%s1820 + $0x8] sm:$0xff]
      %v1823 = vld [vmem:[%s1820 + $0x10] sm:$0xff]
      %v1824 = vld [vmem:[%s1820 + $0x18] sm:$0xff]
      %v1825 = vld [vmem:[%s1820 + $0x20] sm:$0xff]
      %v1826 = vld [vmem:[%s1820 + $0x28] sm:$0xff]
      %v1827 = vld [vmem:[%s1820 + $0x30] sm:$0xff]
      %v1828 = vld [vmem:[%s1820 + $0x38] sm:$0xff]
      %1829 = vmatprep.subr.mxu0 0.0
      %1830 = vmatpush1.msra.mxu0 %v1821
      %1831 = vmatprep.subr.mxu0 0.0
      %1832 = vmatpush1.msra.mxu0 %v1822
      %1833 = vmatprep.subr.mxu0 0.0
      %1834 = vmatpush1.msra.mxu0 %v1823
      %1835 = vmatprep.subr.mxu0 0.0
      %1836 = vmatpush1.msra.mxu0 %v1824
      %1837 = vmatprep.subr.mxu0 0.0
      %1838 = vmatpush1.msra.mxu0 %v1825
      %1839 = vmatprep.subr.mxu0 0.0
      %1840 = vmatpush1.msra.mxu0 %v1826
      %1841 = vmatprep.subr.mxu0 0.0
      %1842 = vmatpush1.msra.mxu0 %v1827
      %1843 = vmatprep.subr.mxu0 0.0
      %1844 = vmatpush1.msra.mxu0 %v1828
      %1845 = vmatprep.subr.mxu0 0.0
      %1846 = vmatpush1.msra.mxu0 0.0
      %1847 = vmatprep.subr.mxu0 0.0
      %1848 = vmatpush1.msra.mxu0 0.0
      %1849 = vmatprep.subr.mxu0 0.0
      %1850 = vmatpush1.msra.mxu0 0.0
      %1851 = vmatprep.subr.mxu0 0.0
      %1852 = vmatpush1.msra.mxu0 0.0
      %1853 = vmatprep.subr.mxu0 0.0
      %1854 = vmatpush1.msra.mxu0 0.0
      %1855 = vmatprep.subr.mxu0 0.0
      %1856 = vmatpush1.msra.mxu0 0.0
      %1857 = vmatprep.subr.mxu0 0.0
      %1858 = vmatpush1.msra.mxu0 0.0
      %1859 = vmatprep.subr.mxu0 0.0
      %1860 = vmatpush1.msra.mxu0 0.0
      %1861 = vmatprep.subr.mxu0 0.0
      %1862 = vmatpush1.msra.mxu0 0.0
      %1863 = vmatprep.subr.mxu0 0.0
      %1864 = vmatpush1.msra.mxu0 0.0
      %1865 = vmatprep.subr.mxu0 0.0
      %1866 = vmatpush1.msra.mxu0 0.0
      %1867 = vmatprep.subr.mxu0 0.0
      %1868 = vmatpush1.msra.mxu0 0.0
      %1869 = vmatprep.subr.mxu0 0.0
      %1870 = vmatpush1.msra.mxu0 0.0
      %1871 = vmatprep.subr.mxu0 0.0
      %1872 = vmatpush1.msra.mxu0 0.0
      %1873 = vmatprep.subr.mxu0 0.0
      %1874 = vmatpush1.msra.mxu0 0.0
      %1875 = vmatprep.subr.mxu0 0.0
      %1876 = vmatpush1.msra.mxu0 0.0
      %1877 = vmatprep.subr.mxu0 0.0
      %1878 = vmatpush1.msra.mxu0 0.0
      %1879 = vmatprep.subr.mxu0 0.0
      %1880 = vmatpush1.msra.mxu0 0.0
      %1881 = vmatprep.subr.mxu0 0.0
      %1882 = vmatpush1.msra.mxu0 0.0
      %1883 = vmatprep.subr.mxu0 0.0
      %1884 = vmatpush1.msra.mxu0 0.0
      %1885 = vmatprep.subr.mxu0 0.0
      %1886 = vmatpush1.msra.mxu0 0.0
      %1887 = vmatprep.subr.mxu0 0.0
      %1888 = vmatpush1.msra.mxu0 0.0
      %1889 = vmatprep.subr.mxu0 0.0
      %1890 = vmatpush1.msra.mxu0 0.0
      %1891 = vmatprep.subr.mxu0 0.0
      %1892 = vmatpush1.msra.mxu0 0.0
      %1893 = vmatprep.mubr.f32.mxu0 0.0
      %1894 = vmatmul.mubr.f32.gmra.mrb[0].mxu0 %v466
      %v1895 = vpop.f32.mrb[0].mxu0
      %v1896 = vadd.f32 0.0, %v1895
      %v1897 = vpop.f32.mrb[0].mxu0
      %1898 = vmatprep.mubr.f32.mxu0 0.0
      %1899 = vmatmul.mubr.f32.gmra.mrb[0].mxu0 %v469
      %v1900 = vpop.f32.mrb[0].mxu0
      %v1901 = vadd.f32 0.0, %v1900
      %v1902 = vpop.f32.mrb[0].mxu0
      %1903 = vmatprep.mubr.f32.mxu0 0.0
      %1904 = vmatmul.mubr.f32.gmra.mrb[0].mxu0 %v472
      %v1905 = vpop.f32.mrb[0].mxu0
      %v1906 = vadd.f32 0.0, %v1905
      %v1907 = vpop.f32.mrb[0].mxu0
      %1908 = vmatprep.mubr.f32.mxu0 0.0
      %1909 = vmatmul.mubr.f32.gmra.mrb[0].mxu0 %v475
      %v1910 = vpop.f32.mrb[0].mxu0
      %v1911 = vadd.f32 0.0, %v1910
      %v1912 = vpop.f32.mrb[0].mxu0
      %1913 = vdwg.mxu0
      %v1914 = vadd.f32 %v1800, %v1896
      %v1915 = vadd.f32 %v1805, %v1901
      %v1916 = vadd.f32 %v1810, %v1906
      %v1917 = vadd.f32 %v1815, %v1911
      %1926 = vrot.lane.b32.xlu0 %v1821, 127
      %v1927 = vpop.permute.xlu0 %1926
      %1928 = vrot.lane.b32.xlu0 %v1822, 127
      %v1929 = vpop.permute.xlu0 %1928
      %1930 = vrot.lane.b32.xlu0 %v1823, 127
      %v1931 = vpop.permute.xlu0 %1930
      %1932 = vrot.lane.b32.xlu0 %v1824, 127
      %v1933 = vpop.permute.xlu0 %1932
      %1934 = vrot.lane.b32.xlu0 %v1825, 127
      %v1935 = vpop.permute.xlu0 %1934
      %1936 = vrot.lane.b32.xlu0 %v1826, 127
      %v1937 = vpop.permute.xlu0 %1936
      %1938 = vrot.lane.b32.xlu0 %v1827, 127
      %v1939 = vpop.permute.xlu0 %1938
      %1940 = vrot.lane.b32.xlu0 %v1828, 127
      %v1941 = vpop.permute.xlu0 %1940
      %1950 = vmatprep.subr.mxu0 0.0
      %1951 = vmatpush1.msra.mxu0 %v1927
      %1952 = vmatprep.subr.mxu0 0.0
      %1953 = vmatpush1.msra.mxu0 %v1929
      %1954 = vmatprep.subr.mxu0 0.0
      %1955 = vmatpush1.msra.mxu0 %v1931
      %1956 = vmatprep.subr.mxu0 0.0
      %1957 = vmatpush1.msra.mxu0 %v1933
      %1958 = vmatprep.subr.mxu0 0.0
      %1959 = vmatpush1.msra.mxu0 %v1935
      %1960 = vmatprep.subr.mxu0 0.0
      %1961 = vmatpush1.msra.mxu0 %v1937
      %1962 = vmatprep.subr.mxu0 0.0
      %1963 = vmatpush1.msra.mxu0 %v1939
      %1964 = vmatprep.subr.mxu0 0.0
      %1965 = vmatpush1.msra.mxu0 %v1941
      %1966 = vmatprep.subr.mxu0 0.0
      %1967 = vmatpush1.msra.mxu0 0.0
      %1968 = vmatprep.subr.mxu0 0.0
      %1969 = vmatpush1.msra.mxu0 0.0
      %1970 = vmatprep.subr.mxu0 0.0
      %1971 = vmatpush1.msra.mxu0 0.0
      %1972 = vmatprep.subr.mxu0 0.0
      %1973 = vmatpush1.msra.mxu0 0.0
      %1974 = vmatprep.subr.mxu0 0.0
      %1975 = vmatpush1.msra.mxu0 0.0
      %1976 = vmatprep.subr.mxu0 0.0
      %1977 = vmatpush1.msra.mxu0 0.0
      %1978 = vmatprep.subr.mxu0 0.0
      %1979 = vmatpush1.msra.mxu0 0.0
      %1980 = vmatprep.subr.mxu0 0.0
      %1981 = vmatpush1.msra.mxu0 0.0
      %1982 = vmatprep.subr.mxu0 0.0
      %1983 = vmatpush1.msra.mxu0 0.0
      %1984 = vmatprep.subr.mxu0 0.0
      %1985 = vmatpush1.msra.mxu0 0.0
      %1986 = vmatprep.subr.mxu0 0.0
      %1987 = vmatpush1.msra.mxu0 0.0
      %1988 = vmatprep.subr.mxu0 0.0
      %1989 = vmatpush1.msra.mxu0 0.0
      %1990 = vmatprep.subr.mxu0 0.0
      %1991 = vmatpush1.msra.mxu0 0.0
      %1992 = vmatprep.subr.mxu0 0.0
      %1993 = vmatpush1.msra.mxu0 0.0
      %1994 = vmatprep.subr.mxu0 0.0
      %1995 = vmatpush1.msra.mxu0 0.0
      %1996 = vmatprep.subr.mxu0 0.0
      %1997 = vmatpush1.msra.mxu0 0.0
      %1998 = vmatprep.subr.mxu0 0.0
      %1999 = vmatpush1.msra.mxu0 0.0
      %2000 = vmatprep.subr.mxu0 0.0
      %2001 = vmatpush1.msra.mxu0 0.0
      %2002 = vmatprep.subr.mxu0 0.0
      %2003 = vmatpush1.msra.mxu0 0.0
      %2004 = vmatprep.subr.mxu0 0.0
      %2005 = vmatpush1.msra.mxu0 0.0
      %2006 = vmatprep.subr.mxu0 0.0
      %2007 = vmatpush1.msra.mxu0 0.0
      %2008 = vmatprep.subr.mxu0 0.0
      %2009 = vmatpush1.msra.mxu0 0.0
      %2010 = vmatprep.subr.mxu0 0.0
      %2011 = vmatpush1.msra.mxu0 0.0
      %2012 = vmatprep.subr.mxu0 0.0
      %2013 = vmatpush1.msra.mxu0 0.0
      %2014 = vmatprep.mubr.f32.mxu0 0.0
      %2015 = vmatmul.mubr.f32.gmra.mrb[0].mxu0 %v599
      %v2016 = vpop.f32.mrb[0].mxu0
      %v2017 = vadd.f32 0.0, %v2016
      %v2018 = vpop.f32.mrb[0].mxu0
      %2019 = vmatprep.mubr.f32.mxu0 0.0
      %2020 = vmatmul.mubr.f32.gmra.mrb[0].mxu0 %v602
      %v2021 = vpop.f32.mrb[0].mxu0
      %v2022 = vadd.f32 0.0, %v2021
      %v2023 = vpop.f32.mrb[0].mxu0
      %2024 = vmatprep.mubr.f32.mxu0 0.0
      %2025 = vmatmul.mubr.f32.gmra.mrb[0].mxu0 %v605
      %v2026 = vpop.f32.mrb[0].mxu0
      %v2027 = vadd.f32 0.0, %v2026
      %v2028 = vpop.f32.mrb[0].mxu0
      %2029 = vmatprep.mubr.f32.mxu0 0.0
      %2030 = vmatmul.mubr.f32.gmra.mrb[0].mxu0 %v608
      %v2031 = vpop.f32.mrb[0].mxu0
      %v2032 = vadd.f32 0.0, %v2031
      %v2033 = vpop.f32.mrb[0].mxu0
      %2034 = vdwg.mxu0
      %v2035 = vadd.f32 %v1914, %v2017
      %v2036 = vadd.f32 %v1915, %v2022
      %v2037 = vadd.f32 %v1916, %v2027
      %v2038 = vadd.f32 %v1917, %v2032
      %v2039 = vadd.f32 %v2035, %v702
      %v2040 = vadd.f32 %v2036, %v707
      %v2041 = vadd.f32 %v2037, %v712
      %v2042 = vadd.f32 %v2038, %v717
      %s2043 = scalar_lea.vmem %s194, 96
      %2044 = vst.msk [vmem:[%s2043] sm:$0xff] %vm723, %v2039
      %2045 = vst.msk [vmem:[%s2043 + $0x8] sm:$0xff] %vm723, %v2040
      %2046 = vst.msk [vmem:[%s2043 + $0x10] sm:$0xff] %vm723, %v2041
      %2047 = vst.msk [vmem:[%s2043 + $0x18] sm:$0xff] %vm723, %v2042
      %s2048 = smul.u32 4, %s19
      %p2049 = scmp.lt.s32.totalorder %s18, 1
      %s2050 = scalar_select %p2049, %s18, 1
      %p2051 = scmp.lt.s32.totalorder %s2048, 3
      %s2052 = scalar_select %p2051, %s2048, 3
      %s2053 = smul.addr %s2052, 4
      %s2054 = smul.addr %s2050, 16
      %s2055 = sadd.s32 %s2053, %s2054
      %s2056 = smul.addr %s2055, 8
      %s2057 = scalar_lea.vmem %s3, %s2056
      // Predicated region
      $region33: #{recnext_stem.3} parent=31 // pred_check
        %p2058 = pneg %p114
      $region34: #{recnext_stem.3} parent=31 // pred_check_branch
        %2060 = sbr.rel (%p2058) target = $region36
      $region35: #{recnext_stem.3} parent=31 // pred_region
        %s2061 = smul.u32 4, %s19
      $region36: #{recnext_stem.3} parent=31 // pred_fallthru
        _
    $region32: #{recnext_stem.3} parent=5 // pred_fallthru
      _
    %p2062 = scmp.le.s32.totalorder 2, %s9
    // Predicated region
    $region37: #{recnext_stem.3} parent=5 // pred_check
      %p2063 = pneg %p2062
    $region38: #{recnext_stem.3} parent=5 // pred_check_branch
      %2065 = sbr.rel (%p2063) target = $region40
    $region39: #{recnext_stem.3} parent=5 // pred_region
      %s2066 = ssub.s32 %s9, 2
      // Predicated region
      $region41: #{recnext_stem.3} parent=39 // pred_check
        %p2067 = pneg %p120
      $region42: #{recnext_stem.3} parent=39 // pred_check_branch
        %2069 = sbr.rel (%p2067) target = $region44
      $region43: #{recnext_stem.3} parent=39 // pred_region
        %s2070 = smul.u32 4, %s21
        %p2071 = scmp.lt.s32.totalorder %s20, 1
        %s2072 = scalar_select %p2071, %s20, 1
        %p2073 = scmp.lt.s32.totalorder %s2070, 3
        %s2074 = scalar_select %p2073, %s2070, 3
        %s2075 = smul.addr %s2074, 4
        %s2076 = smul.addr %s2072, 16
        %s2077 = sadd.s32 %s2075, %s2076
        %s2078 = smul.addr %s2077, 8
        %s2079 = scalar_lea.vmem %s3, %s2078
      $region44: #{recnext_stem.3} parent=39 // pred_fallthru
        _
    $region40: #{recnext_stem.3} parent=5 // pred_fallthru
      _
  $region6: #{recnext_stem.3} parent=0 // loop_footer
    %s13 = sadd.s32 1, %s9
  $region7: #{recnext_stem.3} parent=0 // loop_footer_branch
    %8 = sbr.rel target = $region3
  $region8: #{recnext_stem.3} parent=0 // loop_exit
    _

// kernel: recnext_stem.2
$region0: #{recnext_stem.2}
  #allocation0 [shape = 'u32[]', space=smem, size = 0x4, offset = 0x4, fixed_abs, tag = 'smem constant byte address 0x4 - core index']
  #allocation1 [shape = 'u32[144,128]{1,0:T(1,128)}', space=vmem, size = 0x12000, scoped, tag = 'internal scratch']
  %s0 = inlined_call_operand.vmem [shape: f32[2,9,16,9], index: 0, kind: input, shape index: {}]
  %s1 = inlined_call_operand.vmem [shape: f32[4,16,16], index: 1, kind: input, shape index: {}]
  %s2 = inlined_call_operand.vmem [shape: f32[16,1], index: 2, kind: input, shape index: {}]
  %s3 = inlined_call_operand.vmem [shape: f32[2,8,16,8], index: 3, kind: output, shape index: {}]
  %s4 = sld [smem:[#allocation0]]
  $region45: #{recnext_stem.2} parent=0
    _
  %s6 = ssub.s32 1, %s4
  %s7 = scalar_select 0, %s6, %s4
  loop: start=0, step=1, limit=4
  $region2: #{recnext_stem.2} parent=0 // loop_pre_header
    _
  $region3: #{recnext_stem.2} parent=0 // loop_header
    %s9 = sphi 0, %s13
    %p10 = scmp.ge.s32.totalorder %s9, 4
    %s16 = sphi 0, %s28
    %s17 = sphi 0, %s24
    %s18 = sphi 0, %s16
    %s19 = sphi 0, %s17
    %s20 = sphi 0, %s18
    %s21 = sphi 0, %s19
    %s31 = sphi 0, %s33
    %s34 = sphi 0, %s31
    %s35 = sphi 0, %s34
    %s51 = sphi 0, %s35
    %s55 = sphi 0, %s55
    %s57 = sphi 0, %s55
    %s58 = sphi 0, %s57
    %s72 = sphi 0, %s58
    %s76 = sphi 0, %s76
    %s78 = sphi 0, %s76
    %s79 = sphi 0, %s78
    %s93 = sphi 0, %s79
    %s101 = sphi 0, %s103
    %s104 = sphi 0, %s101
    %s105 = sphi 0, %s104
    %s121 = sphi 0, %s105
  $region4: #{recnext_stem.2} parent=0 // loop_header_branch
    %12 = sbr.rel (%p10) target = $region8
  $region5: #{recnext_stem.2} parent=0 // loop_body
    %s14 = ssub.s32 %s9, 1
    %s15 = ssub.s32 %s9, 2
    %s22 = sadd.s32 1, %s17
    %p23 = scmp.ge.s32.totalorder %s22, 1
    %s24 = scalar_select %p23, 0, %s22
    %s25 = sadd.s32 1, %s16
    %s26 = scalar_select %p23, %s25, %s16
    %p27 = scmp.ge.s32.totalorder %s26, 2
    %s28 = scalar_select %p27, 0, %s26
    %s29 = ssub.s32 %s16, %s28
    %p30 = scmp.eq.s32.totalorder %s29, 0
    %s32 = sadd.s32 %s31, 1
    %s33 = scalar_select %p30, %s31, %s32
    %p36 = pneg %p30
    %p37 = scmp.eq.s32.totalorder %s9, 1
    %p38 = por %p36, %p37
    %p39 = scmp.ne.s32.totalorder %s31, %s34
    %p40 = scmp.eq.s32.totalorder %s9, 0
    %p41 = por %p39, %p40
    %p42 = scmp.ne.s32.totalorder %s31, %s34
    %p43 = scmp.eq.s32.totalorder %s14, 1
    %p44 = por %p42, %p43
    %p45 = scmp.ne.s32.totalorder %s34, %s35
    %p46 = scmp.eq.s32.totalorder %s14, 0
    %p47 = por %p45, %p46
    %p48 = scmp.ne.s32.totalorder %s34, %s35
    %p49 = scmp.eq.s32.totalorder %s15, 1
    %p50 = por %p48, %p49
    %p52 = scmp.ne.s32.totalorder %s35, %s51
    %p53 = scmp.eq.s32.totalorder %s15, 0
    %p54 = por %p52, %p53
    %s56 = sadd.s32 %s55, 1
    %p59 = scmp.eq.s32.totalorder %s9, 1
    %p60 = scmp.ne.s32.totalorder %s55, %s57
    %p61 = scmp.eq.s32.totalorder %s9, 0
    %p62 = por %p60, %p61
    %p63 = scmp.ne.s32.totalorder %s55, %s57
    %p64 = scmp.eq.s32.totalorder %s14, 1
    %p65 = por %p63, %p64
    %p66 = scmp.ne.s32.totalorder %s57, %s58
    %p67 = scmp.eq.s32.totalorder %s14, 0
    %p68 = por %p66, %p67
    %p69 = scmp.ne.s32.totalorder %s57, %s58
    %p70 = scmp.eq.s32.totalorder %s15, 1
    %p71 = por %p69, %p70
    %p73 = scmp.ne.s32.totalorder %s58, %s72
    %p74 = scmp.eq.s32.totalorder %s15, 0
    %p75 = por %p73, %p74
    %s77 = sadd.s32 %s76, 1
    %p80 = scmp.eq.s32.totalorder %s9, 1
    %p81 = scmp.ne.s32.totalorder %s76, %s78
    %p82 = scmp.eq.s32.totalorder %s9, 0
    %p83 = por %p81, %p82
    %p84 = scmp.ne.s32.totalorder %s76, %s78
    %p85 = scmp.eq.s32.totalorder %s14, 1
    %p86 = por %p84, %p85
    %p87 = scmp.ne.s32.totalorder %s78, %s79
    %p88 = scmp.eq.s32.totalorder %s14, 0
    %p89 = por %p87, %p88
    %p90 = scmp.ne.s32.totalorder %s78, %s79
    %p91 = scmp.eq.s32.totalorder %s15, 1
    %p92 = por %p90, %p91
    %p94 = scmp.ne.s32.totalorder %s79, %s93
    %p95 = scmp.eq.s32.totalorder %s15, 0
    %p96 = por %p94, %p95
    %s97 = ssub.s32 %s16, %s28
    %s98 = ssub.s32 %s17, %s24
    %s99 = sor.u32 %s97, %s98
    %p100 = scmp.eq.s32.totalorder %s99, 0
    %s102 = sadd.s32 %s101, 1
    %s103 = scalar_select %p100, %s101, %s102
    %p106 = pneg %p100
    %p107 = scmp.eq.s32.totalorder %s9, 1
    %p108 = por %p106, %p107
    %p109 = scmp.ne.s32.totalorder %s101, %s104
    %p110 = scmp.eq.s32.totalorder %s9, 0
    %p111 = por %p109, %p110
    %p112 = scmp.ne.s32.totalorder %s101, %s104
    %p113 = scmp.eq.s32.totalorder %s14, 1
    %p114 = por %p112, %p113
    %p115 = scmp.ne.s32.totalorder %s104, %s105
    %p116 = scmp.eq.s32.totalorder %s14, 0
    %p117 = por %p115, %p116
    %p118 = scmp.ne.s32.totalorder %s104, %s105
    %p119 = scmp.eq.s32.totalorder %s15, 1
    %p120 = por %p118, %p119
    %p122 = scmp.ne.s32.totalorder %s105, %s121
    %p123 = scmp.eq.s32.totalorder %s15, 0
    %p124 = por %p122, %p123
    %p125 = scmp.le.s32.totalorder 1, %s9
    %p126 = scmp.lt.s32.totalorder %s9, 3
    %p127 = pnand %p125, %p126
    %p128 = pneg %p127
    // Predicated region
    $region9: #{recnext_stem.2} parent=5 // pred_check
      _
    $region10: #{recnext_stem.2} parent=5 // pred_check_branch
      %130 = sbr.rel (%p127) target = $region12
    $region11: #{recnext_stem.2} parent=5 // pred_region
      %s131 = ssub.s32 %s9, 1
      // Predicated region
      $region13: #{recnext_stem.2} parent=11 // pred_check
        %p132 = pneg %p68
      $region14: #{recnext_stem.2} parent=11 // pred_check_branch
        %134 = sbr.rel (%p132) target = $region16
      $region15: #{recnext_stem.2} parent=11 // pred_region
        _
      $region16: #{recnext_stem.2} parent=11 // pred_fallthru
        _
      // Predicated region
      $region17: #{recnext_stem.2} parent=11 // pred_check
        %p135 = pneg %p89
      $region18: #{recnext_stem.2} parent=11 // pred_check_branch
        %137 = sbr.rel (%p135) target = $region20
      $region19: #{recnext_stem.2} parent=11 // pred_region
        _
      $region20: #{recnext_stem.2} parent=11 // pred_fallthru
        _
    $region12: #{recnext_stem.2} parent=5 // pred_fallthru
      _
    %p138 = scmp.lt.s32.totalorder %s9, 2
    // Predicated region
    $region21: #{recnext_stem.2} parent=5 // pred_check
      %p139 = pneg %p138
    $region22: #{recnext_stem.2} parent=5 // pred_check_branch
      %141 = sbr.rel (%p139) target = $region24
    $region23: #{recnext_stem.2} parent=5 // pred_region
      // Predicated region
      $region25: #{recnext_stem.2} parent=23 // pred_check
        %p142 = pneg %p41
      $region26: #{recnext_stem.2} parent=23 // pred_check_branch
        %144 = sbr.rel (%p142) target = $region28
      $region27: #{recnext_stem.2} parent=23 // pred_region
        %p145 = scmp.lt.s32.totalorder %s16, 1
        %s146 = scalar_select %p145, %s16, 1
        %s147 = smul.addr %s146, 18
        %s148 = smul.addr %s147, 8
        %s149 = scalar_lea.vmem %s0, %s148
      $region28: #{recnext_stem.2} parent=23 // pred_fallthru
        _
    $region24: #{recnext_stem.2} parent=5 // pred_fallthru
      _
    %p150 = scmp.le.s32.totalorder 1, %s9
    %p151 = scmp.lt.s32.totalorder %s9, 3
    %p152 = pnand %p150, %p151
    %p153 = pneg %p152
    // Predicated region
    $region29: #{recnext_stem.2} parent=5 // pred_check
      _
    $region30: #{recnext_stem.2} parent=5 // pred_check_branch
      %155 = sbr.rel (%p152) target = $region32
    $region31: #{recnext_stem.2} parent=5 // pred_region
      %s156 = ssub.s32 %s9, 1
      %p157 = scmp.lt.s32.totalorder %s18, 1
      %s158 = scalar_select %p157, %s18, 1
      %s159 = smul.addr %s158, 18
      %s160 = smul.addr %s159, 8
      %s161 = scalar_lea.vmem %s0, %s160
      %p162 = pneg %p47
      %p163 = pneg %p44
      %p164 = pneg %p68
      %p165 = pneg %p65
      %p166 = pneg %p89
      %p167 = pneg %p86
      %p168 = pneg %p117
      %p169 = pneg %p114
      %s170 = smul.u32 8, %s19
      %p171 = scmp.lt.s32.totalorder %s18, 1
      %s172 = scalar_select %p171, %s18, 1
      %p173 = scmp.lt.s32.totalorder %s170, 7
      %s174 = scalar_select %p173, %s170, 7
      %s175 = smul.addr %s174, 2
      %s176 = smul.addr %s172, 16
      %s177 = sadd.s32 %s175, %s176
      %s178 = smul.addr %s177, 8
      %s179 = scalar_lea.vmem %s3, %s178
      %p180 = scmp.lt.s32.totalorder %s18, 1
      %s181 = scalar_select %p180, %s18, 1
      %s182 = smul.addr %s181, 18
      %s183 = smul.addr %s182, 8
      %s184 = scalar_lea.vmem %s0, %s183
      %s185 = smul.u32 8, %s19
      %p186 = scmp.lt.s32.totalorder %s18, 1
      %s187 = scalar_select %p186, %s18, 1
      %p188 = scmp.lt.s32.totalorder %s185, 7
      %s189 = scalar_select %p188, %s185, 7
      %s190 = smul.addr %s189, 2
      %s191 = smul.addr %s187, 16
      %s192 = sadd.s32 %s190, %s191
      %s193 = smul.addr %s192, 8
      %s194 = scalar_lea.vmem %s3, %s193
      %s195 = smul.u32 8, %s19
      %s196 = smul.u32 %s19, 8
      %v197 = vld [vmem:[%s1] sm:$0xff]
      %v198 = vld [vmem:[%s1 + $0x8] sm:$0xff]
      %v199 = vld [vmem:[%s1 + $0x10] sm:$0xff]
      %v200 = vld [vmem:[%s1 + $0x18] sm:$0xff]
      %v201 = vld [vmem:[%s1 + $0x20] sm:$0xff]
      %v202 = vld [vmem:[%s1 + $0x28] sm:$0xff]
      %v203 = vld [vmem:[%s1 + $0x30] sm:$0xff]
      %v204 = vld [vmem:[%s1 + $0x38] sm:$0xff]
      %v205 = vld [vmem:[%s2] sm:$0xff]
      %v206 = vld [vmem:[%s2 + $0x8] sm:$0xff]
      %s207 = smul.u32 %s196, 16
      %s208 = scalar_lea.vmem %s184, %s207
      %v209 = vld [vmem:[%s208] sm:$0xff]
      %v210 = vld [vmem:[%s208 + $0x8] sm:$0xff]
      %213 = vrot.lane.b32.xlu0 %v209, 127
      %v214 = vpop.permute.xlu0 %213
      %215 = vrot.lane.b32.xlu0 %v210, 127
      %v216 = vpop.permute.xlu0 %215
      %vm219 = vcmask 130048
      %v221 = vsel %vm219, %v199, 0
      %v224 = vsel %vm219, %v200, 0
      %226 = vmatprep.subr.mxu0 0.0
      %227 = vmatpush1.msra.mxu0 %v214
      %228 = vmatprep.subr.mxu0 0.0
      %229 = vmatpush1.msra.mxu0 %v216
      %230 = vmatprep.subr.mxu0 0.0
      %231 = vmatpush1.msra.mxu0 0.0
      %232 = vmatprep.subr.mxu0 0.0
      %233 = vmatpush1.msra.mxu0 0.0
      %234 = vmatprep.subr.mxu0 0.0
      %235 = vmatpush1.msra.mxu0 0.0
      %236 = vmatprep.subr.mxu0 0.0
      %237 = vmatpush1.msra.mxu0 0.0
      %238 = vmatprep.subr.mxu0 0.0
      %239 = vmatpush1.msra.mxu0 0.0
      %240 = vmatprep.subr.mxu0 0.0
      %241 = vmatpush1.msra.mxu0 0.0
      %242 = vmatprep.subr.mxu0 0.0
      %243 = vmatpush1.msra.mxu0 0.0
      %244 = vmatprep.subr.mxu0 0.0
      %245 = vmatpush1.msra.mxu0 0.0
      %246 = vmatprep.subr.mxu0 0.0
      %247 = vmatpush1.msra.mxu0 0.0
      %248 = vmatprep.subr.mxu0 0.0
      %249 = vmatpush1.msra.mxu0 0.0
      %250 = vmatprep.subr.mxu0 0.0
      %251 = vmatpush1.msra.mxu0 0.0
      %252 = vmatprep.subr.mxu0 0.0
      %253 = vmatpush1.msra.mxu0 0.0
      %254 = vmatprep.subr.mxu0 0.0
      %255 = vmatpush1.msra.mxu0 0.0
      %256 = vmatprep.subr.mxu0 0.0
      %257 = vmatpush1.msra.mxu0 0.0
      %258 = vmatprep.subr.mxu0 0.0
      %259 = vmatpush1.msra.mxu0 0.0
      %260 = vmatprep.subr.mxu0 0.0
      %261 = vmatpush1.msra.mxu0 0.0
      %262 = vmatprep.subr.mxu0 0.0
      %263 = vmatpush1.msra.mxu0 0.0
      %264 = vmatprep.subr.mxu0 0.0
      %265 = vmatpush1.msra.mxu0 0.0
      %266 = vmatprep.subr.mxu0 0.0
      %267 = vmatpush1.msra.mxu0 0.0
      %268 = vmatprep.subr.mxu0 0.0
      %269 = vmatpush1.msra.mxu0 0.0
      %270 = vmatprep.subr.mxu0 0.0
      %271 = vmatpush1.msra.mxu0 0.0
      %272 = vmatprep.subr.mxu0 0.0
      %273 = vmatpush1.msra.mxu0 0.0
      %274 = vmatprep.subr.mxu0 0.0
      %275 = vmatpush1.msra.mxu0 0.0
      %276 = vmatprep.subr.mxu0 0.0
      %277 = vmatpush1.msra.mxu0 0.0
      %278 = vmatprep.subr.mxu0 0.0
      %279 = vmatpush1.msra.mxu0 0.0
      %280 = vmatprep.subr.mxu0 0.0
      %281 = vmatpush1.msra.mxu0 0.0
      %282 = vmatprep.subr.mxu0 0.0
      %283 = vmatpush1.msra.mxu0 0.0
      %284 = vmatprep.subr.mxu0 0.0
      %285 = vmatpush1.msra.mxu0 0.0
      %286 = vmatprep.subr.mxu0 0.0
      %287 = vmatpush1.msra.mxu0 0.0
      %288 = vmatprep.subr.mxu0 0.0
      %289 = vmatpush1.msra.mxu0 0.0
      %290 = vmatprep.mubr.f32.mxu0 0.0
      %291 = vmatmul.mubr.f32.gmra.mrb[0].mxu0 %v221
      %v292 = vpop.f32.mrb[0].mxu0
      %v293 = vadd.f32 0.0, %v292
      %v294 = vpop.f32.mrb[0].mxu0
      %295 = vmatprep.mubr.f32.mxu0 0.0
      %296 = vmatmul.mubr.f32.gmra.mrb[0].mxu0 %v224
      %v297 = vpop.f32.mrb[0].mxu0
      %v298 = vadd.f32 0.0, %v297
      %v299 = vpop.f32.mrb[0].mxu0
      %300 = vdwg.mxu0
      %v302 = vsel %vm219, %v197, 0
      %v305 = vsel %vm219, %v198, 0
      %307 = vmatprep.subr.mxu0 0.0
      %308 = vmatpush1.msra.mxu0 %v209
      %309 = vmatprep.subr.mxu0 0.0
      %310 = vmatpush1.msra.mxu0 %v210
      %311 = vmatprep.subr.mxu0 0.0
      %312 = vmatpush1.msra.mxu0 0.0
      %313 = vmatprep.subr.mxu0 0.0
      %314 = vmatpush1.msra.mxu0 0.0
      %315 = vmatprep.subr.mxu0 0.0
      %316 = vmatpush1.msra.mxu0 0.0
      %317 = vmatprep.subr.mxu0 0.0
      %318 = vmatpush1.msra.mxu0 0.0
      %319 = vmatprep.subr.mxu0 0.0
      %320 = vmatpush1.msra.mxu0 0.0
      %321 = vmatprep.subr.mxu0 0.0
      %322 = vmatpush1.msra.mxu0 0.0
      %323 = vmatprep.subr.mxu0 0.0
      %324 = vmatpush1.msra.mxu0 0.0
      %325 = vmatprep.subr.mxu0 0.0
      %326 = vmatpush1.msra.mxu0 0.0
      %327 = vmatprep.subr.mxu0 0.0
      %328 = vmatpush1.msra.mxu0 0.0
      %329 = vmatprep.subr.mxu0 0.0
      %330 = vmatpush1.msra.mxu0 0.0
      %331 = vmatprep.subr.mxu0 0.0
      %332 = vmatpush1.msra.mxu0 0.0
      %333 = vmatprep.subr.mxu0 0.0
      %334 = vmatpush1.msra.mxu0 0.0
      %335 = vmatprep.subr.mxu0 0.0
      %336 = vmatpush1.msra.mxu0 0.0
      %337 = vmatprep.subr.mxu0 0.0
      %338 = vmatpush1.msra.mxu0 0.0
      %339 = vmatprep.subr.mxu0 0.0
      %340 = vmatpush1.msra.mxu0 0.0
      %341 = vmatprep.subr.mxu0 0.0
      %342 = vmatpush1.msra.mxu0 0.0
      %343 = vmatprep.subr.mxu0 0.0
      %344 = vmatpush1.msra.mxu0 0.0
      %345 = vmatprep.subr.mxu0 0.0
      %346 = vmatpush1.msra.mxu0 0.0
      %347 = vmatprep.subr.mxu0 0.0
      %348 = vmatpush1.msra.mxu0 0.0
      %349 = vmatprep.subr.mxu0 0.0
      %350 = vmatpush1.msra.mxu0 0.0
      %351 = vmatprep.subr.mxu0 0.0
      %352 = vmatpush1.msra.mxu0 0.0
      %353 = vmatprep.subr.mxu0 0.0
      %354 = vmatpush1.msra.mxu0 0.0
      %355 = vmatprep.subr.mxu0 0.0
      %356 = vmatpush1.msra.mxu0 0.0
      %357 = vmatprep.subr.mxu0 0.0
      %358 = vmatpush1.msra.mxu0 0.0
      %359 = vmatprep.subr.mxu0 0.0
      %360 = vmatpush1.msra.mxu0 0.0
      %361 = vmatprep.subr.mxu0 0.0
      %362 = vmatpush1.msra.mxu0 0.0
      %363 = vmatprep.subr.mxu0 0.0
      %364 = vmatpush1.msra.mxu0 0.0
      %365 = vmatprep.subr.mxu0 0.0
      %366 = vmatpush1.msra.mxu0 0.0
      %367 = vmatprep.subr.mxu0 0.0
      %368 = vmatpush1.msra.mxu0 0.0
      %369 = vmatprep.subr.mxu0 0.0
      %370 = vmatpush1.msra.mxu0 0.0
      %371 = vmatprep.mubr.f32.mxu0 0.0
      %372 = vmatmul.mubr.f32.gmra.mrb[0].mxu0 %v302
      %v373 = vpop.f32.mrb[0].mxu0
      %v374 = vadd.f32 %v293, %v373
      %v375 = vpop.f32.mrb[0].mxu0
      %376 = vmatprep.mubr.f32.mxu0 0.0
      %377 = vmatmul.mubr.f32.gmra.mrb[0].mxu0 %v305
      %v378 = vpop.f32.mrb[0].mxu0
      %v379 = vadd.f32 %v298, %v378
      %v380 = vpop.f32.mrb[0].mxu0
      %381 = vdwg.mxu0
      %s382 = sadd.s32 %s196, 1
      %s383 = smul.u32 %s382, 16
      %s384 = scalar_lea.vmem %s184, %s383
      %v385 = vld [vmem:[%s384] sm:$0xff]
      %v386 = vld [vmem:[%s384 + $0x8] sm:$0xff]
      %v388 = vsel %vm219, %v201, 0
      %v391 = vsel %vm219, %v202, 0
      %393 = vmatprep.subr.mxu0 0.0
      %394 = vmatpush1.msra.mxu0 %v385
      %395 = vmatprep.subr.mxu0 0.0
      %396 = vmatpush1.msra.mxu0 %v386
      %397 = vmatprep.subr.mxu0 0.0
      %398 = vmatpush1.msra.mxu0 0.0
      %399 = vmatprep.subr.mxu0 0.0
      %400 = vmatpush1.msra.mxu0 0.0
      %401 = vmatprep.subr.mxu0 0.0
      %402 = vmatpush1.msra.mxu0 0.0
      %403 = vmatprep.subr.mxu0 0.0
      %404 = vmatpush1.msra.mxu0 0.0
      %405 = vmatprep.subr.mxu0 0.0
      %406 = vmatpush1.msra.mxu0 0.0
      %407 = vmatprep.subr.mxu0 0.0
      %408 = vmatpush1.msra.mxu0 0.0
      %409 = vmatprep.subr.mxu0 0.0
      %410 = vmatpush1.msra.mxu0 0.0
      %411 = vmatprep.subr.mxu0 0.0
      %412 = vmatpush1.msra.mxu0 0.0
      %413 = vmatprep.subr.mxu0 0.0
      %414 = vmatpush1.msra.mxu0 0.0
      %415 = vmatprep.subr.mxu0 0.0
      %416 = vmatpush1.msra.mxu0 0.0
      %417 = vmatprep.subr.mxu0 0.0
      %418 = vmatpush1.msra.mxu0 0.0
      %419 = vmatprep.subr.mxu0 0.0
      %420 = vmatpush1.msra.mxu0 0.0
      %421 = vmatprep.subr.mxu0 0.0
      %422 = vmatpush1.msra.mxu0 0.0
      %423 = vmatprep.subr.mxu0 0.0
      %424 = vmatpush1.msra.mxu0 0.0
      %425 = vmatprep.subr.mxu0 0.0
      %426 = vmatpush1.msra.mxu0 0.0
      %427 = vmatprep.subr.mxu0 0.0
      %428 = vmatpush1.msra.mxu0 0.0
      %429 = vmatprep.subr.mxu0 0.0
      %430 = vmatpush1.msra.mxu0 0.0
      %431 = vmatprep.subr.mxu0 0.0
      %432 = vmatpush1.msra.mxu0 0.0
      %433 = vmatprep.subr.mxu0 0.0
      %434 = vmatpush1.msra.mxu0 0.0
      %435 = vmatprep.subr.mxu0 0.0
      %436 = vmatpush1.msra.mxu0 0.0
      %437 = vmatprep.subr.mxu0 0.0
      %438 = vmatpush1.msra.mxu0 0.0
      %439 = vmatprep.subr.mxu0 0.0
      %440 = vmatpush1.msra.mxu0 0.0
      %441 = vmatprep.subr.mxu0 0.0
      %442 = vmatpush1.msra.mxu0 0.0
      %443 = vmatprep.subr.mxu0 0.0
      %444 = vmatpush1.msra.mxu0 0.0
      %445 = vmatprep.subr.mxu0 0.0
      %446 = vmatpush1.msra.mxu0 0.0
      %447 = vmatprep.subr.mxu0 0.0
      %448 = vmatpush1.msra.mxu0 0.0
      %449 = vmatprep.subr.mxu0 0.0
      %450 = vmatpush1.msra.mxu0 0.0
      %451 = vmatprep.subr.mxu0 0.0
      %452 = vmatpush1.msra.mxu0 0.0
      %453 = vmatprep.subr.mxu0 0.0
      %454 = vmatpush1.msra.mxu0 0.0
      %455 = vmatprep.subr.mxu0 0.0
      %456 = vmatpush1.msra.mxu0 0.0
      %457 = vmatprep.mubr.f32.mxu0 0.0
      %458 = vmatmul.mubr.f32.gmra.mrb[0].mxu0 %v388
      %v459 = vpop.f32.mrb[0].mxu0
      %v460 = vadd.f32 0.0, %v459
      %v461 = vpop.f32.mrb[0].mxu0
      %462 = vmatprep.mubr.f32.mxu0 0.0
      %463 = vmatmul.mubr.f32.gmra.mrb[0].mxu0 %v391
      %v464 = vpop.f32.mrb[0].mxu0
      %v465 = vadd.f32 0.0, %v464
      %v466 = vpop.f32.mrb[0].mxu0
      %467 = vdwg.mxu0
      %v468 = vadd.f32 %v374, %v460
      %v469 = vadd.f32 %v379, %v465
      %472 = vrot.lane.b32.xlu0 %v385, 127
      %v473 = vpop.permute.xlu0 %472
      %474 = vrot.lane.b32.xlu0 %v386, 127
      %v475 = vpop.permute.xlu0 %474
      %v479 = vsel %vm219, %v203, 0
      %v482 = vsel %vm219, %v204, 0
      %484 = vmatprep.subr.mxu0 0.0
      %485 = vmatpush1.msra.mxu0 %v473
      %486 = vmatprep.subr.mxu0 0.0
      %487 = vmatpush1.msra.mxu0 %v475
      %488 = vmatprep.subr.mxu0 0.0
      %489 = vmatpush1.msra.mxu0 0.0
      %490 = vmatprep.subr.mxu0 0.0
      %491 = vmatpush1.msra.mxu0 0.0
      %492 = vmatprep.subr.mxu0 0.0
      %493 = vmatpush1.msra.mxu0 0.0
      %494 = vmatprep.subr.mxu0 0.0
      %495 = vmatpush1.msra.mxu0 0.0
      %496 = vmatprep.subr.mxu0 0.0
      %497 = vmatpush1.msra.mxu0 0.0
      %498 = vmatprep.subr.mxu0 0.0
      %499 = vmatpush1.msra.mxu0 0.0
      %500 = vmatprep.subr.mxu0 0.0
      %501 = vmatpush1.msra.mxu0 0.0
      %502 = vmatprep.subr.mxu0 0.0
      %503 = vmatpush1.msra.mxu0 0.0
      %504 = vmatprep.subr.mxu0 0.0
      %505 = vmatpush1.msra.mxu0 0.0
      %506 = vmatprep.subr.mxu0 0.0
      %507 = vmatpush1.msra.mxu0 0.0
      %508 = vmatprep.subr.mxu0 0.0
      %509 = vmatpush1.msra.mxu0 0.0
      %510 = vmatprep.subr.mxu0 0.0
      %511 = vmatpush1.msra.mxu0 0.0
      %512 = vmatprep.subr.mxu0 0.0
      %513 = vmatpush1.msra.mxu0 0.0
      %514 = vmatprep.subr.mxu0 0.0
      %515 = vmatpush1.msra.mxu0 0.0
      %516 = vmatprep.subr.mxu0 0.0
      %517 = vmatpush1.msra.mxu0 0.0
      %518 = vmatprep.subr.mxu0 0.0
      %519 = vmatpush1.msra.mxu0 0.0
      %520 = vmatprep.subr.mxu0 0.0
      %521 = vmatpush1.msra.mxu0 0.0
      %522 = vmatprep.subr.mxu0 0.0
      %523 = vmatpush1.msra.mxu0 0.0
      %524 = vmatprep.subr.mxu0 0.0
      %525 = vmatpush1.msra.mxu0 0.0
      %526 = vmatprep.subr.mxu0 0.0
      %527 = vmatpush1.msra.mxu0 0.0
      %528 = vmatprep.subr.mxu0 0.0
      %529 = vmatpush1.msra.mxu0 0.0
      %530 = vmatprep.subr.mxu0 0.0
      %531 = vmatpush1.msra.mxu0 0.0
      %532 = vmatprep.subr.mxu0 0.0
      %533 = vmatpush1.msra.mxu0 0.0
      %534 = vmatprep.subr.mxu0 0.0
      %535 = vmatpush1.msra.mxu0 0.0
      %536 = vmatprep.subr.mxu0 0.0
      %537 = vmatpush1.msra.mxu0 0.0
      %538 = vmatprep.subr.mxu0 0.0
      %539 = vmatpush1.msra.mxu0 0.0
      %540 = vmatprep.subr.mxu0 0.0
      %541 = vmatpush1.msra.mxu0 0.0
      %542 = vmatprep.subr.mxu0 0.0
      %543 = vmatpush1.msra.mxu0 0.0
      %544 = vmatprep.subr.mxu0 0.0
      %545 = vmatpush1.msra.mxu0 0.0
      %546 = vmatprep.subr.mxu0 0.0
      %547 = vmatpush1.msra.mxu0 0.0
      %548 = vmatprep.mubr.f32.mxu0 0.0
      %549 = vmatmul.mubr.f32.gmra.mrb[0].mxu0 %v479
      %v550 = vpop.f32.mrb[0].mxu0
      %v551 = vadd.f32 0.0, %v550
      %v552 = vpop.f32.mrb[0].mxu0
      %553 = vmatprep.mubr.f32.mxu0 0.0
      %554 = vmatmul.mubr.f32.gmra.mrb[0].mxu0 %v482
      %v555 = vpop.f32.mrb[0].mxu0
      %v556 = vadd.f32 0.0, %v555
      %v557 = vpop.f32.mrb[0].mxu0
      %558 = vdwg.mxu0
      %v559 = vadd.f32 %v468, %v551
      %v560 = vadd.f32 %v469, %v556
      %562 = vset.pattern.permute.xlu0 0
      %563 = vperm.xlu0 %562, %v205
      %v564 = vpop.permute.xlu0 %563
      %567 = vset.pattern.permute.xlu0 0
      %568 = vperm.xlu0 %567, %v206
      %v569 = vpop.permute.xlu0 %568
      %v571 = vadd.f32 %v559, %v564
      %v572 = vadd.f32 %v560, %v569
      %v573 = vmul.f32 %v571, 0.5
      %v574 = vmul.f32 %v572, 0.5
      %v575 = vmul.f32 %v571, 0.70710677
      %v576 = vmul.f32 %v572, 0.70710677
      %v577 = verf.f32.pop %v575
      %v578 = verf.f32.pop %v576
      %v579 = vadd.f32 %v577, 1.0
      %v580 = vadd.f32 %v578, 1.0
      %v581 = vmul.f32 %v573, %v579
      %v582 = vmul.f32 %v574, %v580
      %vm583 = vcmask 64512
      %584 = vst.msk [vmem:[%s194] sm:$0xff] %vm583, %v581
      %585 = vst.msk [vmem:[%s194 + $0x8] sm:$0xff] %vm583, %v582
      %v586 = vld [vmem:[%s384] sm:$0xff]
      %v587 = vld [vmem:[%s384 + $0x8] sm:$0xff]
      %590 = vrot.lane.b32.xlu0 %v586, 127
      %v591 = vpop.permute.xlu0 %590
      %592 = vrot.lane.b32.xlu0 %v587, 127
      %v593 = vpop.permute.xlu0 %592
      %596 = vmatprep.subr.mxu0 0.0
      %597 = vmatpush1.msra.mxu0 %v591
      %598 = vmatprep.subr.mxu0 0.0
      %599 = vmatpush1.msra.mxu0 %v593
      %600 = vmatprep.subr.mxu0 0.0
      %601 = vmatpush1.msra.mxu0 0.0
      %602 = vmatprep.subr.mxu0 0.0
      %603 = vmatpush1.msra.mxu0 0.0
      %604 = vmatprep.subr.mxu0 0.0
      %605 = vmatpush1.msra.mxu0 0.0
      %606 = vmatprep.subr.mxu0 0.0
      %607 = vmatpush1.msra.mxu0 0.0
      %608 = vmatprep.subr.mxu0 0.0
      %609 = vmatpush1.msra.mxu0 0.0
      %610 = vmatprep.subr.mxu0 0.0
      %611 = vmatpush1.msra.mxu0 0.0
      %612 = vmatprep.subr.mxu0 0.0
      %613 = vmatpush1.msra.mxu0 0.0
      %614 = vmatprep.subr.mxu0 0.0
      %615 = vmatpush1.msra.mxu0 0.0
      %616 = vmatprep.subr.mxu0 0.0
      %617 = vmatpush1.msra.mxu0 0.0
      %618 = vmatprep.subr.mxu0 0.0
      %619 = vmatpush1.msra.mxu0 0.0
      %620 = vmatprep.subr.mxu0 0.0
      %621 = vmatpush1.msra.mxu0 0.0
      %622 = vmatprep.subr.mxu0 0.0
      %623 = vmatpush1.msra.mxu0 0.0
      %624 = vmatprep.subr.mxu0 0.0
      %625 = vmatpush1.msra.mxu0 0.0
      %626 = vmatprep.subr.mxu0 0.0
      %627 = vmatpush1.msra.mxu0 0.0
      %628 = vmatprep.subr.mxu0 0.0
      %629 = vmatpush1.msra.mxu0 0.0
      %630 = vmatprep.subr.mxu0 0.0
      %631 = vmatpush1.msra.mxu0 0.0
      %632 = vmatprep.subr.mxu0 0.0
      %633 = vmatpush1.msra.mxu0 0.0
      %634 = vmatprep.subr.mxu0 0.0
      %635 = vmatpush1.msra.mxu0 0.0
      %636 = vmatprep.subr.mxu0 0.0
      %637 = vmatpush1.msra.mxu0 0.0
      %638 = vmatprep.subr.mxu0 0.0
      %639 = vmatpush1.msra.mxu0 0.0
      %640 = vmatprep.subr.mxu0 0.0
      %641 = vmatpush1.msra.mxu0 0.0
      %642 = vmatprep.subr.mxu0 0.0
      %643 = vmatpush1.msra.mxu0 0.0
      %644 = vmatprep.subr.mxu0 0.0
      %645 = vmatpush1.msra.mxu0 0.0
      %646 = vmatprep.subr.mxu0 0.0
      %647 = vmatpush1.msra.mxu0 0.0
      %648 = vmatprep.subr.mxu0 0.0
      %649 = vmatpush1.msra.mxu0 0.0
      %650 = vmatprep.subr.mxu0 0.0
      %651 = vmatpush1.msra.mxu0 0.0
      %652 = vmatprep.subr.mxu0 0.0
      %653 = vmatpush1.msra.mxu0 0.0
      %654 = vmatprep.subr.mxu0 0.0
      %655 = vmatpush1.msra.mxu0 0.0
      %656 = vmatprep.subr.mxu0 0.0
      %657 = vmatpush1.msra.mxu0 0.0
      %658 = vmatprep.subr.mxu0 0.0
      %659 = vmatpush1.msra.mxu0 0.0
      %660 = vmatprep.mubr.f32.mxu0 0.0
      %661 = vmatmul.mubr.f32.gmra.mrb[0].mxu0 %v221
      %v662 = vpop.f32.mrb[0].mxu0
      %v663 = vadd.f32 0.0, %v662
      %v664 = vpop.f32.mrb[0].mxu0
      %665 = vmatprep.mubr.f32.mxu0 0.0
      %666 = vmatmul.mubr.f32.gmra.mrb[0].mxu0 %v224
      %v667 = vpop.f32.mrb[0].mxu0
      %v668 = vadd.f32 0.0, %v667
      %v669 = vpop.f32.mrb[0].mxu0
      %670 = vdwg.mxu0
      %671 = vmatprep.subr.mxu0 0.0
      %672 = vmatpush1.msra.mxu0 %v586
      %673 = vmatprep.subr.mxu0 0.0
      %674 = vmatpush1.msra.mxu0 %v587
      %675 = vmatprep.subr.mxu0 0.0
      %676 = vmatpush1.msra.mxu0 0.0
      %677 = vmatprep.subr.mxu0 0.0
      %678 = vmatpush1.msra.mxu0 0.0
      %679 = vmatprep.subr.mxu0 0.0
      %680 = vmatpush1.msra.mxu0 0.0
      %681 = vmatprep.subr.mxu0 0.0
      %682 = vmatpush1.msra.mxu0 0.0
      %683 = vmatprep.subr.mxu0 0.0
      %684 = vmatpush1.msra.mxu0 0.0
      %685 = vmatprep.subr.mxu0 0.0
      %686 = vmatpush1.msra.mxu0 0.0
      %687 = vmatprep.subr.mxu0 0.0
      %688 = vmatpush1.msra.mxu0 0.0
      %689 = vmatprep.subr.mxu0 0.0
      %690 = vmatpush1.msra.mxu0 0.0
      %691 = vmatprep.subr.mxu0 0.0
      %692 = vmatpush1.msra.mxu0 0.0
      %693 = vmatprep.subr.mxu0 0.0
      %694 = vmatpush1.msra.mxu0 0.0
      %695 = vmatprep.subr.mxu0 0.0
      %696 = vmatpush1.msra.mxu0 0.0
      %697 = vmatprep.subr.mxu0 0.0
      %698 = vmatpush1.msra.mxu0 0.0
      %699 = vmatprep.subr.mxu0 0.0
      %700 = vmatpush1.msra.mxu0 0.0
      %701 = vmatprep.subr.mxu0 0.0
      %702 = vmatpush1.msra.mxu0 0.0
      %703 = vmatprep.subr.mxu0 0.0
      %704 = vmatpush1.msra.mxu0 0.0
      %705 = vmatprep.subr.mxu0 0.0
      %706 = vmatpush1.msra.mxu0 0.0
      %707 = vmatprep.subr.mxu0 0.0
      %708 = vmatpush1.msra.mxu0 0.0
      %709 = vmatprep.subr.mxu0 0.0
      %710 = vmatpush1.msra.mxu0 0.0
      %711 = vmatprep.subr.mxu0 0.0
      %712 = vmatpush1.msra.mxu0 0.0
      %713 = vmatprep.subr.mxu0 0.0
      %714 = vmatpush1.msra.mxu0 0.0
      %715 = vmatprep.subr.mxu0 0.0
      %716 = vmatpush1.msra.mxu0 0.0
      %717 = vmatprep.subr.mxu0 0.0
      %718 = vmatpush1.msra.mxu0 0.0
      %719 = vmatprep.subr.mxu0 0.0
      %720 = vmatpush1.msra.mxu0 0.0
      %721 = vmatprep.subr.mxu0 0.0
      %722 = vmatpush1.msra.mxu0 0.0
      %723 = vmatprep.subr.mxu0 0.0
      %724 = vmatpush1.msra.mxu0 0.0
      %725 = vmatprep.subr.mxu0 0.0
      %726 = vmatpush1.msra.mxu0 0.0
      %727 = vmatprep.subr.mxu0 0.0
      %728 = vmatpush1.msra.mxu0 0.0
      %729 = vmatprep.subr.mxu0 0.0
      %730 = vmatpush1.msra.mxu0 0.0
      %731 = vmatprep.subr.mxu0 0.0
      %732 = vmatpush1.msra.mxu0 0.0
      %733 = vmatprep.subr.mxu0 0.0
      %734 = vmatpush1.msra.mxu0 0.0
      %735 = vmatprep.mubr.f32.mxu0 0.0
      %736 = vmatmul.mubr.f32.gmra.mrb[0].mxu0 %v302
      %v737 = vpop.f32.mrb[0].mxu0
      %v738 = vadd.f32 %v663, %v737
      %v739 = vpop.f32.mrb[0].mxu0
      %740 = vmatprep.mubr.f32.mxu0 0.0
      %741 = vmatmul.mubr.f32.gmra.mrb[0].mxu0 %v305
      %v742 = vpop.f32.mrb[0].mxu0
      %v743 = vadd.f32 %v668, %v742
      %v744 = vpop.f32.mrb[0].mxu0
      %745 = vdwg.mxu0
      %s746 = sadd.s32 %s196, 2
      %s747 = smul.u32 %s746, 16
      %s748 = scalar_lea.vmem %s184, %s747
      %v749 = vld [vmem:[%s748] sm:$0xff]
      %v750 = vld [vmem:[%s748 + $0x8] sm:$0xff]
      %751 = vmatprep.subr.mxu0 0.0
      %752 = vmatpush1.msra.mxu0 %v749
      %753 = vmatprep.subr.mxu0 0.0
      %754 = vmatpush1.msra.mxu0 %v750
      %755 = vmatprep.subr.mxu0 0.0
      %756 = vmatpush1.msra.mxu0 0.0
      %757 = vmatprep.subr.mxu0 0.0
      %758 = vmatpush1.msra.mxu0 0.0
      %759 = vmatprep.subr.mxu0 0.0
      %760 = vmatpush1.msra.mxu0 0.0
      %761 = vmatprep.subr.mxu0 0.0
      %762 = vmatpush1.msra.mxu0 0.0
      %763 = vmatprep.subr.mxu0 0.0
      %764 = vmatpush1.msra.mxu0 0.0
      %765 = vmatprep.subr.mxu0 0.0
      %766 = vmatpush1.msra.mxu0 0.0
      %767 = vmatprep.subr.mxu0 0.0
      %768 = vmatpush1.msra.mxu0 0.0
      %769 = vmatprep.subr.mxu0 0.0
      %770 = vmatpush1.msra.mxu0 0.0
      %771 = vmatprep.subr.mxu0 0.0
      %772 = vmatpush1.msra.mxu0 0.0
      %773 = vmatprep.subr.mxu0 0.0
      %774 = vmatpush1.msra.mxu0 0.0
      %775 = vmatprep.subr.mxu0 0.0
      %776 = vmatpush1.msra.mxu0 0.0
      %777 = vmatprep.subr.mxu0 0.0
      %778 = vmatpush1.msra.mxu0 0.0
      %779 = vmatprep.subr.mxu0 0.0
      %780 = vmatpush1.msra.mxu0 0.0
      %781 = vmatprep.subr.mxu0 0.0
      %782 = vmatpush1.msra.mxu0 0.0
      %783 = vmatprep.subr.mxu0 0.0
      %784 = vmatpush1.msra.mxu0 0.0
      %785 = vmatprep.subr.mxu0 0.0
      %786 = vmatpush1.msra.mxu0 0.0
      %787 = vmatprep.subr.mxu0 0.0
      %788 = vmatpush1.msra.mxu0 0.0
      %789 = vmatprep.subr.mxu0 0.0
      %790 = vmatpush1.msra.mxu0 0.0
      %791 = vmatprep.subr.mxu0 0.0
      %792 = vmatpush1.msra.mxu0 0.0
      %793 = vmatprep.subr.mxu0 0.0
      %794 = vmatpush1.msra.mxu0 0.0
      %795 = vmatprep.subr.mxu0 0.0
      %796 = vmatpush1.msra.mxu0 0.0
      %797 = vmatprep.subr.mxu0 0.0
      %798 = vmatpush1.msra.mxu0 0.0
      %799 = vmatprep.subr.mxu0 0.0
      %800 = vmatpush1.msra.mxu0 0.0
      %801 = vmatprep.subr.mxu0 0.0
      %802 = vmatpush1.msra.mxu0 0.0
      %803 = vmatprep.subr.mxu0 0.0
      %804 = vmatpush1.msra.mxu0 0.0
      %805 = vmatprep.subr.mxu0 0.0
      %806 = vmatpush1.msra.mxu0 0.0
      %807 = vmatprep.subr.mxu0 0.0
      %808 = vmatpush1.msra.mxu0 0.0
      %809 = vmatprep.subr.mxu0 0.0
      %810 = vmatpush1.msra.mxu0 0.0
      %811 = vmatprep.subr.mxu0 0.0
      %812 = vmatpush1.msra.mxu0 0.0
      %813 = vmatprep.subr.mxu0 0.0
      %814 = vmatpush1.msra.mxu0 0.0
      %815 = vmatprep.mubr.f32.mxu0 0.0
      %816 = vmatmul.mubr.f32.gmra.mrb[0].mxu0 %v388
      %v817 = vpop.f32.mrb[0].mxu0
      %v818 = vadd.f32 0.0, %v817
      %v819 = vpop.f32.mrb[0].mxu0
      %820 = vmatprep.mubr.f32.mxu0 0.0
      %821 = vmatmul.mubr.f32.gmra.mrb[0].mxu0 %v391
      %v822 = vpop.f32.mrb[0].mxu0
      %v823 = vadd.f32 0.0, %v822
      %v824 = vpop.f32.mrb[0].mxu0
      %825 = vdwg.mxu0
      %v826 = vadd.f32 %v738, %v818
      %v827 = vadd.f32 %v743, %v823
      %830 = vrot.lane.b32.xlu0 %v749, 127
      %v831 = vpop.permute.xlu0 %830
      %832 = vrot.lane.b32.xlu0 %v750, 127
      %v833 = vpop.permute.xlu0 %832
      %836 = vmatprep.subr.mxu0 0.0
      %837 = vmatpush1.msra.mxu0 %v831
      %838 = vmatprep.subr.mxu0 0.0
      %839 = vmatpush1.msra.mxu0 %v833
      %840 = vmatprep.subr.mxu0 0.0
      %841 = vmatpush1.msra.mxu0 0.0
      %842 = vmatprep.subr.mxu0 0.0
      %843 = vmatpush1.msra.mxu0 0.0
      %844 = vmatprep.subr.mxu0 0.0
      %845 = vmatpush1.msra.mxu0 0.0
      %846 = vmatprep.subr.mxu0 0.0
      %847 = vmatpush1.msra.mxu0 0.0
      %848 = vmatprep.subr.mxu0 0.0
      %849 = vmatpush1.msra.mxu0 0.0
      %850 = vmatprep.subr.mxu0 0.0
      %851 = vmatpush1.msra.mxu0 0.0
      %852 = vmatprep.subr.mxu0 0.0
      %853 = vmatpush1.msra.mxu0 0.0
      %854 = vmatprep.subr.mxu0 0.0
      %855 = vmatpush1.msra.mxu0 0.0
      %856 = vmatprep.subr.mxu0 0.0
      %857 = vmatpush1.msra.mxu0 0.0
      %858 = vmatprep.subr.mxu0 0.0
      %859 = vmatpush1.msra.mxu0 0.0
      %860 = vmatprep.subr.mxu0 0.0
      %861 = vmatpush1.msra.mxu0 0.0
      %862 = vmatprep.subr.mxu0 0.0
      %863 = vmatpush1.msra.mxu0 0.0
      %864 = vmatprep.subr.mxu0 0.0
      %865 = vmatpush1.msra.mxu0 0.0
      %866 = vmatprep.subr.mxu0 0.0
      %867 = vmatpush1.msra.mxu0 0.0
      %868 = vmatprep.subr.mxu0 0.0
      %869 = vmatpush1.msra.mxu0 0.0
      %870 = vmatprep.subr.mxu0 0.0
      %871 = vmatpush1.msra.mxu0 0.0
      %872 = vmatprep.subr.mxu0 0.0
      %873 = vmatpush1.msra.mxu0 0.0
      %874 = vmatprep.subr.mxu0 0.0
      %875 = vmatpush1.msra.mxu0 0.0
      %876 = vmatprep.subr.mxu0 0.0
      %877 = vmatpush1.msra.mxu0 0.0
      %878 = vmatprep.subr.mxu0 0.0
      %879 = vmatpush1.msra.mxu0 0.0
      %880 = vmatprep.subr.mxu0 0.0
      %881 = vmatpush1.msra.mxu0 0.0
      %882 = vmatprep.subr.mxu0 0.0
      %883 = vmatpush1.msra.mxu0 0.0
      %884 = vmatprep.subr.mxu0 0.0
      %885 = vmatpush1.msra.mxu0 0.0
      %886 = vmatprep.subr.mxu0 0.0
      %887 = vmatpush1.msra.mxu0 0.0
      %888 = vmatprep.subr.mxu0 0.0
      %889 = vmatpush1.msra.mxu0 0.0
      %890 = vmatprep.subr.mxu0 0.0
      %891 = vmatpush1.msra.mxu0 0.0
      %892 = vmatprep.subr.mxu0 0.0
      %893 = vmatpush1.msra.mxu0 0.0
      %894 = vmatprep.subr.mxu0 0.0
      %895 = vmatpush1.msra.mxu0 0.0
      %896 = vmatprep.subr.mxu0 0.0
      %897 = vmatpush1.msra.mxu0 0.0
      %898 = vmatprep.subr.mxu0 0.0
      %899 = vmatpush1.msra.mxu0 0.0
      %900 = vmatprep.mubr.f32.mxu0 0.0
      %901 = vmatmul.mubr.f32.gmra.mrb[0].mxu0 %v479
      %v902 = vpop.f32.mrb[0].mxu0
      %v903 = vadd.f32 0.0, %v902
      %v904 = vpop.f32.mrb[0].mxu0
      %905 = vmatprep.mubr.f32.mxu0 0.0
      %906 = vmatmul.mubr.f32.gmra.mrb[0].mxu0 %v482
      %v907 = vpop.f32.mrb[0].mxu0
      %v908 = vadd.f32 0.0, %v907
      %v909 = vpop.f32.mrb[0].mxu0
      %910 = vdwg.mxu0
      %v911 = vadd.f32 %v826, %v903
      %v912 = vadd.f32 %v827, %v908
      %v913 = vadd.f32 %v911, %v564
      %v914 = vadd.f32 %v912, %v569
      %v915 = vmul.f32 %v913, 0.5
      %v916 = vmul.f32 %v914, 0.5
      %v917 = vmul.f32 %v913, 0.70710677
      %v918 = vmul.f32 %v914, 0.70710677
      %v919 = verf.f32.pop %v917
      %v920 = verf.f32.pop %v918
      %v921 = vadd.f32 %v919, 1.0
      %v922 = vadd.f32 %v920, 1.0
      %v923 = vmul.f32 %v915, %v921
      %v924 = vmul.f32 %v916, %v922
      %s925 = scalar_lea.vmem %s194, 16
      %926 = vst.msk [vmem:[%s925] sm:$0xff] %vm583, %v923
      %927 = vst.msk [vmem:[%s925 + $0x8] sm:$0xff] %vm583, %v924
      %v928 = vld [vmem:[%s748] sm:$0xff]
      %v929 = vld [vmem:[%s748 + $0x8] sm:$0xff]
      %932 = vrot.lane.b32.xlu0 %v928, 127
      %v933 = vpop.permute.xlu0 %932
      %934 = vrot.lane.b32.xlu0 %v929, 127
      %v935 = vpop.permute.xlu0 %934
      %938 = vmatprep.subr.mxu0 0.0
      %939 = vmatpush1.msra.mxu0 %v933
      %940 = vmatprep.subr.mxu0 0.0
      %941 = vmatpush1.msra.mxu0 %v935
      %942 = vmatprep.subr.mxu0 0.0
      %943 = vmatpush1.msra.mxu0 0.0
      %944 = vmatprep.subr.mxu0 0.0
      %945 = vmatpush1.msra.mxu0 0.0
      %946 = vmatprep.subr.mxu0 0.0
      %947 = vmatpush1.msra.mxu0 0.0
      %948 = vmatprep.subr.mxu0 0.0
      %949 = vmatpush1.msra.mxu0 0.0
      %950 = vmatprep.subr.mxu0 0.0
      %951 = vmatpush1.msra.mxu0 0.0
      %952 = vmatprep.subr.mxu0 0.0
      %953 = vmatpush1.msra.mxu0 0.0
      %954 = vmatprep.subr.mxu0 0.0
      %955 = vmatpush1.msra.mxu0 0.0
      %956 = vmatprep.subr.mxu0 0.0
      %957 = vmatpush1.msra.mxu0 0.0
      %958 = vmatprep.subr.mxu0 0.0
      %959 = vmatpush1.msra.mxu0 0.0
      %960 = vmatprep.subr.mxu0 0.0
      %961 = vmatpush1.msra.mxu0 0.0
      %962 = vmatprep.subr.mxu0 0.0
      %963 = vmatpush1.msra.mxu0 0.0
      %964 = vmatprep.subr.mxu0 0.0
      %965 = vmatpush1.msra.mxu0 0.0
      %966 = vmatprep.subr.mxu0 0.0
      %967 = vmatpush1.msra.mxu0 0.0
      %968 = vmatprep.subr.mxu0 0.0
      %969 = vmatpush1.msra.mxu0 0.0
      %970 = vmatprep.subr.mxu0 0.0
      %971 = vmatpush1.msra.mxu0 0.0
      %972 = vmatprep.subr.mxu0 0.0
      %973 = vmatpush1.msra.mxu0 0.0
      %974 = vmatprep.subr.mxu0 0.0
      %975 = vmatpush1.msra.mxu0 0.0
      %976 = vmatprep.subr.mxu0 0.0
      %977 = vmatpush1.msra.mxu0 0.0
      %978 = vmatprep.subr.mxu0 0.0
      %979 = vmatpush1.msra.mxu0 0.0
      %980 = vmatprep.subr.mxu0 0.0
      %981 = vmatpush1.msra.mxu0 0.0
      %982 = vmatprep.subr.mxu0 0.0
      %983 = vmatpush1.msra.mxu0 0.0
      %984 = vmatprep.subr.mxu0 0.0
      %985 = vmatpush1.msra.mxu0 0.0
      %986 = vmatprep.subr.mxu0 0.0
      %987 = vmatpush1.msra.mxu0 0.0
      %988 = vmatprep.subr.mxu0 0.0
      %989 = vmatpush1.msra.mxu0 0.0
      %990 = vmatprep.subr.mxu0 0.0
      %991 = vmatpush1.msra.mxu0 0.0
      %992 = vmatprep.subr.mxu0 0.0
      %993 = vmatpush1.msra.mxu0 0.0
      %994 = vmatprep.subr.mxu0 0.0
      %995 = vmatpush1.msra.mxu0 0.0
      %996 = vmatprep.subr.mxu0 0.0
      %997 = vmatpush1.msra.mxu0 0.0
      %998 = vmatprep.subr.mxu0 0.0
      %999 = vmatpush1.msra.mxu0 0.0
      %1000 = vmatprep.subr.mxu0 0.0
      %1001 = vmatpush1.msra.mxu0 0.0
      %1002 = vmatprep.mubr.f32.mxu0 0.0
      %1003 = vmatmul.mubr.f32.gmra.mrb[0].mxu0 %v221
      %v1004 = vpop.f32.mrb[0].mxu0
      %v1005 = vadd.f32 0.0, %v1004
      %v1006 = vpop.f32.mrb[0].mxu0
      %1007 = vmatprep.mubr.f32.mxu0 0.0
      %1008 = vmatmul.mubr.f32.gmra.mrb[0].mxu0 %v224
      %v1009 = vpop.f32.mrb[0].mxu0
      %v1010 = vadd.f32 0.0, %v1009
      %v1011 = vpop.f32.mrb[0].mxu0
      %1012 = vdwg.mxu0
      %1013 = vmatprep.subr.mxu0 0.0
      %1014 = vmatpush1.msra.mxu0 %v928
      %1015 = vmatprep.subr.mxu0 0.0
      %1016 = vmatpush1.msra.mxu0 %v929
      %1017 = vmatprep.subr.mxu0 0.0
      %1018 = vmatpush1.msra.mxu0 0.0
      %1019 = vmatprep.subr.mxu0 0.0
      %1020 = vmatpush1.msra.mxu0 0.0
      %1021 = vmatprep.subr.mxu0 0.0
      %1022 = vmatpush1.msra.mxu0 0.0
      %1023 = vmatprep.subr.mxu0 0.0
      %1024 = vmatpush1.msra.mxu0 0.0
      %1025 = vmatprep.subr.mxu0 0.0
      %1026 = vmatpush1.msra.mxu0 0.0
      %1027 = vmatprep.subr.mxu0 0.0
      %1028 = vmatpush1.msra.mxu0 0.0
      %1029 = vmatprep.subr.mxu0 0.0
      %1030 = vmatpush1.msra.mxu0 0.0
      %1031 = vmatprep.subr.mxu0 0.0
      %1032 = vmatpush1.msra.mxu0 0.0
      %1033 = vmatprep.subr.mxu0 0.0
      %1034 = vmatpush1.msra.mxu0 0.0
      %1035 = vmatprep.subr.mxu0 0.0
      %1036 = vmatpush1.msra.mxu0 0.0
      %1037 = vmatprep.subr.mxu0 0.0
      %1038 = vmatpush1.msra.mxu0 0.0
      %1039 = vmatprep.subr.mxu0 0.0
      %1040 = vmatpush1.msra.mxu0 0.0
      %1041 = vmatprep.subr.mxu0 0.0
      %1042 = vmatpush1.msra.mxu0 0.0
      %1043 = vmatprep.subr.mxu0 0.0
      %1044 = vmatpush1.msra.mxu0 0.0
      %1045 = vmatprep.subr.mxu0 0.0
      %1046 = vmatpush1.msra.mxu0 0.0
      %1047 = vmatprep.subr.mxu0 0.0
      %1048 = vmatpush1.msra.mxu0 0.0
      %1049 = vmatprep.subr.mxu0 0.0
      %1050 = vmatpush1.msra.mxu0 0.0
      %1051 = vmatprep.subr.mxu0 0.0
      %1052 = vmatpush1.msra.mxu0 0.0
      %1053 = vmatprep.subr.mxu0 0.0
      %1054 = vmatpush1.msra.mxu0 0.0
      %1055 = vmatprep.subr.mxu0 0.0
      %1056 = vmatpush1.msra.mxu0 0.0
      %1057 = vmatprep.subr.mxu0 0.0
      %1058 = vmatpush1.msra.mxu0 0.0
      %1059 = vmatprep.subr.mxu0 0.0
      %1060 = vmatpush1.msra.mxu0 0.0
      %1061 = vmatprep.subr.mxu0 0.0
      %1062 = vmatpush1.msra.mxu0 0.0
      %1063 = vmatprep.subr.mxu0 0.0
      %1064 = vmatpush1.msra.mxu0 0.0
      %1065 = vmatprep.subr.mxu0 0.0
      %1066 = vmatpush1.msra.mxu0 0.0
      %1067 = vmatprep.subr.mxu0 0.0
      %1068 = vmatpush1.msra.mxu0 0.0
      %1069 = vmatprep.subr.mxu0 0.0
      %1070 = vmatpush1.msra.mxu0 0.0
      %1071 = vmatprep.subr.mxu0 0.0
      %1072 = vmatpush1.msra.mxu0 0.0
      %1073 = vmatprep.subr.mxu0 0.0
      %1074 = vmatpush1.msra.mxu0 0.0
      %1075 = vmatprep.subr.mxu0 0.0
      %1076 = vmatpush1.msra.mxu0 0.0
      %1077 = vmatprep.mubr.f32.mxu0 0.0
      %1078 = vmatmul.mubr.f32.gmra.mrb[0].mxu0 %v302
      %v1079 = vpop.f32.mrb[0].mxu0
      %v1080 = vadd.f32 %v1005, %v1079
      %v1081 = vpop.f32.mrb[0].mxu0
      %1082 = vmatprep.mubr.f32.mxu0 0.0
      %1083 = vmatmul.mubr.f32.gmra.mrb[0].mxu0 %v305
      %v1084 = vpop.f32.mrb[0].mxu0
      %v1085 = vadd.f32 %v1010, %v1084
      %v1086 = vpop.f32.mrb[0].mxu0
      %1087 = vdwg.mxu0
      %s1088 = sadd.s32 %s196, 3
      %s1089 = smul.u32 %s1088, 16
      %s1090 = scalar_lea.vmem %s184, %s1089
      %v1091 = vld [vmem:[%s1090] sm:$0xff]
      %v1092 = vld [vmem:[%s1090 + $0x8] sm:$0xff]
      %1093 = vmatprep.subr.mxu0 0.0
      %1094 = vmatpush1.msra.mxu0 %v1091
      %1095 = vmatprep.subr.mxu0 0.0
      %1096 = vmatpush1.msra.mxu0 %v1092
      %1097 = vmatprep.subr.mxu0 0.0
      %1098 = vmatpush1.msra.mxu0 0.0
      %1099 = vmatprep.subr.mxu0 0.0
      %1100 = vmatpush1.msra.mxu0 0.0
      %1101 = vmatprep.subr.mxu0 0.0
      %1102 = vmatpush1.msra.mxu0 0.0
      %1103 = vmatprep.subr.mxu0 0.0
      %1104 = vmatpush1.msra.mxu0 0.0
      %1105 = vmatprep.subr.mxu0 0.0
      %1106 = vmatpush1.msra.mxu0 0.0
      %1107 = vmatprep.subr.mxu0 0.0
      %1108 = vmatpush1.msra.mxu0 0.0
      %1109 = vmatprep.subr.mxu0 0.0
      %1110 = vmatpush1.msra.mxu0 0.0
      %1111 = vmatprep.subr.mxu0 0.0
      %1112 = vmatpush1.msra.mxu0 0.0
      %1113 = vmatprep.subr.mxu0 0.0
      %1114 = vmatpush1.msra.mxu0 0.0
      %1115 = vmatprep.subr.mxu0 0.0
      %1116 = vmatpush1.msra.mxu0 0.0
      %1117 = vmatprep.subr.mxu0 0.0
      %1118 = vmatpush1.msra.mxu0 0.0
      %1119 = vmatprep.subr.mxu0 0.0
      %1120 = vmatpush1.msra.mxu0 0.0
      %1121 = vmatprep.subr.mxu0 0.0
      %1122 = vmatpush1.msra.mxu0 0.0
      %1123 = vmatprep.subr.mxu0 0.0
      %1124 = vmatpush1.msra.mxu0 0.0
      %1125 = vmatprep.subr.mxu0 0.0
      %1126 = vmatpush1.msra.mxu0 0.0
      %1127 = vmatprep.subr.mxu0 0.0
      %1128 = vmatpush1.msra.mxu0 0.0
      %1129 = vmatprep.subr.mxu0 0.0
      %1130 = vmatpush1.msra.mxu0 0.0
      %1131 = vmatprep.subr.mxu0 0.0
      %1132 = vmatpush1.msra.mxu0 0.0
      %1133 = vmatprep.subr.mxu0 0.0
      %1134 = vmatpush1.msra.mxu0 0.0
      %1135 = vmatprep.subr.mxu0 0.0
      %1136 = vmatpush1.msra.mxu0 0.0
      %1137 = vmatprep.subr.mxu0 0.0
      %1138 = vmatpush1.msra.mxu0 0.0
      %1139 = vmatprep.subr.mxu0 0.0
      %1140 = vmatpush1.msra.mxu0 0.0
      %1141 = vmatprep.subr.mxu0 0.0
      %1142 = vmatpush1.msra.mxu0 0.0
      %1143 = vmatprep.subr.mxu0 0.0
      %1144 = vmatpush1.msra.mxu0 0.0
      %1145 = vmatprep.subr.mxu0 0.0
      %1146 = vmatpush1.msra.mxu0 0.0
      %1147 = vmatprep.subr.mxu0 0.0
      %1148 = vmatpush1.msra.mxu0 0.0
      %1149 = vmatprep.subr.mxu0 0.0
      %1150 = vmatpush1.msra.mxu0 0.0
      %1151 = vmatprep.subr.mxu0 0.0
      %1152 = vmatpush1.msra.mxu0 0.0
      %1153 = vmatprep.subr.mxu0 0.0
      %1154 = vmatpush1.msra.mxu0 0.0
      %1155 = vmatprep.subr.mxu0 0.0
      %1156 = vmatpush1.msra.mxu0 0.0
      %1157 = vmatprep.mubr.f32.mxu0 0.0
      %1158 = vmatmul.mubr.f32.gmra.mrb[0].mxu0 %v388
      %v1159 = vpop.f32.mrb[0].mxu0
      %v1160 = vadd.f32 0.0, %v1159
      %v1161 = vpop.f32.mrb[0].mxu0
      %1162 = vmatprep.mubr.f32.mxu0 0.0
      %1163 = vmatmul.mubr.f32.gmra.mrb[0].mxu0 %v391
      %v1164 = vpop.f32.mrb[0].mxu0
      %v1165 = vadd.f32 0.0, %v1164
      %v1166 = vpop.f32.mrb[0].mxu0
      %1167 = vdwg.mxu0
      %v1168 = vadd.f32 %v1080, %v1160
      %v1169 = vadd.f32 %v1085, %v1165
      %1172 = vrot.lane.b32.xlu0 %v1091, 127
      %v1173 = vpop.permute.xlu0 %1172
      %1174 = vrot.lane.b32.xlu0 %v1092, 127
      %v1175 = vpop.permute.xlu0 %1174
      %1178 = vmatprep.subr.mxu0 0.0
      %1179 = vmatpush1.msra.mxu0 %v1173
      %1180 = vmatprep.subr.mxu0 0.0
      %1181 = vmatpush1.msra.mxu0 %v1175
      %1182 = vmatprep.subr.mxu0 0.0
      %1183 = vmatpush1.msra.mxu0 0.0
      %1184 = vmatprep.subr.mxu0 0.0
      %1185 = vmatpush1.msra.mxu0 0.0
      %1186 = vmatprep.subr.mxu0 0.0
      %1187 = vmatpush1.msra.mxu0 0.0
      %1188 = vmatprep.subr.mxu0 0.0
      %1189 = vmatpush1.msra.mxu0 0.0
      %1190 = vmatprep.subr.mxu0 0.0
      %1191 = vmatpush1.msra.mxu0 0.0
      %1192 = vmatprep.subr.mxu0 0.0
      %1193 = vmatpush1.msra.mxu0 0.0
      %1194 = vmatprep.subr.mxu0 0.0
      %1195 = vmatpush1.msra.mxu0 0.0
      %1196 = vmatprep.subr.mxu0 0.0
      %1197 = vmatpush1.msra.mxu0 0.0
      %1198 = vmatprep.subr.mxu0 0.0
      %1199 = vmatpush1.msra.mxu0 0.0
      %1200 = vmatprep.subr.mxu0 0.0
      %1201 = vmatpush1.msra.mxu0 0.0
      %1202 = vmatprep.subr.mxu0 0.0
      %1203 = vmatpush1.msra.mxu0 0.0
      %1204 = vmatprep.subr.mxu0 0.0
      %1205 = vmatpush1.msra.mxu0 0.0
      %1206 = vmatprep.subr.mxu0 0.0
      %1207 = vmatpush1.msra.mxu0 0.0
      %1208 = vmatprep.subr.mxu0 0.0
      %1209 = vmatpush1.msra.mxu0 0.0
      %1210 = vmatprep.subr.mxu0 0.0
      %1211 = vmatpush1.msra.mxu0 0.0
      %1212 = vmatprep.subr.mxu0 0.0
      %1213 = vmatpush1.msra.mxu0 0.0
      %1214 = vmatprep.subr.mxu0 0.0
      %1215 = vmatpush1.msra.mxu0 0.0
      %1216 = vmatprep.subr.mxu0 0.0
      %1217 = vmatpush1.msra.mxu0 0.0
      %1218 = vmatprep.subr.mxu0 0.0
      %1219 = vmatpush1.msra.mxu0 0.0
      %1220 = vmatprep.subr.mxu0 0.0
      %1221 = vmatpush1.msra.mxu0 0.0
      %1222 = vmatprep.subr.mxu0 0.0
      %1223 = vmatpush1.msra.mxu0 0.0
      %1224 = vmatprep.subr.mxu0 0.0
      %1225 = vmatpush1.msra.mxu0 0.0
      %1226 = vmatprep.subr.mxu0 0.0
      %1227 = vmatpush1.msra.mxu0 0.0
      %1228 = vmatprep.subr.mxu0 0.0
      %1229 = vmatpush1.msra.mxu0 0.0
      %1230 = vmatprep.subr.mxu0 0.0
      %1231 = vmatpush1.msra.mxu0 0.0
      %1232 = vmatprep.subr.mxu0 0.0
      %1233 = vmatpush1.msra.mxu0 0.0
      %1234 = vmatprep.subr.mxu0 0.0
      %1235 = vmatpush1.msra.mxu0 0.0
      %1236 = vmatprep.subr.mxu0 0.0
      %1237 = vmatpush1.msra.mxu0 0.0
      %1238 = vmatprep.subr.mxu0 0.0
      %1239 = vmatpush1.msra.mxu0 0.0
      %1240 = vmatprep.subr.mxu0 0.0
      %1241 = vmatpush1.msra.mxu0 0.0
      %1242 = vmatprep.mubr.f32.mxu0 0.0
      %1243 = vmatmul.mubr.f32.gmra.mrb[0].mxu0 %v479
      %v1244 = vpop.f32.mrb[0].mxu0
      %v1245 = vadd.f32 0.0, %v1244
      %v1246 = vpop.f32.mrb[0].mxu0
      %1247 = vmatprep.mubr.f32.mxu0 0.0
      %1248 = vmatmul.mubr.f32.gmra.mrb[0].mxu0 %v482
      %v1249 = vpop.f32.mrb[0].mxu0
      %v1250 = vadd.f32 0.0, %v1249
      %v1251 = vpop.f32.mrb[0].mxu0
      %1252 = vdwg.mxu0
      %v1253 = vadd.f32 %v1168, %v1245
      %v1254 = vadd.f32 %v1169, %v1250
      %v1255 = vadd.f32 %v1253, %v564
      %v1256 = vadd.f32 %v1254, %v569
      %v1257 = vmul.f32 %v1255, 0.5
      %v1258 = vmul.f32 %v1256, 0.5
      %v1259 = vmul.f32 %v1255, 0.70710677
      %v1260 = vmul.f32 %v1256, 0.70710677
      %v1261 = verf.f32.pop %v1259
      %v1262 = verf.f32.pop %v1260
      %v1263 = vadd.f32 %v1261, 1.0
      %v1264 = vadd.f32 %v1262, 1.0
      %v1265 = vmul.f32 %v1257, %v1263
      %v1266 = vmul.f32 %v1258, %v1264
      %s1267 = scalar_lea.vmem %s194, 32
      %1268 = vst.msk [vmem:[%s1267] sm:$0xff] %vm583, %v1265
      %1269 = vst.msk [vmem:[%s1267 + $0x8] sm:$0xff] %vm583, %v1266
      %v1270 = vld [vmem:[%s1090] sm:$0xff]
      %v1271 = vld [vmem:[%s1090 + $0x8] sm:$0xff]
      %1274 = vrot.lane.b32.xlu0 %v1270, 127
      %v1275 = vpop.permute.xlu0 %1274
      %1276 = vrot.lane.b32.xlu0 %v1271, 127
      %v1277 = vpop.permute.xlu0 %1276
      %1280 = vmatprep.subr.mxu0 0.0
      %1281 = vmatpush1.msra.mxu0 %v1275
      %1282 = vmatprep.subr.mxu0 0.0
      %1283 = vmatpush1.msra.mxu0 %v1277
      %1284 = vmatprep.subr.mxu0 0.0
      %1285 = vmatpush1.msra.mxu0 0.0
      %1286 = vmatprep.subr.mxu0 0.0
      %1287 = vmatpush1.msra.mxu0 0.0
      %1288 = vmatprep.subr.mxu0 0.0
      %1289 = vmatpush1.msra.mxu0 0.0
      %1290 = vmatprep.subr.mxu0 0.0
      %1291 = vmatpush1.msra.mxu0 0.0
      %1292 = vmatprep.subr.mxu0 0.0
      %1293 = vmatpush1.msra.mxu0 0.0
      %1294 = vmatprep.subr.mxu0 0.0
      %1295 = vmatpush1.msra.mxu0 0.0
      %1296 = vmatprep.subr.mxu0 0.0
      %1297 = vmatpush1.msra.mxu0 0.0
      %1298 = vmatprep.subr.mxu0 0.0
      %1299 = vmatpush1.msra.mxu0 0.0
      %1300 = vmatprep.subr.mxu0 0.0
      %1301 = vmatpush1.msra.mxu0 0.0
      %1302 = vmatprep.subr.mxu0 0.0
      %1303 = vmatpush1.msra.mxu0 0.0
      %1304 = vmatprep.subr.mxu0 0.0
      %1305 = vmatpush1.msra.mxu0 0.0
      %1306 = vmatprep.subr.mxu0 0.0
      %1307 = vmatpush1.msra.mxu0 0.0
      %1308 = vmatprep.subr.mxu0 0.0
      %1309 = vmatpush1.msra.mxu0 0.0
      %1310 = vmatprep.subr.mxu0 0.0
      %1311 = vmatpush1.msra.mxu0 0.0
      %1312 = vmatprep.subr.mxu0 0.0
      %1313 = vmatpush1.msra.mxu0 0.0
      %1314 = vmatprep.subr.mxu0 0.0
      %1315 = vmatpush1.msra.mxu0 0.0
      %1316 = vmatprep.subr.mxu0 0.0
      %1317 = vmatpush1.msra.mxu0 0.0
      %1318 = vmatprep.subr.mxu0 0.0
      %1319 = vmatpush1.msra.mxu0 0.0
      %1320 = vmatprep.subr.mxu0 0.0
      %1321 = vmatpush1.msra.mxu0 0.0
      %1322 = vmatprep.subr.mxu0 0.0
      %1323 = vmatpush1.msra.mxu0 0.0
      %1324 = vmatprep.subr.mxu0 0.0
      %1325 = vmatpush1.msra.mxu0 0.0
      %1326 = vmatprep.subr.mxu0 0.0
      %1327 = vmatpush1.msra.mxu0 0.0
      %1328 = vmatprep.subr.mxu0 0.0
      %1329 = vmatpush1.msra.mxu0 0.0
      %1330 = vmatprep.subr.mxu0 0.0
      %1331 = vmatpush1.msra.mxu0 0.0
      %1332 = vmatprep.subr.mxu0 0.0
      %1333 = vmatpush1.msra.mxu0 0.0
      %1334 = vmatprep.subr.mxu0 0.0
      %1335 = vmatpush1.msra.mxu0 0.0
      %1336 = vmatprep.subr.mxu0 0.0
      %1337 = vmatpush1.msra.mxu0 0.0
      %1338 = vmatprep.subr.mxu0 0.0
      %1339 = vmatpush1.msra.mxu0 0.0
      %1340 = vmatprep.subr.mxu0 0.0
      %1341 = vmatpush1.msra.mxu0 0.0
      %1342 = vmatprep.subr.mxu0 0.0
      %1343 = vmatpush1.msra.mxu0 0.0
      %1344 = vmatprep.mubr.f32.mxu0 0.0
      %1345 = vmatmul.mubr.f32.gmra.mrb[0].mxu0 %v221
      %v1346 = vpop.f32.mrb[0].mxu0
      %v1347 = vadd.f32 0.0, %v1346
      %v1348 = vpop.f32.mrb[0].mxu0
      %1349 = vmatprep.mubr.f32.mxu0 0.0
      %1350 = vmatmul.mubr.f32.gmra.mrb[0].mxu0 %v224
      %v1351 = vpop.f32.mrb[0].mxu0
      %v1352 = vadd.f32 0.0, %v1351
      %v1353 = vpop.f32.mrb[0].mxu0
      %1354 = vdwg.mxu0
      %1355 = vmatprep.subr.mxu0 0.0
      %1356 = vmatpush1.msra.mxu0 %v1270
      %1357 = vmatprep.subr.mxu0 0.0
      %1358 = vmatpush1.msra.mxu0 %v1271
      %1359 = vmatprep.subr.mxu0 0.0
      %1360 = vmatpush1.msra.mxu0 0.0
      %1361 = vmatprep.subr.mxu0 0.0
      %1362 = vmatpush1.msra.mxu0 0.0
      %1363 = vmatprep.subr.mxu0 0.0
      %1364 = vmatpush1.msra.mxu0 0.0
      %1365 = vmatprep.subr.mxu0 0.0
      %1366 = vmatpush1.msra.mxu0 0.0
      %1367 = vmatprep.subr.mxu0 0.0
      %1368 = vmatpush1.msra.mxu0 0.0
      %1369 = vmatprep.subr.mxu0 0.0
      %1370 = vmatpush1.msra.mxu0 0.0
      %1371 = vmatprep.subr.mxu0 0.0
      %1372 = vmatpush1.msra.mxu0 0.0
      %1373 = vmatprep.subr.mxu0 0.0
      %1374 = vmatpush1.msra.mxu0 0.0
      %1375 = vmatprep.subr.mxu0 0.0
      %1376 = vmatpush1.msra.mxu0 0.0
      %1377 = vmatprep.subr.mxu0 0.0
      %1378 = vmatpush1.msra.mxu0 0.0
      %1379 = vmatprep.subr.mxu0 0.0
      %1380 = vmatpush1.msra.mxu0 0.0
      %1381 = vmatprep.subr.mxu0 0.0
      %1382 = vmatpush1.msra.mxu0 0.0
      %1383 = vmatprep.subr.mxu0 0.0
      %1384 = vmatpush1.msra.mxu0 0.0
      %1385 = vmatprep.subr.mxu0 0.0
      %1386 = vmatpush1.msra.mxu0 0.0
      %1387 = vmatprep.subr.mxu0 0.0
      %1388 = vmatpush1.msra.mxu0 0.0
      %1389 = vmatprep.subr.mxu0 0.0
      %1390 = vmatpush1.msra.mxu0 0.0
      %1391 = vmatprep.subr.mxu0 0.0
      %1392 = vmatpush1.msra.mxu0 0.0
      %1393 = vmatprep.subr.mxu0 0.0
      %1394 = vmatpush1.msra.mxu0 0.0
      %1395 = vmatprep.subr.mxu0 0.0
      %1396 = vmatpush1.msra.mxu0 0.0
      %1397 = vmatprep.subr.mxu0 0.0
      %1398 = vmatpush1.msra.mxu0 0.0
      %1399 = vmatprep.subr.mxu0 0.0
      %1400 = vmatpush1.msra.mxu0 0.0
      %1401 = vmatprep.subr.mxu0 0.0
      %1402 = vmatpush1.msra.mxu0 0.0
      %1403 = vmatprep.subr.mxu0 0.0
      %1404 = vmatpush1.msra.mxu0 0.0
      %1405 = vmatprep.subr.mxu0 0.0
      %1406 = vmatpush1.msra.mxu0 0.0
      %1407 = vmatprep.subr.mxu0 0.0
      %1408 = vmatpush1.msra.mxu0 0.0
      %1409 = vmatprep.subr.mxu0 0.0
      %1410 = vmatpush1.msra.mxu0 0.0
      %1411 = vmatprep.subr.mxu0 0.0
      %1412 = vmatpush1.msra.mxu0 0.0
      %1413 = vmatprep.subr.mxu0 0.0
      %1414 = vmatpush1.msra.mxu0 0.0
      %1415 = vmatprep.subr.mxu0 0.0
      %1416 = vmatpush1.msra.mxu0 0.0
      %1417 = vmatprep.subr.mxu0 0.0
      %1418 = vmatpush1.msra.mxu0 0.0
      %1419 = vmatprep.mubr.f32.mxu0 0.0
      %1420 = vmatmul.mubr.f32.gmra.mrb[0].mxu0 %v302
      %v1421 = vpop.f32.mrb[0].mxu0
      %v1422 = vadd.f32 %v1347, %v1421
      %v1423 = vpop.f32.mrb[0].mxu0
      %1424 = vmatprep.mubr.f32.mxu0 0.0
      %1425 = vmatmul.mubr.f32.gmra.mrb[0].mxu0 %v305
      %v1426 = vpop.f32.mrb[0].mxu0
      %v1427 = vadd.f32 %v1352, %v1426
      %v1428 = vpop.f32.mrb[0].mxu0
      %1429 = vdwg.mxu0
      %s1430 = sadd.s32 %s196, 4
      %s1431 = smul.u32 %s1430, 16
      %s1432 = scalar_lea.vmem %s184, %s1431
      %v1433 = vld [vmem:[%s1432] sm:$0xff]
      %v1434 = vld [vmem:[%s1432 + $0x8] sm:$0xff]
      %1435 = vmatprep.subr.mxu0 0.0
      %1436 = vmatpush1.msra.mxu0 %v1433
      %1437 = vmatprep.subr.mxu0 0.0
      %1438 = vmatpush1.msra.mxu0 %v1434
      %1439 = vmatprep.subr.mxu0 0.0
      %1440 = vmatpush1.msra.mxu0 0.0
      %1441 = vmatprep.subr.mxu0 0.0
      %1442 = vmatpush1.msra.mxu0 0.0
      %1443 = vmatprep.subr.mxu0 0.0
      %1444 = vmatpush1.msra.mxu0 0.0
      %1445 = vmatprep.subr.mxu0 0.0
      %1446 = vmatpush1.msra.mxu0 0.0
      %1447 = vmatprep.subr.mxu0 0.0
      %1448 = vmatpush1.msra.mxu0 0.0
      %1449 = vmatprep.subr.mxu0 0.0
      %1450 = vmatpush1.msra.mxu0 0.0
      %1451 = vmatprep.subr.mxu0 0.0
      %1452 = vmatpush1.msra.mxu0 0.0
      %1453 = vmatprep.subr.mxu0 0.0
      %1454 = vmatpush1.msra.mxu0 0.0
      %1455 = vmatprep.subr.mxu0 0.0
      %1456 = vmatpush1.msra.mxu0 0.0
      %1457 = vmatprep.subr.mxu0 0.0
      %1458 = vmatpush1.msra.mxu0 0.0
      %1459 = vmatprep.subr.mxu0 0.0
      %1460 = vmatpush1.msra.mxu0 0.0
      %1461 = vmatprep.subr.mxu0 0.0
      %1462 = vmatpush1.msra.mxu0 0.0
      %1463 = vmatprep.subr.mxu0 0.0
      %1464 = vmatpush1.msra.mxu0 0.0
      %1465 = vmatprep.subr.mxu0 0.0
      %1466 = vmatpush1.msra.mxu0 0.0
      %1467 = vmatprep.subr.mxu0 0.0
      %1468 = vmatpush1.msra.mxu0 0.0
      %1469 = vmatprep.subr.mxu0 0.0
      %1470 = vmatpush1.msra.mxu0 0.0
      %1471 = vmatprep.subr.mxu0 0.0
      %1472 = vmatpush1.msra.mxu0 0.0
      %1473 = vmatprep.subr.mxu0 0.0
      %1474 = vmatpush1.msra.mxu0 0.0
      %1475 = vmatprep.subr.mxu0 0.0
      %1476 = vmatpush1.msra.mxu0 0.0
      %1477 = vmatprep.subr.mxu0 0.0
      %1478 = vmatpush1.msra.mxu0 0.0
      %1479 = vmatprep.subr.mxu0 0.0
      %1480 = vmatpush1.msra.mxu0 0.0
      %1481 = vmatprep.subr.mxu0 0.0
      %1482 = vmatpush1.msra.mxu0 0.0
      %1483 = vmatprep.subr.mxu0 0.0
      %1484 = vmatpush1.msra.mxu0 0.0
      %1485 = vmatprep.subr.mxu0 0.0
      %1486 = vmatpush1.msra.mxu0 0.0
      %1487 = vmatprep.subr.mxu0 0.0
      %1488 = vmatpush1.msra.mxu0 0.0
      %1489 = vmatprep.subr.mxu0 0.0
      %1490 = vmatpush1.msra.mxu0 0.0
      %1491 = vmatprep.subr.mxu0 0.0
      %1492 = vmatpush1.msra.mxu0 0.0
      %1493 = vmatprep.subr.mxu0 0.0
      %1494 = vmatpush1.msra.mxu0 0.0
      %1495 = vmatprep.subr.mxu0 0.0
      %1496 = vmatpush1.msra.mxu0 0.0
      %1497 = vmatprep.subr.mxu0 0.0
      %1498 = vmatpush1.msra.mxu0 0.0
      %1499 = vmatprep.mubr.f32.mxu0 0.0
      %1500 = vmatmul.mubr.f32.gmra.mrb[0].mxu0 %v388
      %v1501 = vpop.f32.mrb[0].mxu0
      %v1502 = vadd.f32 0.0, %v1501
      %v1503 = vpop.f32.mrb[0].mxu0
      %1504 = vmatprep.mubr.f32.mxu0 0.0
      %1505 = vmatmul.mubr.f32.gmra.mrb[0].mxu0 %v391
      %v1506 = vpop.f32.mrb[0].mxu0
      %v1507 = vadd.f32 0.0, %v1506
      %v1508 = vpop.f32.mrb[0].mxu0
      %1509 = vdwg.mxu0
      %v1510 = vadd.f32 %v1422, %v1502
      %v1511 = vadd.f32 %v1427, %v1507
      %1514 = vrot.lane.b32.xlu0 %v1433, 127
      %v1515 = vpop.permute.xlu0 %1514
      %1516 = vrot.lane.b32.xlu0 %v1434, 127
      %v1517 = vpop.permute.xlu0 %1516
      %1520 = vmatprep.subr.mxu0 0.0
      %1521 = vmatpush1.msra.mxu0 %v1515
      %1522 = vmatprep.subr.mxu0 0.0
      %1523 = vmatpush1.msra.mxu0 %v1517
      %1524 = vmatprep.subr.mxu0 0.0
      %1525 = vmatpush1.msra.mxu0 0.0
      %1526 = vmatprep.subr.mxu0 0.0
      %1527 = vmatpush1.msra.mxu0 0.0
      %1528 = vmatprep.subr.mxu0 0.0
      %1529 = vmatpush1.msra.mxu0 0.0
      %1530 = vmatprep.subr.mxu0 0.0
      %1531 = vmatpush1.msra.mxu0 0.0
      %1532 = vmatprep.subr.mxu0 0.0
      %1533 = vmatpush1.msra.mxu0 0.0
      %1534 = vmatprep.subr.mxu0 0.0
      %1535 = vmatpush1.msra.mxu0 0.0
      %1536 = vmatprep.subr.mxu0 0.0
      %1537 = vmatpush1.msra.mxu0 0.0
      %1538 = vmatprep.subr.mxu0 0.0
      %1539 = vmatpush1.msra.mxu0 0.0
      %1540 = vmatprep.subr.mxu0 0.0
      %1541 = vmatpush1.msra.mxu0 0.0
      %1542 = vmatprep.subr.mxu0 0.0
      %1543 = vmatpush1.msra.mxu0 0.0
      %1544 = vmatprep.subr.mxu0 0.0
      %1545 = vmatpush1.msra.mxu0 0.0
      %1546 = vmatprep.subr.mxu0 0.0
      %1547 = vmatpush1.msra.mxu0 0.0
      %1548 = vmatprep.subr.mxu0 0.0
      %1549 = vmatpush1.msra.mxu0 0.0
      %1550 = vmatprep.subr.mxu0 0.0
      %1551 = vmatpush1.msra.mxu0 0.0
      %1552 = vmatprep.subr.mxu0 0.0
      %1553 = vmatpush1.msra.mxu0 0.0
      %1554 = vmatprep.subr.mxu0 0.0
      %1555 = vmatpush1.msra.mxu0 0.0
      %1556 = vmatprep.subr.mxu0 0.0
      %1557 = vmatpush1.msra.mxu0 0.0
      %1558 = vmatprep.subr.mxu0 0.0
      %1559 = vmatpush1.msra.mxu0 0.0
      %1560 = vmatprep.subr.mxu0 0.0
      %1561 = vmatpush1.msra.mxu0 0.0
      %1562 = vmatprep.subr.mxu0 0.0
      %1563 = vmatpush1.msra.mxu0 0.0
      %1564 = vmatprep.subr.mxu0 0.0
      %1565 = vmatpush1.msra.mxu0 0.0
      %1566 = vmatprep.subr.mxu0 0.0
      %1567 = vmatpush1.msra.mxu0 0.0
      %1568 = vmatprep.subr.mxu0 0.0
      %1569 = vmatpush1.msra.mxu0 0.0
      %1570 = vmatprep.subr.mxu0 0.0
      %1571 = vmatpush1.msra.mxu0 0.0
      %1572 = vmatprep.subr.mxu0 0.0
      %1573 = vmatpush1.msra.mxu0 0.0
      %1574 = vmatprep.subr.mxu0 0.0
      %1575 = vmatpush1.msra.mxu0 0.0
      %1576 = vmatprep.subr.mxu0 0.0
      %1577 = vmatpush1.msra.mxu0 0.0
      %1578 = vmatprep.subr.mxu0 0.0
      %1579 = vmatpush1.msra.mxu0 0.0
      %1580 = vmatprep.subr.mxu0 0.0
      %1581 = vmatpush1.msra.mxu0 0.0
      %1582 = vmatprep.subr.mxu0 0.0
      %1583 = vmatpush1.msra.mxu0 0.0
      %1584 = vmatprep.mubr.f32.mxu0 0.0
      %1585 = vmatmul.mubr.f32.gmra.mrb[0].mxu0 %v479
      %v1586 = vpop.f32.mrb[0].mxu0
      %v1587 = vadd.f32 0.0, %v1586
      %v1588 = vpop.f32.mrb[0].mxu0
      %1589 = vmatprep.mubr.f32.mxu0 0.0
      %1590 = vmatmul.mubr.f32.gmra.mrb[0].mxu0 %v482
      %v1591 = vpop.f32.mrb[0].mxu0
      %v1592 = vadd.f32 0.0, %v1591
      %v1593 = vpop.f32.mrb[0].mxu0
      %1594 = vdwg.mxu0
      %v1595 = vadd.f32 %v1510, %v1587
      %v1596 = vadd.f32 %v1511, %v1592
      %v1597 = vadd.f32 %v1595, %v564
      %v1598 = vadd.f32 %v1596, %v569
      %v1599 = vmul.f32 %v1597, 0.5
      %v1600 = vmul.f32 %v1598, 0.5
      %v1601 = vmul.f32 %v1597, 0.70710677
      %v1602 = vmul.f32 %v1598, 0.70710677
      %v1603 = verf.f32.pop %v1601
      %v1604 = verf.f32.pop %v1602
      %v1605 = vadd.f32 %v1603, 1.0
      %v1606 = vadd.f32 %v1604, 1.0
      %v1607 = vmul.f32 %v1599, %v1605
      %v1608 = vmul.f32 %v1600, %v1606
      %s1609 = scalar_lea.vmem %s194, 48
      %1610 = vst.msk [vmem:[%s1609] sm:$0xff] %vm583, %v1607
      %1611 = vst.msk [vmem:[%s1609 + $0x8] sm:$0xff] %vm583, %v1608
      %v1612 = vld [vmem:[%s1432] sm:$0xff]
      %v1613 = vld [vmem:[%s1432 + $0x8] sm:$0xff]
      %1616 = vrot.lane.b32.xlu0 %v1612, 127
      %v1617 = vpop.permute.xlu0 %1616
      %1618 = vrot.lane.b32.xlu0 %v1613, 127
      %v1619 = vpop.permute.xlu0 %1618
      %1622 = vmatprep.subr.mxu0 0.0
      %1623 = vmatpush1.msra.mxu0 %v1617
      %1624 = vmatprep.subr.mxu0 0.0
      %1625 = vmatpush1.msra.mxu0 %v1619
      %1626 = vmatprep.subr.mxu0 0.0
      %1627 = vmatpush1.msra.mxu0 0.0
      %1628 = vmatprep.subr.mxu0 0.0
      %1629 = vmatpush1.msra.mxu0 0.0
      %1630 = vmatprep.subr.mxu0 0.0
      %1631 = vmatpush1.msra.mxu0 0.0
      %1632 = vmatprep.subr.mxu0 0.0
      %1633 = vmatpush1.msra.mxu0 0.0
      %1634 = vmatprep.subr.mxu0 0.0
      %1635 = vmatpush1.msra.mxu0 0.0
      %1636 = vmatprep.subr.mxu0 0.0
      %1637 = vmatpush1.msra.mxu0 0.0
      %1638 = vmatprep.subr.mxu0 0.0
      %1639 = vmatpush1.msra.mxu0 0.0
      %1640 = vmatprep.subr.mxu0 0.0
      %1641 = vmatpush1.msra.mxu0 0.0
      %1642 = vmatprep.subr.mxu0 0.0
      %1643 = vmatpush1.msra.mxu0 0.0
      %1644 = vmatprep.subr.mxu0 0.0
      %1645 = vmatpush1.msra.mxu0 0.0
      %1646 = vmatprep.subr.mxu0 0.0
      %1647 = vmatpush1.msra.mxu0 0.0
      %1648 = vmatprep.subr.mxu0 0.0
      %1649 = vmatpush1.msra.mxu0 0.0
      %1650 = vmatprep.subr.mxu0 0.0
      %1651 = vmatpush1.msra.mxu0 0.0
      %1652 = vmatprep.subr.mxu0 0.0
      %1653 = vmatpush1.msra.mxu0 0.0
      %1654 = vmatprep.subr.mxu0 0.0
      %1655 = vmatpush1.msra.mxu0 0.0
      %1656 = vmatprep.subr.mxu0 0.0
      %1657 = vmatpush1.msra.mxu0 0.0
      %1658 = vmatprep.subr.mxu0 0.0
      %1659 = vmatpush1.msra.mxu0 0.0
      %1660 = vmatprep.subr.mxu0 0.0
      %1661 = vmatpush1.msra.mxu0 0.0
      %1662 = vmatprep.subr.mxu0 0.0
      %1663 = vmatpush1.msra.mxu0 0.0
      %1664 = vmatprep.subr.mxu0 0.0
      %1665 = vmatpush1.msra.mxu0 0.0
      %1666 = vmatprep.subr.mxu0 0.0
      %1667 = vmatpush1.msra.mxu0 0.0
      %1668 = vmatprep.subr.mxu0 0.0
      %1669 = vmatpush1.msra.mxu0 0.0
      %1670 = vmatprep.subr.mxu0 0.0
      %1671 = vmatpush1.msra.mxu0 0.0
      %1672 = vmatprep.subr.mxu0 0.0
      %1673 = vmatpush1.msra.mxu0 0.0
      %1674 = vmatprep.subr.mxu0 0.0
      %1675 = vmatpush1.msra.mxu0 0.0
      %1676 = vmatprep.subr.mxu0 0.0
      %1677 = vmatpush1.msra.mxu0 0.0
      %1678 = vmatprep.subr.mxu0 0.0
      %1679 = vmatpush1.msra.mxu0 0.0
      %1680 = vmatprep.subr.mxu0 0.0
      %1681 = vmatpush1.msra.mxu0 0.0
      %1682 = vmatprep.subr.mxu0 0.0
      %1683 = vmatpush1.msra.mxu0 0.0
      %1684 = vmatprep.subr.mxu0 0.0
      %1685 = vmatpush1.msra.mxu0 0.0
      %1686 = vmatprep.mubr.f32.mxu0 0.0
      %1687 = vmatmul.mubr.f32.gmra.mrb[0].mxu0 %v221
      %v1688 = vpop.f32.mrb[0].mxu0
      %v1689 = vadd.f32 0.0, %v1688
      %v1690 = vpop.f32.mrb[0].mxu0
      %1691 = vmatprep.mubr.f32.mxu0 0.0
      %1692 = vmatmul.mubr.f32.gmra.mrb[0].mxu0 %v224
      %v1693 = vpop.f32.mrb[0].mxu0
      %v1694 = vadd.f32 0.0, %v1693
      %v1695 = vpop.f32.mrb[0].mxu0
      %1696 = vdwg.mxu0
      %1697 = vmatprep.subr.mxu0 0.0
      %1698 = vmatpush1.msra.mxu0 %v1612
      %1699 = vmatprep.subr.mxu0 0.0
      %1700 = vmatpush1.msra.mxu0 %v1613
      %1701 = vmatprep.subr.mxu0 0.0
      %1702 = vmatpush1.msra.mxu0 0.0
      %1703 = vmatprep.subr.mxu0 0.0
      %1704 = vmatpush1.msra.mxu0 0.0
      %1705 = vmatprep.subr.mxu0 0.0
      %1706 = vmatpush1.msra.mxu0 0.0
      %1707 = vmatprep.subr.mxu0 0.0
      %1708 = vmatpush1.msra.mxu0 0.0
      %1709 = vmatprep.subr.mxu0 0.0
      %1710 = vmatpush1.msra.mxu0 0.0
      %1711 = vmatprep.subr.mxu0 0.0
      %1712 = vmatpush1.msra.mxu0 0.0
      %1713 = vmatprep.subr.mxu0 0.0
      %1714 = vmatpush1.msra.mxu0 0.0
      %1715 = vmatprep.subr.mxu0 0.0
      %1716 = vmatpush1.msra.mxu0 0.0
      %1717 = vmatprep.subr.mxu0 0.0
      %1718 = vmatpush1.msra.mxu0 0.0
      %1719 = vmatprep.subr.mxu0 0.0
      %1720 = vmatpush1.msra.mxu0 0.0
      %1721 = vmatprep.subr.mxu0 0.0
      %1722 = vmatpush1.msra.mxu0 0.0
      %1723 = vmatprep.subr.mxu0 0.0
      %1724 = vmatpush1.msra.mxu0 0.0
      %1725 = vmatprep.subr.mxu0 0.0
      %1726 = vmatpush1.msra.mxu0 0.0
      %1727 = vmatprep.subr.mxu0 0.0
      %1728 = vmatpush1.msra.mxu0 0.0
      %1729 = vmatprep.subr.mxu0 0.0
      %1730 = vmatpush1.msra.mxu0 0.0
      %1731 = vmatprep.subr.mxu0 0.0
      %1732 = vmatpush1.msra.mxu0 0.0
      %1733 = vmatprep.subr.mxu0 0.0
      %1734 = vmatpush1.msra.mxu0 0.0
      %1735 = vmatprep.subr.mxu0 0.0
      %1736 = vmatpush1.msra.mxu0 0.0
      %1737 = vmatprep.subr.mxu0 0.0
      %1738 = vmatpush1.msra.mxu0 0.0
      %1739 = vmatprep.subr.mxu0 0.0
      %1740 = vmatpush1.msra.mxu0 0.0
      %1741 = vmatprep.subr.mxu0 0.0
      %1742 = vmatpush1.msra.mxu0 0.0
      %1743 = vmatprep.subr.mxu0 0.0
      %1744 = vmatpush1.msra.mxu0 0.0
      %1745 = vmatprep.subr.mxu0 0.0
      %1746 = vmatpush1.msra.mxu0 0.0
      %1747 = vmatprep.subr.mxu0 0.0
      %1748 = vmatpush1.msra.mxu0 0.0
      %1749 = vmatprep.subr.mxu0 0.0
      %1750 = vmatpush1.msra.mxu0 0.0
      %1751 = vmatprep.subr.mxu0 0.0
      %1752 = vmatpush1.msra.mxu0 0.0
      %1753 = vmatprep.subr.mxu0 0.0
      %1754 = vmatpush1.msra.mxu0 0.0
      %1755 = vmatprep.subr.mxu0 0.0
      %1756 = vmatpush1.msra.mxu0 0.0
      %1757 = vmatprep.subr.mxu0 0.0
      %1758 = vmatpush1.msra.mxu0 0.0
      %1759 = vmatprep.subr.mxu0 0.0
      %1760 = vmatpush1.msra.mxu0 0.0
      %1761 = vmatprep.mubr.f32.mxu0 0.0
      %1762 = vmatmul.mubr.f32.gmra.mrb[0].mxu0 %v302
      %v1763 = vpop.f32.mrb[0].mxu0
      %v1764 = vadd.f32 %v1689, %v1763
      %v1765 = vpop.f32.mrb[0].mxu0
      %1766 = vmatprep.mubr.f32.mxu0 0.0
      %1767 = vmatmul.mubr.f32.gmra.mrb[0].mxu0 %v305
      %v1768 = vpop.f32.mrb[0].mxu0
      %v1769 = vadd.f32 %v1694, %v1768
      %v1770 = vpop.f32.mrb[0].mxu0
      %1771 = vdwg.mxu0
      %s1772 = sadd.s32 %s196, 5
      %s1773 = smul.u32 %s1772, 16
      %s1774 = scalar_lea.vmem %s184, %s1773
      %v1775 = vld [vmem:[%s1774] sm:$0xff]
      %v1776 = vld [vmem:[%s1774 + $0x8] sm:$0xff]
      %1777 = vmatprep.subr.mxu0 0.0
      %1778 = vmatpush1.msra.mxu0 %v1775
      %1779 = vmatprep.subr.mxu0 0.0
      %1780 = vmatpush1.msra.mxu0 %v1776
      %1781 = vmatprep.subr.mxu0 0.0
      %1782 = vmatpush1.msra.mxu0 0.0
      %1783 = vmatprep.subr.mxu0 0.0
      %1784 = vmatpush1.msra.mxu0 0.0
      %1785 = vmatprep.subr.mxu0 0.0
      %1786 = vmatpush1.msra.mxu0 0.0
      %1787 = vmatprep.subr.mxu0 0.0
      %1788 = vmatpush1.msra.mxu0 0.0
      %1789 = vmatprep.subr.mxu0 0.0
      %1790 = vmatpush1.msra.mxu0 0.0
      %1791 = vmatprep.subr.mxu0 0.0
      %1792 = vmatpush1.msra.mxu0 0.0
      %1793 = vmatprep.subr.mxu0 0.0
      %1794 = vmatpush1.msra.mxu0 0.0
      %1795 = vmatprep.subr.mxu0 0.0
      %1796 = vmatpush1.msra.mxu0 0.0
      %1797 = vmatprep.subr.mxu0 0.0
      %1798 = vmatpush1.msra.mxu0 0.0
      %1799 = vmatprep.subr.mxu0 0.0
      %1800 = vmatpush1.msra.mxu0 0.0
      %1801 = vmatprep.subr.mxu0 0.0
      %1802 = vmatpush1.msra.mxu0 0.0
      %1803 = vmatprep.subr.mxu0 0.0
      %1804 = vmatpush1.msra.mxu0 0.0
      %1805 = vmatprep.subr.mxu0 0.0
      %1806 = vmatpush1.msra.mxu0 0.0
      %1807 = vmatprep.subr.mxu0 0.0
      %1808 = vmatpush1.msra.mxu0 0.0
      %1809 = vmatprep.subr.mxu0 0.0
      %1810 = vmatpush1.msra.mxu0 0.0
      %1811 = vmatprep.subr.mxu0 0.0
      %1812 = vmatpush1.msra.mxu0 0.0
      %1813 = vmatprep.subr.mxu0 0.0
      %1814 = vmatpush1.msra.mxu0 0.0
      %1815 = vmatprep.subr.mxu0 0.0
      %1816 = vmatpush1.msra.mxu0 0.0
      %1817 = vmatprep.subr.mxu0 0.0
      %1818 = vmatpush1.msra.mxu0 0.0
      %1819 = vmatprep.subr.mxu0 0.0
      %1820 = vmatpush1.msra.mxu0 0.0
      %1821 = vmatprep.subr.mxu0 0.0
      %1822 = vmatpush1.msra.mxu0 0.0
      %1823 = vmatprep.subr.mxu0 0.0
      %1824 = vmatpush1.msra.mxu0 0.0
      %1825 = vmatprep.subr.mxu0 0.0
      %1826 = vmatpush1.msra.mxu0 0.0
      %1827 = vmatprep.subr.mxu0 0.0
      %1828 = vmatpush1.msra.mxu0 0.0
      %1829 = vmatprep.subr.mxu0 0.0
      %1830 = vmatpush1.msra.mxu0 0.0
      %1831 = vmatprep.subr.mxu0 0.0
      %1832 = vmatpush1.msra.mxu0 0.0
      %1833 = vmatprep.subr.mxu0 0.0
      %1834 = vmatpush1.msra.mxu0 0.0
      %1835 = vmatprep.subr.mxu0 0.0
      %1836 = vmatpush1.msra.mxu0 0.0
      %1837 = vmatprep.subr.mxu0 0.0
      %1838 = vmatpush1.msra.mxu0 0.0
      %1839 = vmatprep.subr.mxu0 0.0
      %1840 = vmatpush1.msra.mxu0 0.0
      %1841 = vmatprep.mubr.f32.mxu0 0.0
      %1842 = vmatmul.mubr.f32.gmra.mrb[0].mxu0 %v388
      %v1843 = vpop.f32.mrb[0].mxu0
      %v1844 = vadd.f32 0.0, %v1843
      %v1845 = vpop.f32.mrb[0].mxu0
      %1846 = vmatprep.mubr.f32.mxu0 0.0
      %1847 = vmatmul.mubr.f32.gmra.mrb[0].mxu0 %v391
      %v1848 = vpop.f32.mrb[0].mxu0
      %v1849 = vadd.f32 0.0, %v1848
      %v1850 = vpop.f32.mrb[0].mxu0
      %1851 = vdwg.mxu0
      %v1852 = vadd.f32 %v1764, %v1844
      %v1853 = vadd.f32 %v1769, %v1849
      %1856 = vrot.lane.b32.xlu0 %v1775, 127
      %v1857 = vpop.permute.xlu0 %1856
      %1858 = vrot.lane.b32.xlu0 %v1776, 127
      %v1859 = vpop.permute.xlu0 %1858
      %1862 = vmatprep.subr.mxu0 0.0
      %1863 = vmatpush1.msra.mxu0 %v1857
      %1864 = vmatprep.subr.mxu0 0.0
      %1865 = vmatpush1.msra.mxu0 %v1859
      %1866 = vmatprep.subr.mxu0 0.0
      %1867 = vmatpush1.msra.mxu0 0.0
      %1868 = vmatprep.subr.mxu0 0.0
      %1869 = vmatpush1.msra.mxu0 0.0
      %1870 = vmatprep.subr.mxu0 0.0
      %1871 = vmatpush1.msra.mxu0 0.0
      %1872 = vmatprep.subr.mxu0 0.0
      %1873 = vmatpush1.msra.mxu0 0.0
      %1874 = vmatprep.subr.mxu0 0.0
      %1875 = vmatpush1.msra.mxu0 0.0
      %1876 = vmatprep.subr.mxu0 0.0
      %1877 = vmatpush1.msra.mxu0 0.0
      %1878 = vmatprep.subr.mxu0 0.0
      %1879 = vmatpush1.msra.mxu0 0.0
      %1880 = vmatprep.subr.mxu0 0.0
      %1881 = vmatpush1.msra.mxu0 0.0
      %1882 = vmatprep.subr.mxu0 0.0
      %1883 = vmatpush1.msra.mxu0 0.0
      %1884 = vmatprep.subr.mxu0 0.0
      %1885 = vmatpush1.msra.mxu0 0.0
      %1886 = vmatprep.subr.mxu0 0.0
      %1887 = vmatpush1.msra.mxu0 0.0
      %1888 = vmatprep.subr.mxu0 0.0
      %1889 = vmatpush1.msra.mxu0 0.0
      %1890 = vmatprep.subr.mxu0 0.0
      %1891 = vmatpush1.msra.mxu0 0.0
      %1892 = vmatprep.subr.mxu0 0.0
      %1893 = vmatpush1.msra.mxu0 0.0
      %1894 = vmatprep.subr.mxu0 0.0
      %1895 = vmatpush1.msra.mxu0 0.0
      %1896 = vmatprep.subr.mxu0 0.0
      %1897 = vmatpush1.msra.mxu0 0.0
      %1898 = vmatprep.subr.mxu0 0.0
      %1899 = vmatpush1.msra.mxu0 0.0
      %1900 = vmatprep.subr.mxu0 0.0
      %1901 = vmatpush1.msra.mxu0 0.0
      %1902 = vmatprep.subr.mxu0 0.0
      %1903 = vmatpush1.msra.mxu0 0.0
      %1904 = vmatprep.subr.mxu0 0.0
      %1905 = vmatpush1.msra.mxu0 0.0
      %1906 = vmatprep.subr.mxu0 0.0
      %1907 = vmatpush1.msra.mxu0 0.0
      %1908 = vmatprep.subr.mxu0 0.0
      %1909 = vmatpush1.msra.mxu0 0.0
      %1910 = vmatprep.subr.mxu0 0.0
      %1911 = vmatpush1.msra.mxu0 0.0
      %1912 = vmatprep.subr.mxu0 0.0
      %1913 = vmatpush1.msra.mxu0 0.0
      %1914 = vmatprep.subr.mxu0 0.0
      %1915 = vmatpush1.msra.mxu0 0.0
      %1916 = vmatprep.subr.mxu0 0.0
      %1917 = vmatpush1.msra.mxu0 0.0
      %1918 = vmatprep.subr.mxu0 0.0
      %1919 = vmatpush1.msra.mxu0 0.0
      %1920 = vmatprep.subr.mxu0 0.0
      %1921 = vmatpush1.msra.mxu0 0.0
      %1922 = vmatprep.subr.mxu0 0.0
      %1923 = vmatpush1.msra.mxu0 0.0
      %1924 = vmatprep.subr.mxu0 0.0
      %1925 = vmatpush1.msra.mxu0 0.0
      %1926 = vmatprep.mubr.f32.mxu0 0.0
      %1927 = vmatmul.mubr.f32.gmra.mrb[0].mxu0 %v479
      %v1928 = vpop.f32.mrb[0].mxu0
      %v1929 = vadd.f32 0.0, %v1928
      %v1930 = vpop.f32.mrb[0].mxu0
      %1931 = vmatprep.mubr.f32.mxu0 0.0
      %1932 = vmatmul.mubr.f32.gmra.mrb[0].mxu0 %v482
      %v1933 = vpop.f32.mrb[0].mxu0
      %v1934 = vadd.f32 0.0, %v1933
      %v1935 = vpop.f32.mrb[0].mxu0
      %1936 = vdwg.mxu0
      %v1937 = vadd.f32 %v1852, %v1929
      %v1938 = vadd.f32 %v1853, %v1934
      %v1939 = vadd.f32 %v1937, %v564
      %v1940 = vadd.f32 %v1938, %v569
      %v1941 = vmul.f32 %v1939, 0.5
      %v1942 = vmul.f32 %v1940, 0.5
      %v1943 = vmul.f32 %v1939, 0.70710677
      %v1944 = vmul.f32 %v1940, 0.70710677
      %v1945 = verf.f32.pop %v1943
      %v1946 = verf.f32.pop %v1944
      %v1947 = vadd.f32 %v1945, 1.0
      %v1948 = vadd.f32 %v1946, 1.0
      %v1949 = vmul.f32 %v1941, %v1947
      %v1950 = vmul.f32 %v1942, %v1948
      %s1951 = scalar_lea.vmem %s194, 64
      %1952 = vst.msk [vmem:[%s1951] sm:$0xff] %vm583, %v1949
      %1953 = vst.msk [vmem:[%s1951 + $0x8] sm:$0xff] %vm583, %v1950
      %v1954 = vld [vmem:[%s1774] sm:$0xff]
      %v1955 = vld [vmem:[%s1774 + $0x8] sm:$0xff]
      %1958 = vrot.lane.b32.xlu0 %v1954, 127
      %v1959 = vpop.permute.xlu0 %1958
      %1960 = vrot.lane.b32.xlu0 %v1955, 127
      %v1961 = vpop.permute.xlu0 %1960
      %1964 = vmatprep.subr.mxu0 0.0
      %1965 = vmatpush1.msra.mxu0 %v1959
      %1966 = vmatprep.subr.mxu0 0.0
      %1967 = vmatpush1.msra.mxu0 %v1961
      %1968 = vmatprep.subr.mxu0 0.0
      %1969 = vmatpush1.msra.mxu0 0.0
      %1970 = vmatprep.subr.mxu0 0.0
      %1971 = vmatpush1.msra.mxu0 0.0
      %1972 = vmatprep.subr.mxu0 0.0
      %1973 = vmatpush1.msra.mxu0 0.0
      %1974 = vmatprep.subr.mxu0 0.0
      %1975 = vmatpush1.msra.mxu0 0.0
      %1976 = vmatprep.subr.mxu0 0.0
      %1977 = vmatpush1.msra.mxu0 0.0
      %1978 = vmatprep.subr.mxu0 0.0
      %1979 = vmatpush1.msra.mxu0 0.0
      %1980 = vmatprep.subr.mxu0 0.0
      %1981 = vmatpush1.msra.mxu0 0.0
      %1982 = vmatprep.subr.mxu0 0.0
      %1983 = vmatpush1.msra.mxu0 0.0
      %1984 = vmatprep.subr.mxu0 0.0
      %1985 = vmatpush1.msra.mxu0 0.0
      %1986 = vmatprep.subr.mxu0 0.0
      %1987 = vmatpush1.msra.mxu0 0.0
      %1988 = vmatprep.subr.mxu0 0.0
      %1989 = vmatpush1.msra.mxu0 0.0
      %1990 = vmatprep.subr.mxu0 0.0
      %1991 = vmatpush1.msra.mxu0 0.0
      %1992 = vmatprep.subr.mxu0 0.0
      %1993 = vmatpush1.msra.mxu0 0.0
      %1994 = vmatprep.subr.mxu0 0.0
      %1995 = vmatpush1.msra.mxu0 0.0
      %1996 = vmatprep.subr.mxu0 0.0
      %1997 = vmatpush1.msra.mxu0 0.0
      %1998 = vmatprep.subr.mxu0 0.0
      %1999 = vmatpush1.msra.mxu0 0.0
      %2000 = vmatprep.subr.mxu0 0.0
      %2001 = vmatpush1.msra.mxu0 0.0
      %2002 = vmatprep.subr.mxu0 0.0
      %2003 = vmatpush1.msra.mxu0 0.0
      %2004 = vmatprep.subr.mxu0 0.0
      %2005 = vmatpush1.msra.mxu0 0.0
      %2006 = vmatprep.subr.mxu0 0.0
      %2007 = vmatpush1.msra.mxu0 0.0
      %2008 = vmatprep.subr.mxu0 0.0
      %2009 = vmatpush1.msra.mxu0 0.0
      %2010 = vmatprep.subr.mxu0 0.0
      %2011 = vmatpush1.msra.mxu0 0.0
      %2012 = vmatprep.subr.mxu0 0.0
      %2013 = vmatpush1.msra.mxu0 0.0
      %2014 = vmatprep.subr.mxu0 0.0
      %2015 = vmatpush1.msra.mxu0 0.0
      %2016 = vmatprep.subr.mxu0 0.0
      %2017 = vmatpush1.msra.mxu0 0.0
      %2018 = vmatprep.subr.mxu0 0.0
      %2019 = vmatpush1.msra.mxu0 0.0
      %2020 = vmatprep.subr.mxu0 0.0
      %2021 = vmatpush1.msra.mxu0 0.0
      %2022 = vmatprep.subr.mxu0 0.0
      %2023 = vmatpush1.msra.mxu0 0.0
      %2024 = vmatprep.subr.mxu0 0.0
      %2025 = vmatpush1.msra.mxu0 0.0
      %2026 = vmatprep.subr.mxu0 0.0
      %2027 = vmatpush1.msra.mxu0 0.0
      %2028 = vmatprep.mubr.f32.mxu0 0.0
      %2029 = vmatmul.mubr.f32.gmra.mrb[0].mxu0 %v221
      %v2030 = vpop.f32.mrb[0].mxu0
      %v2031 = vadd.f32 0.0, %v2030
      %v2032 = vpop.f32.mrb[0].mxu0
      %2033 = vmatprep.mubr.f32.mxu0 0.0
      %2034 = vmatmul.mubr.f32.gmra.mrb[0].mxu0 %v224
      %v2035 = vpop.f32.mrb[0].mxu0
      %v2036 = vadd.f32 0.0, %v2035
      %v2037 = vpop.f32.mrb[0].mxu0
      %2038 = vdwg.mxu0
      %2039 = vmatprep.subr.mxu0 0.0
      %2040 = vmatpush1.msra.mxu0 %v1954
      %2041 = vmatprep.subr.mxu0 0.0
      %2042 = vmatpush1.msra.mxu0 %v1955
      %2043 = vmatprep.subr.mxu0 0.0
      %2044 = vmatpush1.msra.mxu0 0.0
      %2045 = vmatprep.subr.mxu0 0.0
      %2046 = vmatpush1.msra.mxu0 0.0
      %2047 = vmatprep.subr.mxu0 0.0
      %2048 = vmatpush1.msra.mxu0 0.0
      %2049 = vmatprep.subr.mxu0 0.0
      %2050 = vmatpush1.msra.mxu0 0.0
      %2051 = vmatprep.subr.mxu0 0.0
      %2052 = vmatpush1.msra.mxu0 0.0
      %2053 = vmatprep.subr.mxu0 0.0
      %2054 = vmatpush1.msra.mxu0 0.0
      %2055 = vmatprep.subr.mxu0 0.0
      %2056 = vmatpush1.msra.mxu0 0.0
      %2057 = vmatprep.subr.mxu0 0.0
      %2058 = vmatpush1.msra.mxu0 0.0
      %2059 = vmatprep.subr.mxu0 0.0
      %2060 = vmatpush1.msra.mxu0 0.0
      %2061 = vmatprep.subr.mxu0 0.0
      %2062 = vmatpush1.msra.mxu0 0.0
      %2063 = vmatprep.subr.mxu0 0.0
      %2064 = vmatpush1.msra.mxu0 0.0
      %2065 = vmatprep.subr.mxu0 0.0
      %2066 = vmatpush1.msra.mxu0 0.0
      %2067 = vmatprep.subr.mxu0 0.0
      %2068 = vmatpush1.msra.mxu0 0.0
      %2069 = vmatprep.subr.mxu0 0.0
      %2070 = vmatpush1.msra.mxu0 0.0
      %2071 = vmatprep.subr.mxu0 0.0
      %2072 = vmatpush1.msra.mxu0 0.0
      %2073 = vmatprep.subr.mxu0 0.0
      %2074 = vmatpush1.msra.mxu0 0.0
      %2075 = vmatprep.subr.mxu0 0.0
      %2076 = vmatpush1.msra.mxu0 0.0
      %2077 = vmatprep.subr.mxu0 0.0
      %2078 = vmatpush1.msra.mxu0 0.0
      %2079 = vmatprep.subr.mxu0 0.0
      %2080 = vmatpush1.msra.mxu0 0.0
      %2081 = vmatprep.subr.mxu0 0.0
      %2082 = vmatpush1.msra.mxu0 0.0
      %2083 = vmatprep.subr.mxu0 0.0
      %2084 = vmatpush1.msra.mxu0 0.0
      %2085 = vmatprep.subr.mxu0 0.0
      %2086 = vmatpush1.msra.mxu0 0.0
      %2087 = vmatprep.subr.mxu0 0.0
      %2088 = vmatpush1.msra.mxu0 0.0
      %2089 = vmatprep.subr.mxu0 0.0
      %2090 = vmatpush1.msra.mxu0 0.0
      %2091 = vmatprep.subr.mxu0 0.0
      %2092 = vmatpush1.msra.mxu0 0.0
      %2093 = vmatprep.subr.mxu0 0.0
      %2094 = vmatpush1.msra.mxu0 0.0
      %2095 = vmatprep.subr.mxu0 0.0
      %2096 = vmatpush1.msra.mxu0 0.0
      %2097 = vmatprep.subr.mxu0 0.0
      %2098 = vmatpush1.msra.mxu0 0.0
      %2099 = vmatprep.subr.mxu0 0.0
      %2100 = vmatpush1.msra.mxu0 0.0
      %2101 = vmatprep.subr.mxu0 0.0
      %2102 = vmatpush1.msra.mxu0 0.0
      %2103 = vmatprep.mubr.f32.mxu0 0.0
      %2104 = vmatmul.mubr.f32.gmra.mrb[0].mxu0 %v302
      %v2105 = vpop.f32.mrb[0].mxu0
      %v2106 = vadd.f32 %v2031, %v2105
      %v2107 = vpop.f32.mrb[0].mxu0
      %2108 = vmatprep.mubr.f32.mxu0 0.0
      %2109 = vmatmul.mubr.f32.gmra.mrb[0].mxu0 %v305
      %v2110 = vpop.f32.mrb[0].mxu0
      %v2111 = vadd.f32 %v2036, %v2110
      %v2112 = vpop.f32.mrb[0].mxu0
      %2113 = vdwg.mxu0
      %s2114 = sadd.s32 %s196, 6
      %s2115 = smul.u32 %s2114, 16
      %s2116 = scalar_lea.vmem %s184, %s2115
      %v2117 = vld [vmem:[%s2116] sm:$0xff]
      %v2118 = vld [vmem:[%s2116 + $0x8] sm:$0xff]
      %2119 = vmatprep.subr.mxu0 0.0
      %2120 = vmatpush1.msra.mxu0 %v2117
      %2121 = vmatprep.subr.mxu0 0.0
      %2122 = vmatpush1.msra.mxu0 %v2118
      %2123 = vmatprep.subr.mxu0 0.0
      %2124 = vmatpush1.msra.mxu0 0.0
      %2125 = vmatprep.subr.mxu0 0.0
      %2126 = vmatpush1.msra.mxu0 0.0
      %2127 = vmatprep.subr.mxu0 0.0
      %2128 = vmatpush1.msra.mxu0 0.0
      %2129 = vmatprep.subr.mxu0 0.0
      %2130 = vmatpush1.msra.mxu0 0.0
      %2131 = vmatprep.subr.mxu0 0.0
      %2132 = vmatpush1.msra.mxu0 0.0
      %2133 = vmatprep.subr.mxu0 0.0
      %2134 = vmatpush1.msra.mxu0 0.0
      %2135 = vmatprep.subr.mxu0 0.0
      %2136 = vmatpush1.msra.mxu0 0.0
      %2137 = vmatprep.subr.mxu0 0.0
      %2138 = vmatpush1.msra.mxu0 0.0
      %2139 = vmatprep.subr.mxu0 0.0
      %2140 = vmatpush1.msra.mxu0 0.0
      %2141 = vmatprep.subr.mxu0 0.0
      %2142 = vmatpush1.msra.mxu0 0.0
      %2143 = vmatprep.subr.mxu0 0.0
      %2144 = vmatpush1.msra.mxu0 0.0
      %2145 = vmatprep.subr.mxu0 0.0
      %2146 = vmatpush1.msra.mxu0 0.0
      %2147 = vmatprep.subr.mxu0 0.0
      %2148 = vmatpush1.msra.mxu0 0.0
      %2149 = vmatprep.subr.mxu0 0.0
      %2150 = vmatpush1.msra.mxu0 0.0
      %2151 = vmatprep.subr.mxu0 0.0
      %2152 = vmatpush1.msra.mxu0 0.0
      %2153 = vmatprep.subr.mxu0 0.0
      %2154 = vmatpush1.msra.mxu0 0.0
      %2155 = vmatprep.subr.mxu0 0.0
      %2156 = vmatpush1.msra.mxu0 0.0
      %2157 = vmatprep.subr.mxu0 0.0
      %2158 = vmatpush1.msra.mxu0 0.0
      %2159 = vmatprep.subr.mxu0 0.0
      %2160 = vmatpush1.msra.mxu0 0.0
      %2161 = vmatprep.subr.mxu0 0.0
      %2162 = vmatpush1.msra.mxu0 0.0
      %2163 = vmatprep.subr.mxu0 0.0
      %2164 = vmatpush1.msra.mxu0 0.0
      %2165 = vmatprep.subr.mxu0 0.0
      %2166 = vmatpush1.msra.mxu0 0.0
      %2167 = vmatprep.subr.mxu0 0.0
      %2168 = vmatpush1.msra.mxu0 0.0
      %2169 = vmatprep.subr.mxu0 0.0
      %2170 = vmatpush1.msra.mxu0 0.0
      %2171 = vmatprep.subr.mxu0 0.0
      %2172 = vmatpush1.msra.mxu0 0.0
      %2173 = vmatprep.subr.mxu0 0.0
      %2174 = vmatpush1.msra.mxu0 0.0
      %2175 = vmatprep.subr.mxu0 0.0
      %2176 = vmatpush1.msra.mxu0 0.0
      %2177 = vmatprep.subr.mxu0 0.0
      %2178 = vmatpush1.msra.mxu0 0.0
      %2179 = vmatprep.subr.mxu0 0.0
      %2180 = vmatpush1.msra.mxu0 0.0
      %2181 = vmatprep.subr.mxu0 0.0
      %2182 = vmatpush1.msra.mxu0 0.0
      %2183 = vmatprep.mubr.f32.mxu0 0.0
      %2184 = vmatmul.mubr.f32.gmra.mrb[0].mxu0 %v388
      %v2185 = vpop.f32.mrb[0].mxu0
      %v2186 = vadd.f32 0.0, %v2185
      %v2187 = vpop.f32.mrb[0].mxu0
      %2188 = vmatprep.mubr.f32.mxu0 0.0
      %2189 = vmatmul.mubr.f32.gmra.mrb[0].mxu0 %v391
      %v2190 = vpop.f32.mrb[0].mxu0
      %v2191 = vadd.f32 0.0, %v2190
      %v2192 = vpop.f32.mrb[0].mxu0
      %2193 = vdwg.mxu0
      %v2194 = vadd.f32 %v2106, %v2186
      %v2195 = vadd.f32 %v2111, %v2191
      %2198 = vrot.lane.b32.xlu0 %v2117, 127
      %v2199 = vpop.permute.xlu0 %2198
      %2200 = vrot.lane.b32.xlu0 %v2118, 127
      %v2201 = vpop.permute.xlu0 %2200
      %2204 = vmatprep.subr.mxu0 0.0
      %2205 = vmatpush1.msra.mxu0 %v2199
      %2206 = vmatprep.subr.mxu0 0.0
      %2207 = vmatpush1.msra.mxu0 %v2201
      %2208 = vmatprep.subr.mxu0 0.0
      %2209 = vmatpush1.msra.mxu0 0.0
      %2210 = vmatprep.subr.mxu0 0.0
      %2211 = vmatpush1.msra.mxu0 0.0
      %2212 = vmatprep.subr.mxu0 0.0
      %2213 = vmatpush1.msra.mxu0 0.0
      %2214 = vmatprep.subr.mxu0 0.0
      %2215 = vmatpush1.msra.mxu0 0.0
      %2216 = vmatprep.subr.mxu0 0.0
      %2217 = vmatpush1.msra.mxu0 0.0
      %2218 = vmatprep.subr.mxu0 0.0
      %2219 = vmatpush1.msra.mxu0 0.0
      %2220 = vmatprep.subr.mxu0 0.0
      %2221 = vmatpush1.msra.mxu0 0.0
      %2222 = vmatprep.subr.mxu0 0.0
      %2223 = vmatpush1.msra.mxu0 0.0
      %2224 = vmatprep.subr.mxu0 0.0
      %2225 = vmatpush1.msra.mxu0 0.0
      %2226 = vmatprep.subr.mxu0 0.0
      %2227 = vmatpush1.msra.mxu0 0.0
      %2228 = vmatprep.subr.mxu0 0.0
      %2229 = vmatpush1.msra.mxu0 0.0
      %2230 = vmatprep.subr.mxu0 0.0
      %2231 = vmatpush1.msra.mxu0 0.0
      %2232 = vmatprep.subr.mxu0 0.0
      %2233 = vmatpush1.msra.mxu0 0.0
      %2234 = vmatprep.subr.mxu0 0.0
      %2235 = vmatpush1.msra.mxu0 0.0
      %2236 = vmatprep.subr.mxu0 0.0
      %2237 = vmatpush1.msra.mxu0 0.0
      %2238 = vmatprep.subr.mxu0 0.0
      %2239 = vmatpush1.msra.mxu0 0.0
      %2240 = vmatprep.subr.mxu0 0.0
      %2241 = vmatpush1.msra.mxu0 0.0
      %2242 = vmatprep.subr.mxu0 0.0
      %2243 = vmatpush1.msra.mxu0 0.0
      %2244 = vmatprep.subr.mxu0 0.0
      %2245 = vmatpush1.msra.mxu0 0.0
      %2246 = vmatprep.subr.mxu0 0.0
      %2247 = vmatpush1.msra.mxu0 0.0
      %2248 = vmatprep.subr.mxu0 0.0
      %2249 = vmatpush1.msra.mxu0 0.0
      %2250 = vmatprep.subr.mxu0 0.0
      %2251 = vmatpush1.msra.mxu0 0.0
      %2252 = vmatprep.subr.mxu0 0.0
      %2253 = vmatpush1.msra.mxu0 0.0
      %2254 = vmatprep.subr.mxu0 0.0
      %2255 = vmatpush1.msra.mxu0 0.0
      %2256 = vmatprep.subr.mxu0 0.0
      %2257 = vmatpush1.msra.mxu0 0.0
      %2258 = vmatprep.subr.mxu0 0.0
      %2259 = vmatpush1.msra.mxu0 0.0
      %2260 = vmatprep.subr.mxu0 0.0
      %2261 = vmatpush1.msra.mxu0 0.0
      %2262 = vmatprep.subr.mxu0 0.0
      %2263 = vmatpush1.msra.mxu0 0.0
      %2264 = vmatprep.subr.mxu0 0.0
      %2265 = vmatpush1.msra.mxu0 0.0
      %2266 = vmatprep.subr.mxu0 0.0
      %2267 = vmatpush1.msra.mxu0 0.0
      %2268 = vmatprep.mubr.f32.mxu0 0.0
      %2269 = vmatmul.mubr.f32.gmra.mrb[0].mxu0 %v479
      %v2270 = vpop.f32.mrb[0].mxu0
      %v2271 = vadd.f32 0.0, %v2270
      %v2272 = vpop.f32.mrb[0].mxu0
      %2273 = vmatprep.mubr.f32.mxu0 0.0
      %2274 = vmatmul.mubr.f32.gmra.mrb[0].mxu0 %v482
      %v2275 = vpop.f32.mrb[0].mxu0
      %v2276 = vadd.f32 0.0, %v2275
      %v2277 = vpop.f32.mrb[0].mxu0
      %2278 = vdwg.mxu0
      %v2279 = vadd.f32 %v2194, %v2271
      %v2280 = vadd.f32 %v2195, %v2276
      %v2281 = vadd.f32 %v2279, %v564
      %v2282 = vadd.f32 %v2280, %v569
      %v2283 = vmul.f32 %v2281, 0.5
      %v2284 = vmul.f32 %v2282, 0.5
      %v2285 = vmul.f32 %v2281, 0.70710677
      %v2286 = vmul.f32 %v2282, 0.70710677
      %v2287 = verf.f32.pop %v2285
      %v2288 = verf.f32.pop %v2286
      %v2289 = vadd.f32 %v2287, 1.0
      %v2290 = vadd.f32 %v2288, 1.0
      %v2291 = vmul.f32 %v2283, %v2289
      %v2292 = vmul.f32 %v2284, %v2290
      %s2293 = scalar_lea.vmem %s194, 80
      %2294 = vst.msk [vmem:[%s2293] sm:$0xff] %vm583, %v2291
      %2295 = vst.msk [vmem:[%s2293 + $0x8] sm:$0xff] %vm583, %v2292
      %v2296 = vld [vmem:[%s2116] sm:$0xff]
      %v2297 = vld [vmem:[%s2116 + $0x8] sm:$0xff]
      %2300 = vrot.lane.b32.xlu0 %v2296, 127
      %v2301 = vpop.permute.xlu0 %2300
      %2302 = vrot.lane.b32.xlu0 %v2297, 127
      %v2303 = vpop.permute.xlu0 %2302
      %2306 = vmatprep.subr.mxu0 0.0
      %2307 = vmatpush1.msra.mxu0 %v2301
      %2308 = vmatprep.subr.mxu0 0.0
      %2309 = vmatpush1.msra.mxu0 %v2303
      %2310 = vmatprep.subr.mxu0 0.0
      %2311 = vmatpush1.msra.mxu0 0.0
      %2312 = vmatprep.subr.mxu0 0.0
      %2313 = vmatpush1.msra.mxu0 0.0
      %2314 = vmatprep.subr.mxu0 0.0
      %2315 = vmatpush1.msra.mxu0 0.0
      %2316 = vmatprep.subr.mxu0 0.0
      %2317 = vmatpush1.msra.mxu0 0.0
      %2318 = vmatprep.subr.mxu0 0.0
      %2319 = vmatpush1.msra.mxu0 0.0
      %2320 = vmatprep.subr.mxu0 0.0
      %2321 = vmatpush1.msra.mxu0 0.0
      %2322 = vmatprep.subr.mxu0 0.0
      %2323 = vmatpush1.msra.mxu0 0.0
      %2324 = vmatprep.subr.mxu0 0.0
      %2325 = vmatpush1.msra.mxu0 0.0
      %2326 = vmatprep.subr.mxu0 0.0
      %2327 = vmatpush1.msra.mxu0 0.0
      %2328 = vmatprep.subr.mxu0 0.0
      %2329 = vmatpush1.msra.mxu0 0.0
      %2330 = vmatprep.subr.mxu0 0.0
      %2331 = vmatpush1.msra.mxu0 0.0
      %2332 = vmatprep.subr.mxu0 0.0
      %2333 = vmatpush1.msra.mxu0 0.0
      %2334 = vmatprep.subr.mxu0 0.0
      %2335 = vmatpush1.msra.mxu0 0.0
      %2336 = vmatprep.subr.mxu0 0.0
      %2337 = vmatpush1.msra.mxu0 0.0
      %2338 = vmatprep.subr.mxu0 0.0
      %2339 = vmatpush1.msra.mxu0 0.0
      %2340 = vmatprep.subr.mxu0 0.0
      %2341 = vmatpush1.msra.mxu0 0.0
      %2342 = vmatprep.subr.mxu0 0.0
      %2343 = vmatpush1.msra.mxu0 0.0
      %2344 = vmatprep.subr.mxu0 0.0
      %2345 = vmatpush1.msra.mxu0 0.0
      %2346 = vmatprep.subr.mxu0 0.0
      %2347 = vmatpush1.msra.mxu0 0.0
      %2348 = vmatprep.subr.mxu0 0.0
      %2349 = vmatpush1.msra.mxu0 0.0
      %2350 = vmatprep.subr.mxu0 0.0
      %2351 = vmatpush1.msra.mxu0 0.0
      %2352 = vmatprep.subr.mxu0 0.0
      %2353 = vmatpush1.msra.mxu0 0.0
      %2354 = vmatprep.subr.mxu0 0.0
      %2355 = vmatpush1.msra.mxu0 0.0
      %2356 = vmatprep.subr.mxu0 0.0
      %2357 = vmatpush1.msra.mxu0 0.0
      %2358 = vmatprep.subr.mxu0 0.0
      %2359 = vmatpush1.msra.mxu0 0.0
      %2360 = vmatprep.subr.mxu0 0.0
      %2361 = vmatpush1.msra.mxu0 0.0
      %2362 = vmatprep.subr.mxu0 0.0
      %2363 = vmatpush1.msra.mxu0 0.0
      %2364 = vmatprep.subr.mxu0 0.0
      %2365 = vmatpush1.msra.mxu0 0.0
      %2366 = vmatprep.subr.mxu0 0.0
      %2367 = vmatpush1.msra.mxu0 0.0
      %2368 = vmatprep.subr.mxu0 0.0
      %2369 = vmatpush1.msra.mxu0 0.0
      %2370 = vmatprep.mubr.f32.mxu0 0.0
      %2371 = vmatmul.mubr.f32.gmra.mrb[0].mxu0 %v221
      %v2372 = vpop.f32.mrb[0].mxu0
      %v2373 = vadd.f32 0.0, %v2372
      %v2374 = vpop.f32.mrb[0].mxu0
      %2375 = vmatprep.mubr.f32.mxu0 0.0
      %2376 = vmatmul.mubr.f32.gmra.mrb[0].mxu0 %v224
      %v2377 = vpop.f32.mrb[0].mxu0
      %v2378 = vadd.f32 0.0, %v2377
      %v2379 = vpop.f32.mrb[0].mxu0
      %2380 = vdwg.mxu0
      %2381 = vmatprep.subr.mxu0 0.0
      %2382 = vmatpush1.msra.mxu0 %v2296
      %2383 = vmatprep.subr.mxu0 0.0
      %2384 = vmatpush1.msra.mxu0 %v2297
      %2385 = vmatprep.subr.mxu0 0.0
      %2386 = vmatpush1.msra.mxu0 0.0
      %2387 = vmatprep.subr.mxu0 0.0
      %2388 = vmatpush1.msra.mxu0 0.0
      %2389 = vmatprep.subr.mxu0 0.0
      %2390 = vmatpush1.msra.mxu0 0.0
      %2391 = vmatprep.subr.mxu0 0.0
      %2392 = vmatpush1.msra.mxu0 0.0
      %2393 = vmatprep.subr.mxu0 0.0
      %2394 = vmatpush1.msra.mxu0 0.0
      %2395 = vmatprep.subr.mxu0 0.0
      %2396 = vmatpush1.msra.mxu0 0.0
      %2397 = vmatprep.subr.mxu0 0.0
      %2398 = vmatpush1.msra.mxu0 0.0
      %2399 = vmatprep.subr.mxu0 0.0
      %2400 = vmatpush1.msra.mxu0 0.0
      %2401 = vmatprep.subr.mxu0 0.0
      %2402 = vmatpush1.msra.mxu0 0.0
      %2403 = vmatprep.subr.mxu0 0.0
      %2404 = vmatpush1.msra.mxu0 0.0
      %2405 = vmatprep.subr.mxu0 0.0
      %2406 = vmatpush1.msra.mxu0 0.0
      %2407 = vmatprep.subr.mxu0 0.0
      %2408 = vmatpush1.msra.mxu0 0.0
      %2409 = vmatprep.subr.mxu0 0.0
      %2410 = vmatpush1.msra.mxu0 0.0
      %2411 = vmatprep.subr.mxu0 0.0
      %2412 = vmatpush1.msra.mxu0 0.0
      %2413 = vmatprep.subr.mxu0 0.0
      %2414 = vmatpush1.msra.mxu0 0.0
      %2415 = vmatprep.subr.mxu0 0.0
      %2416 = vmatpush1.msra.mxu0 0.0
      %2417 = vmatprep.subr.mxu0 0.0
      %2418 = vmatpush1.msra.mxu0 0.0
      %2419 = vmatprep.subr.mxu0 0.0
      %2420 = vmatpush1.msra.mxu0 0.0
      %2421 = vmatprep.subr.mxu0 0.0
      %2422 = vmatpush1.msra.mxu0 0.0
      %2423 = vmatprep.subr.mxu0 0.0
      %2424 = vmatpush1.msra.mxu0 0.0
      %2425 = vmatprep.subr.mxu0 0.0
      %2426 = vmatpush1.msra.mxu0 0.0
      %2427 = vmatprep.subr.mxu0 0.0
      %2428 = vmatpush1.msra.mxu0 0.0
      %2429 = vmatprep.subr.mxu0 0.0
      %2430 = vmatpush1.msra.mxu0 0.0
      %2431 = vmatprep.subr.mxu0 0.0
      %2432 = vmatpush1.msra.mxu0 0.0
      %2433 = vmatprep.subr.mxu0 0.0
      %2434 = vmatpush1.msra.mxu0 0.0
      %2435 = vmatprep.subr.mxu0 0.0
      %2436 = vmatpush1.msra.mxu0 0.0
      %2437 = vmatprep.subr.mxu0 0.0
      %2438 = vmatpush1.msra.mxu0 0.0
      %2439 = vmatprep.subr.mxu0 0.0
      %2440 = vmatpush1.msra.mxu0 0.0
      %2441 = vmatprep.subr.mxu0 0.0
      %2442 = vmatpush1.msra.mxu0 0.0
      %2443 = vmatprep.subr.mxu0 0.0
      %2444 = vmatpush1.msra.mxu0 0.0
      %2445 = vmatprep.mubr.f32.mxu0 0.0
      %2446 = vmatmul.mubr.f32.gmra.mrb[0].mxu0 %v302
      %v2447 = vpop.f32.mrb[0].mxu0
      %v2448 = vadd.f32 %v2373, %v2447
      %v2449 = vpop.f32.mrb[0].mxu0
      %2450 = vmatprep.mubr.f32.mxu0 0.0
      %2451 = vmatmul.mubr.f32.gmra.mrb[0].mxu0 %v305
      %v2452 = vpop.f32.mrb[0].mxu0
      %v2453 = vadd.f32 %v2378, %v2452
      %v2454 = vpop.f32.mrb[0].mxu0
      %2455 = vdwg.mxu0
      %s2456 = sadd.s32 %s196, 7
      %s2457 = smul.u32 %s2456, 16
      %s2458 = scalar_lea.vmem %s184, %s2457
      %v2459 = vld [vmem:[%s2458] sm:$0xff]
      %v2460 = vld [vmem:[%s2458 + $0x8] sm:$0xff]
      %2461 = vmatprep.subr.mxu0 0.0
      %2462 = vmatpush1.msra.mxu0 %v2459
      %2463 = vmatprep.subr.mxu0 0.0
      %2464 = vmatpush1.msra.mxu0 %v2460
      %2465 = vmatprep.subr.mxu0 0.0
      %2466 = vmatpush1.msra.mxu0 0.0
      %2467 = vmatprep.subr.mxu0 0.0
      %2468 = vmatpush1.msra.mxu0 0.0
      %2469 = vmatprep.subr.mxu0 0.0
      %2470 = vmatpush1.msra.mxu0 0.0
      %2471 = vmatprep.subr.mxu0 0.0
      %2472 = vmatpush1.msra.mxu0 0.0
      %2473 = vmatprep.subr.mxu0 0.0
      %2474 = vmatpush1.msra.mxu0 0.0
      %2475 = vmatprep.subr.mxu0 0.0
      %2476 = vmatpush1.msra.mxu0 0.0
      %2477 = vmatprep.subr.mxu0 0.0
      %2478 = vmatpush1.msra.mxu0 0.0
      %2479 = vmatprep.subr.mxu0 0.0
      %2480 = vmatpush1.msra.mxu0 0.0
      %2481 = vmatprep.subr.mxu0 0.0
      %2482 = vmatpush1.msra.mxu0 0.0
      %2483 = vmatprep.subr.mxu0 0.0
      %2484 = vmatpush1.msra.mxu0 0.0
      %2485 = vmatprep.subr.mxu0 0.0
      %2486 = vmatpush1.msra.mxu0 0.0
      %2487 = vmatprep.subr.mxu0 0.0
      %2488 = vmatpush1.msra.mxu0 0.0
      %2489 = vmatprep.subr.mxu0 0.0
      %2490 = vmatpush1.msra.mxu0 0.0
      %2491 = vmatprep.subr.mxu0 0.0
      %2492 = vmatpush1.msra.mxu0 0.0
      %2493 = vmatprep.subr.mxu0 0.0
      %2494 = vmatpush1.msra.mxu0 0.0
      %2495 = vmatprep.subr.mxu0 0.0
      %2496 = vmatpush1.msra.mxu0 0.0
      %2497 = vmatprep.subr.mxu0 0.0
      %2498 = vmatpush1.msra.mxu0 0.0
      %2499 = vmatprep.subr.mxu0 0.0
      %2500 = vmatpush1.msra.mxu0 0.0
      %2501 = vmatprep.subr.mxu0 0.0
      %2502 = vmatpush1.msra.mxu0 0.0
      %2503 = vmatprep.subr.mxu0 0.0
      %2504 = vmatpush1.msra.mxu0 0.0
      %2505 = vmatprep.subr.mxu0 0.0
      %2506 = vmatpush1.msra.mxu0 0.0
      %2507 = vmatprep.subr.mxu0 0.0
      %2508 = vmatpush1.msra.mxu0 0.0
      %2509 = vmatprep.subr.mxu0 0.0
      %2510 = vmatpush1.msra.mxu0 0.0
      %2511 = vmatprep.subr.mxu0 0.0
      %2512 = vmatpush1.msra.mxu0 0.0
      %2513 = vmatprep.subr.mxu0 0.0
      %2514 = vmatpush1.msra.mxu0 0.0
      %2515 = vmatprep.subr.mxu0 0.0
      %2516 = vmatpush1.msra.mxu0 0.0
      %2517 = vmatprep.subr.mxu0 0.0
      %2518 = vmatpush1.msra.mxu0 0.0
      %2519 = vmatprep.subr.mxu0 0.0
      %2520 = vmatpush1.msra.mxu0 0.0
      %2521 = vmatprep.subr.mxu0 0.0
      %2522 = vmatpush1.msra.mxu0 0.0
      %2523 = vmatprep.subr.mxu0 0.0
      %2524 = vmatpush1.msra.mxu0 0.0
      %2525 = vmatprep.mubr.f32.mxu0 0.0
      %2526 = vmatmul.mubr.f32.gmra.mrb[0].mxu0 %v388
      %v2527 = vpop.f32.mrb[0].mxu0
      %v2528 = vadd.f32 0.0, %v2527
      %v2529 = vpop.f32.mrb[0].mxu0
      %2530 = vmatprep.mubr.f32.mxu0 0.0
      %2531 = vmatmul.mubr.f32.gmra.mrb[0].mxu0 %v391
      %v2532 = vpop.f32.mrb[0].mxu0
      %v2533 = vadd.f32 0.0, %v2532
      %v2534 = vpop.f32.mrb[0].mxu0
      %2535 = vdwg.mxu0
      %v2536 = vadd.f32 %v2448, %v2528
      %v2537 = vadd.f32 %v2453, %v2533
      %2540 = vrot.lane.b32.xlu0 %v2459, 127
      %v2541 = vpop.permute.xlu0 %2540
      %2542 = vrot.lane.b32.xlu0 %v2460, 127
      %v2543 = vpop.permute.xlu0 %2542
      %2546 = vmatprep.subr.mxu0 0.0
      %2547 = vmatpush1.msra.mxu0 %v2541
      %2548 = vmatprep.subr.mxu0 0.0
      %2549 = vmatpush1.msra.mxu0 %v2543
      %2550 = vmatprep.subr.mxu0 0.0
      %2551 = vmatpush1.msra.mxu0 0.0
      %2552 = vmatprep.subr.mxu0 0.0
      %2553 = vmatpush1.msra.mxu0 0.0
      %2554 = vmatprep.subr.mxu0 0.0
      %2555 = vmatpush1.msra.mxu0 0.0
      %2556 = vmatprep.subr.mxu0 0.0
      %2557 = vmatpush1.msra.mxu0 0.0
      %2558 = vmatprep.subr.mxu0 0.0
      %2559 = vmatpush1.msra.mxu0 0.0
      %2560 = vmatprep.subr.mxu0 0.0
      %2561 = vmatpush1.msra.mxu0 0.0
      %2562 = vmatprep.subr.mxu0 0.0
      %2563 = vmatpush1.msra.mxu0 0.0
      %2564 = vmatprep.subr.mxu0 0.0
      %2565 = vmatpush1.msra.mxu0 0.0
      %2566 = vmatprep.subr.mxu0 0.0
      %2567 = vmatpush1.msra.mxu0 0.0
      %2568 = vmatprep.subr.mxu0 0.0
      %2569 = vmatpush1.msra.mxu0 0.0
      %2570 = vmatprep.subr.mxu0 0.0
      %2571 = vmatpush1.msra.mxu0 0.0
      %2572 = vmatprep.subr.mxu0 0.0
      %2573 = vmatpush1.msra.mxu0 0.0
      %2574 = vmatprep.subr.mxu0 0.0
      %2575 = vmatpush1.msra.mxu0 0.0
      %2576 = vmatprep.subr.mxu0 0.0
      %2577 = vmatpush1.msra.mxu0 0.0
      %2578 = vmatprep.subr.mxu0 0.0
      %2579 = vmatpush1.msra.mxu0 0.0
      %2580 = vmatprep.subr.mxu0 0.0
      %2581 = vmatpush1.msra.mxu0 0.0
      %2582 = vmatprep.subr.mxu0 0.0
      %2583 = vmatpush1.msra.mxu0 0.0
      %2584 = vmatprep.subr.mxu0 0.0
      %2585 = vmatpush1.msra.mxu0 0.0
      %2586 = vmatprep.subr.mxu0 0.0
      %2587 = vmatpush1.msra.mxu0 0.0
      %2588 = vmatprep.subr.mxu0 0.0
      %2589 = vmatpush1.msra.mxu0 0.0
      %2590 = vmatprep.subr.mxu0 0.0
      %2591 = vmatpush1.msra.mxu0 0.0
      %2592 = vmatprep.subr.mxu0 0.0
      %2593 = vmatpush1.msra.mxu0 0.0
      %2594 = vmatprep.subr.mxu0 0.0
      %2595 = vmatpush1.msra.mxu0 0.0
      %2596 = vmatprep.subr.mxu0 0.0
      %2597 = vmatpush1.msra.mxu0 0.0
      %2598 = vmatprep.subr.mxu0 0.0
      %2599 = vmatpush1.msra.mxu0 0.0
      %2600 = vmatprep.subr.mxu0 0.0
      %2601 = vmatpush1.msra.mxu0 0.0
      %2602 = vmatprep.subr.mxu0 0.0
      %2603 = vmatpush1.msra.mxu0 0.0
      %2604 = vmatprep.subr.mxu0 0.0
      %2605 = vmatpush1.msra.mxu0 0.0
      %2606 = vmatprep.subr.mxu0 0.0
      %2607 = vmatpush1.msra.mxu0 0.0
      %2608 = vmatprep.subr.mxu0 0.0
      %2609 = vmatpush1.msra.mxu0 0.0
      %2610 = vmatprep.mubr.f32.mxu0 0.0
      %2611 = vmatmul.mubr.f32.gmra.mrb[0].mxu0 %v479
      %v2612 = vpop.f32.mrb[0].mxu0
      %v2613 = vadd.f32 0.0, %v2612
      %v2614 = vpop.f32.mrb[0].mxu0
      %2615 = vmatprep.mubr.f32.mxu0 0.0
      %2616 = vmatmul.mubr.f32.gmra.mrb[0].mxu0 %v482
      %v2617 = vpop.f32.mrb[0].mxu0
      %v2618 = vadd.f32 0.0, %v2617
      %v2619 = vpop.f32.mrb[0].mxu0
      %2620 = vdwg.mxu0
      %v2621 = vadd.f32 %v2536, %v2613
      %v2622 = vadd.f32 %v2537, %v2618
      %v2623 = vadd.f32 %v2621, %v564
      %v2624 = vadd.f32 %v2622, %v569
      %v2625 = vmul.f32 %v2623, 0.5
      %v2626 = vmul.f32 %v2624, 0.5
      %v2627 = vmul.f32 %v2623, 0.70710677
      %v2628 = vmul.f32 %v2624, 0.70710677
      %v2629 = verf.f32.pop %v2627
      %v2630 = verf.f32.pop %v2628
      %v2631 = vadd.f32 %v2629, 1.0
      %v2632 = vadd.f32 %v2630, 1.0
      %v2633 = vmul.f32 %v2625, %v2631
      %v2634 = vmul.f32 %v2626, %v2632
      %s2635 = scalar_lea.vmem %s194, 96
      %2636 = vst.msk [vmem:[%s2635] sm:$0xff] %vm583, %v2633
      %2637 = vst.msk [vmem:[%s2635 + $0x8] sm:$0xff] %vm583, %v2634
      %v2638 = vld [vmem:[%s2458] sm:$0xff]
      %v2639 = vld [vmem:[%s2458 + $0x8] sm:$0xff]
      %2642 = vrot.lane.b32.xlu0 %v2638, 127
      %v2643 = vpop.permute.xlu0 %2642
      %2644 = vrot.lane.b32.xlu0 %v2639, 127
      %v2645 = vpop.permute.xlu0 %2644
      %2648 = vmatprep.subr.mxu0 0.0
      %2649 = vmatpush1.msra.mxu0 %v2643
      %2650 = vmatprep.subr.mxu0 0.0
      %2651 = vmatpush1.msra.mxu0 %v2645
      %2652 = vmatprep.subr.mxu0 0.0
      %2653 = vmatpush1.msra.mxu0 0.0
      %2654 = vmatprep.subr.mxu0 0.0
      %2655 = vmatpush1.msra.mxu0 0.0
      %2656 = vmatprep.subr.mxu0 0.0
      %2657 = vmatpush1.msra.mxu0 0.0
      %2658 = vmatprep.subr.mxu0 0.0
      %2659 = vmatpush1.msra.mxu0 0.0
      %2660 = vmatprep.subr.mxu0 0.0
      %2661 = vmatpush1.msra.mxu0 0.0
      %2662 = vmatprep.subr.mxu0 0.0
      %2663 = vmatpush1.msra.mxu0 0.0
      %2664 = vmatprep.subr.mxu0 0.0
      %2665 = vmatpush1.msra.mxu0 0.0
      %2666 = vmatprep.subr.mxu0 0.0
      %2667 = vmatpush1.msra.mxu0 0.0
      %2668 = vmatprep.subr.mxu0 0.0
      %2669 = vmatpush1.msra.mxu0 0.0
      %2670 = vmatprep.subr.mxu0 0.0
      %2671 = vmatpush1.msra.mxu0 0.0
      %2672 = vmatprep.subr.mxu0 0.0
      %2673 = vmatpush1.msra.mxu0 0.0
      %2674 = vmatprep.subr.mxu0 0.0
      %2675 = vmatpush1.msra.mxu0 0.0
      %2676 = vmatprep.subr.mxu0 0.0
      %2677 = vmatpush1.msra.mxu0 0.0
      %2678 = vmatprep.subr.mxu0 0.0
      %2679 = vmatpush1.msra.mxu0 0.0
      %2680 = vmatprep.subr.mxu0 0.0
      %2681 = vmatpush1.msra.mxu0 0.0
      %2682 = vmatprep.subr.mxu0 0.0
      %2683 = vmatpush1.msra.mxu0 0.0
      %2684 = vmatprep.subr.mxu0 0.0
      %2685 = vmatpush1.msra.mxu0 0.0
      %2686 = vmatprep.subr.mxu0 0.0
      %2687 = vmatpush1.msra.mxu0 0.0
      %2688 = vmatprep.subr.mxu0 0.0
      %2689 = vmatpush1.msra.mxu0 0.0
      %2690 = vmatprep.subr.mxu0 0.0
      %2691 = vmatpush1.msra.mxu0 0.0
      %2692 = vmatprep.subr.mxu0 0.0
      %2693 = vmatpush1.msra.mxu0 0.0
      %2694 = vmatprep.subr.mxu0 0.0
      %2695 = vmatpush1.msra.mxu0 0.0
      %2696 = vmatprep.subr.mxu0 0.0
      %2697 = vmatpush1.msra.mxu0 0.0
      %2698 = vmatprep.subr.mxu0 0.0
      %2699 = vmatpush1.msra.mxu0 0.0
      %2700 = vmatprep.subr.mxu0 0.0
      %2701 = vmatpush1.msra.mxu0 0.0
      %2702 = vmatprep.subr.mxu0 0.0
      %2703 = vmatpush1.msra.mxu0 0.0
      %2704 = vmatprep.subr.mxu0 0.0
      %2705 = vmatpush1.msra.mxu0 0.0
      %2706 = vmatprep.subr.mxu0 0.0
      %2707 = vmatpush1.msra.mxu0 0.0
      %2708 = vmatprep.subr.mxu0 0.0
      %2709 = vmatpush1.msra.mxu0 0.0
      %2710 = vmatprep.subr.mxu0 0.0
      %2711 = vmatpush1.msra.mxu0 0.0
      %2712 = vmatprep.mubr.f32.mxu0 0.0
      %2713 = vmatmul.mubr.f32.gmra.mrb[0].mxu0 %v221
      %v2714 = vpop.f32.mrb[0].mxu0
      %v2715 = vadd.f32 0.0, %v2714
      %v2716 = vpop.f32.mrb[0].mxu0
      %2717 = vmatprep.mubr.f32.mxu0 0.0
      %2718 = vmatmul.mubr.f32.gmra.mrb[0].mxu0 %v224
      %v2719 = vpop.f32.mrb[0].mxu0
      %v2720 = vadd.f32 0.0, %v2719
      %v2721 = vpop.f32.mrb[0].mxu0
      %2722 = vdwg.mxu0
      %2723 = vmatprep.subr.mxu0 0.0
      %2724 = vmatpush1.msra.mxu0 %v2638
      %2725 = vmatprep.subr.mxu0 0.0
      %2726 = vmatpush1.msra.mxu0 %v2639
      %2727 = vmatprep.subr.mxu0 0.0
      %2728 = vmatpush1.msra.mxu0 0.0
      %2729 = vmatprep.subr.mxu0 0.0
      %2730 = vmatpush1.msra.mxu0 0.0
      %2731 = vmatprep.subr.mxu0 0.0
      %2732 = vmatpush1.msra.mxu0 0.0
      %2733 = vmatprep.subr.mxu0 0.0
      %2734 = vmatpush1.msra.mxu0 0.0
      %2735 = vmatprep.subr.mxu0 0.0
      %2736 = vmatpush1.msra.mxu0 0.0
      %2737 = vmatprep.subr.mxu0 0.0
      %2738 = vmatpush1.msra.mxu0 0.0
      %2739 = vmatprep.subr.mxu0 0.0
      %2740 = vmatpush1.msra.mxu0 0.0
      %2741 = vmatprep.subr.mxu0 0.0
      %2742 = vmatpush1.msra.mxu0 0.0
      %2743 = vmatprep.subr.mxu0 0.0
      %2744 = vmatpush1.msra.mxu0 0.0
      %2745 = vmatprep.subr.mxu0 0.0
      %2746 = vmatpush1.msra.mxu0 0.0
      %2747 = vmatprep.subr.mxu0 0.0
      %2748 = vmatpush1.msra.mxu0 0.0
      %2749 = vmatprep.subr.mxu0 0.0
      %2750 = vmatpush1.msra.mxu0 0.0
      %2751 = vmatprep.subr.mxu0 0.0
      %2752 = vmatpush1.msra.mxu0 0.0
      %2753 = vmatprep.subr.mxu0 0.0
      %2754 = vmatpush1.msra.mxu0 0.0
      %2755 = vmatprep.subr.mxu0 0.0
      %2756 = vmatpush1.msra.mxu0 0.0
      %2757 = vmatprep.subr.mxu0 0.0
      %2758 = vmatpush1.msra.mxu0 0.0
      %2759 = vmatprep.subr.mxu0 0.0
      %2760 = vmatpush1.msra.mxu0 0.0
      %2761 = vmatprep.subr.mxu0 0.0
      %2762 = vmatpush1.msra.mxu0 0.0
      %2763 = vmatprep.subr.mxu0 0.0
      %2764 = vmatpush1.msra.mxu0 0.0
      %2765 = vmatprep.subr.mxu0 0.0
      %2766 = vmatpush1.msra.mxu0 0.0
      %2767 = vmatprep.subr.mxu0 0.0
      %2768 = vmatpush1.msra.mxu0 0.0
      %2769 = vmatprep.subr.mxu0 0.0
      %2770 = vmatpush1.msra.mxu0 0.0
      %2771 = vmatprep.subr.mxu0 0.0
      %2772 = vmatpush1.msra.mxu0 0.0
      %2773 = vmatprep.subr.mxu0 0.0
      %2774 = vmatpush1.msra.mxu0 0.0
      %2775 = vmatprep.subr.mxu0 0.0
      %2776 = vmatpush1.msra.mxu0 0.0
      %2777 = vmatprep.subr.mxu0 0.0
      %2778 = vmatpush1.msra.mxu0 0.0
      %2779 = vmatprep.subr.mxu0 0.0
      %2780 = vmatpush1.msra.mxu0 0.0
      %2781 = vmatprep.subr.mxu0 0.0
      %2782 = vmatpush1.msra.mxu0 0.0
      %2783 = vmatprep.subr.mxu0 0.0
      %2784 = vmatpush1.msra.mxu0 0.0
      %2785 = vmatprep.subr.mxu0 0.0
      %2786 = vmatpush1.msra.mxu0 0.0
      %2787 = vmatprep.mubr.f32.mxu0 0.0
      %2788 = vmatmul.mubr.f32.gmra.mrb[0].mxu0 %v302
      %v2789 = vpop.f32.mrb[0].mxu0
      %v2790 = vadd.f32 %v2715, %v2789
      %v2791 = vpop.f32.mrb[0].mxu0
      %2792 = vmatprep.mubr.f32.mxu0 0.0
      %2793 = vmatmul.mubr.f32.gmra.mrb[0].mxu0 %v305
      %v2794 = vpop.f32.mrb[0].mxu0
      %v2795 = vadd.f32 %v2720, %v2794
      %v2796 = vpop.f32.mrb[0].mxu0
      %2797 = vdwg.mxu0
      %s2798 = sadd.s32 %s196, 8
      %s2799 = smul.u32 %s2798, 16
      %s2800 = scalar_lea.vmem %s184, %s2799
      %v2801 = vld [vmem:[%s2800] sm:$0xff]
      %v2802 = vld [vmem:[%s2800 + $0x8] sm:$0xff]
      %2803 = vmatprep.subr.mxu0 0.0
      %2804 = vmatpush1.msra.mxu0 %v2801
      %2805 = vmatprep.subr.mxu0 0.0
      %2806 = vmatpush1.msra.mxu0 %v2802
      %2807 = vmatprep.subr.mxu0 0.0
      %2808 = vmatpush1.msra.mxu0 0.0
      %2809 = vmatprep.subr.mxu0 0.0
      %2810 = vmatpush1.msra.mxu0 0.0
      %2811 = vmatprep.subr.mxu0 0.0
      %2812 = vmatpush1.msra.mxu0 0.0
      %2813 = vmatprep.subr.mxu0 0.0
      %2814 = vmatpush1.msra.mxu0 0.0
      %2815 = vmatprep.subr.mxu0 0.0
      %2816 = vmatpush1.msra.mxu0 0.0
      %2817 = vmatprep.subr.mxu0 0.0
      %2818 = vmatpush1.msra.mxu0 0.0
      %2819 = vmatprep.subr.mxu0 0.0
      %2820 = vmatpush1.msra.mxu0 0.0
      %2821 = vmatprep.subr.mxu0 0.0
      %2822 = vmatpush1.msra.mxu0 0.0
      %2823 = vmatprep.subr.mxu0 0.0
      %2824 = vmatpush1.msra.mxu0 0.0
      %2825 = vmatprep.subr.mxu0 0.0
      %2826 = vmatpush1.msra.mxu0 0.0
      %2827 = vmatprep.subr.mxu0 0.0
      %2828 = vmatpush1.msra.mxu0 0.0
      %2829 = vmatprep.subr.mxu0 0.0
      %2830 = vmatpush1.msra.mxu0 0.0
      %2831 = vmatprep.subr.mxu0 0.0
      %2832 = vmatpush1.msra.mxu0 0.0
      %2833 = vmatprep.subr.mxu0 0.0
      %2834 = vmatpush1.msra.mxu0 0.0
      %2835 = vmatprep.subr.mxu0 0.0
      %2836 = vmatpush1.msra.mxu0 0.0
      %2837 = vmatprep.subr.mxu0 0.0
      %2838 = vmatpush1.msra.mxu0 0.0
      %2839 = vmatprep.subr.mxu0 0.0
      %2840 = vmatpush1.msra.mxu0 0.0
      %2841 = vmatprep.subr.mxu0 0.0
      %2842 = vmatpush1.msra.mxu0 0.0
      %2843 = vmatprep.subr.mxu0 0.0
      %2844 = vmatpush1.msra.mxu0 0.0
      %2845 = vmatprep.subr.mxu0 0.0
      %2846 = vmatpush1.msra.mxu0 0.0
      %2847 = vmatprep.subr.mxu0 0.0
      %2848 = vmatpush1.msra.mxu0 0.0
      %2849 = vmatprep.subr.mxu0 0.0
      %2850 = vmatpush1.msra.mxu0 0.0
      %2851 = vmatprep.subr.mxu0 0.0
      %2852 = vmatpush1.msra.mxu0 0.0
      %2853 = vmatprep.subr.mxu0 0.0
      %2854 = vmatpush1.msra.mxu0 0.0
      %2855 = vmatprep.subr.mxu0 0.0
      %2856 = vmatpush1.msra.mxu0 0.0
      %2857 = vmatprep.subr.mxu0 0.0
      %2858 = vmatpush1.msra.mxu0 0.0
      %2859 = vmatprep.subr.mxu0 0.0
      %2860 = vmatpush1.msra.mxu0 0.0
      %2861 = vmatprep.subr.mxu0 0.0
      %2862 = vmatpush1.msra.mxu0 0.0
      %2863 = vmatprep.subr.mxu0 0.0
      %2864 = vmatpush1.msra.mxu0 0.0
      %2865 = vmatprep.subr.mxu0 0.0
      %2866 = vmatpush1.msra.mxu0 0.0
      %2867 = vmatprep.mubr.f32.mxu0 0.0
      %2868 = vmatmul.mubr.f32.gmra.mrb[0].mxu0 %v388
      %v2869 = vpop.f32.mrb[0].mxu0
      %v2870 = vadd.f32 0.0, %v2869
      %v2871 = vpop.f32.mrb[0].mxu0
      %2872 = vmatprep.mubr.f32.mxu0 0.0
      %2873 = vmatmul.mubr.f32.gmra.mrb[0].mxu0 %v391
      %v2874 = vpop.f32.mrb[0].mxu0
      %v2875 = vadd.f32 0.0, %v2874
      %v2876 = vpop.f32.mrb[0].mxu0
      %2877 = vdwg.mxu0
      %v2878 = vadd.f32 %v2790, %v2870
      %v2879 = vadd.f32 %v2795, %v2875
      %2882 = vrot.lane.b32.xlu0 %v2801, 127
      %v2883 = vpop.permute.xlu0 %2882
      %2884 = vrot.lane.b32.xlu0 %v2802, 127
      %v2885 = vpop.permute.xlu0 %2884
      %2888 = vmatprep.subr.mxu0 0.0
      %2889 = vmatpush1.msra.mxu0 %v2883
      %2890 = vmatprep.subr.mxu0 0.0
      %2891 = vmatpush1.msra.mxu0 %v2885
      %2892 = vmatprep.subr.mxu0 0.0
      %2893 = vmatpush1.msra.mxu0 0.0
      %2894 = vmatprep.subr.mxu0 0.0
      %2895 = vmatpush1.msra.mxu0 0.0
      %2896 = vmatprep.subr.mxu0 0.0
      %2897 = vmatpush1.msra.mxu0 0.0
      %2898 = vmatprep.subr.mxu0 0.0
      %2899 = vmatpush1.msra.mxu0 0.0
      %2900 = vmatprep.subr.mxu0 0.0
      %2901 = vmatpush1.msra.mxu0 0.0
      %2902 = vmatprep.subr.mxu0 0.0
      %2903 = vmatpush1.msra.mxu0 0.0
      %2904 = vmatprep.subr.mxu0 0.0
      %2905 = vmatpush1.msra.mxu0 0.0
      %2906 = vmatprep.subr.mxu0 0.0
      %2907 = vmatpush1.msra.mxu0 0.0
      %2908 = vmatprep.subr.mxu0 0.0
      %2909 = vmatpush1.msra.mxu0 0.0
      %2910 = vmatprep.subr.mxu0 0.0
      %2911 = vmatpush1.msra.mxu0 0.0
      %2912 = vmatprep.subr.mxu0 0.0
      %2913 = vmatpush1.msra.mxu0 0.0
      %2914 = vmatprep.subr.mxu0 0.0
      %2915 = vmatpush1.msra.mxu0 0.0
      %2916 = vmatprep.subr.mxu0 0.0
      %2917 = vmatpush1.msra.mxu0 0.0
      %2918 = vmatprep.subr.mxu0 0.0
      %2919 = vmatpush1.msra.mxu0 0.0
      %2920 = vmatprep.subr.mxu0 0.0
      %2921 = vmatpush1.msra.mxu0 0.0
      %2922 = vmatprep.subr.mxu0 0.0
      %2923 = vmatpush1.msra.mxu0 0.0
      %2924 = vmatprep.subr.mxu0 0.0
      %2925 = vmatpush1.msra.mxu0 0.0
      %2926 = vmatprep.subr.mxu0 0.0
      %2927 = vmatpush1.msra.mxu0 0.0
      %2928 = vmatprep.subr.mxu0 0.0
      %2929 = vmatpush1.msra.mxu0 0.0
      %2930 = vmatprep.subr.mxu0 0.0
      %2931 = vmatpush1.msra.mxu0 0.0
      %2932 = vmatprep.subr.mxu0 0.0
      %2933 = vmatpush1.msra.mxu0 0.0
      %2934 = vmatprep.subr.mxu0 0.0
      %2935 = vmatpush1.msra.mxu0 0.0
      %2936 = vmatprep.subr.mxu0 0.0
      %2937 = vmatpush1.msra.mxu0 0.0
      %2938 = vmatprep.subr.mxu0 0.0
      %2939 = vmatpush1.msra.mxu0 0.0
      %2940 = vmatprep.subr.mxu0 0.0
      %2941 = vmatpush1.msra.mxu0 0.0
      %2942 = vmatprep.subr.mxu0 0.0
      %2943 = vmatpush1.msra.mxu0 0.0
      %2944 = vmatprep.subr.mxu0 0.0
      %2945 = vmatpush1.msra.mxu0 0.0
      %2946 = vmatprep.subr.mxu0 0.0
      %2947 = vmatpush1.msra.mxu0 0.0
      %2948 = vmatprep.subr.mxu0 0.0
      %2949 = vmatpush1.msra.mxu0 0.0
      %2950 = vmatprep.subr.mxu0 0.0
      %2951 = vmatpush1.msra.mxu0 0.0
      %2952 = vmatprep.mubr.f32.mxu0 0.0
      %2953 = vmatmul.mubr.f32.gmra.mrb[0].mxu0 %v479
      %v2954 = vpop.f32.mrb[0].mxu0
      %v2955 = vadd.f32 0.0, %v2954
      %v2956 = vpop.f32.mrb[0].mxu0
      %2957 = vmatprep.mubr.f32.mxu0 0.0
      %2958 = vmatmul.mubr.f32.gmra.mrb[0].mxu0 %v482
      %v2959 = vpop.f32.mrb[0].mxu0
      %v2960 = vadd.f32 0.0, %v2959
      %v2961 = vpop.f32.mrb[0].mxu0
      %2962 = vdwg.mxu0
      %v2963 = vadd.f32 %v2878, %v2955
      %v2964 = vadd.f32 %v2879, %v2960
      %v2965 = vadd.f32 %v2963, %v564
      %v2966 = vadd.f32 %v2964, %v569
      %v2967 = vmul.f32 %v2965, 0.5
      %v2968 = vmul.f32 %v2966, 0.5
      %v2969 = vmul.f32 %v2965, 0.70710677
      %v2970 = vmul.f32 %v2966, 0.70710677
      %v2971 = verf.f32.pop %v2969
      %v2972 = verf.f32.pop %v2970
      %v2973 = vadd.f32 %v2971, 1.0
      %v2974 = vadd.f32 %v2972, 1.0
      %v2975 = vmul.f32 %v2967, %v2973
      %v2976 = vmul.f32 %v2968, %v2974
      %s2977 = scalar_lea.vmem %s194, 112
      %2978 = vst.msk [vmem:[%s2977] sm:$0xff] %vm583, %v2975
      %2979 = vst.msk [vmem:[%s2977 + $0x8] sm:$0xff] %vm583, %v2976
      %s2980 = smul.u32 8, %s19
      %p2981 = scmp.lt.s32.totalorder %s18, 1
      %s2982 = scalar_select %p2981, %s18, 1
      %p2983 = scmp.lt.s32.totalorder %s2980, 7
      %s2984 = scalar_select %p2983, %s2980, 7
      %s2985 = smul.addr %s2984, 2
      %s2986 = smul.addr %s2982, 16
      %s2987 = sadd.s32 %s2985, %s2986
      %s2988 = smul.addr %s2987, 8
      %s2989 = scalar_lea.vmem %s3, %s2988
      // Predicated region
      $region33: #{recnext_stem.2} parent=31 // pred_check
        %p2990 = pneg %p114
      $region34: #{recnext_stem.2} parent=31 // pred_check_branch
        %2992 = sbr.rel (%p2990) target = $region36
      $region35: #{recnext_stem.2} parent=31 // pred_region
        %s2993 = smul.u32 8, %s19
      $region36: #{recnext_stem.2} parent=31 // pred_fallthru
        _
    $region32: #{recnext_stem.2} parent=5 // pred_fallthru
      _
    %p2994 = scmp.le.s32.totalorder 2, %s9
    // Predicated region
    $region37: #{recnext_stem.2} parent=5 // pred_check
      %p2995 = pneg %p2994
    $region38: #{recnext_stem.2} parent=5 // pred_check_branch
      %2997 = sbr.rel (%p2995) target = $region40
    $region39: #{recnext_stem.2} parent=5 // pred_region
      %s2998 = ssub.s32 %s9, 2
      // Predicated region
      $region41: #{recnext_stem.2} parent=39 // pred_check
        %p2999 = pneg %p120
      $region42: #{recnext_stem.2} parent=39 // pred_check_branch
        %3001 = sbr.rel (%p2999) target = $region44
      $region43: #{recnext_stem.2} parent=39 // pred_region
        %s3002 = smul.u32 8, %s21
        %p3003 = scmp.lt.s32.totalorder %s20, 1
        %s3004 = scalar_select %p3003, %s20, 1
        %p3005 = scmp.lt.s32.totalorder %s3002, 7
        %s3006 = scalar_select %p3005, %s3002, 7
        %s3007 = smul.addr %s3006, 2
        %s3008 = smul.addr %s3004, 16
        %s3009 = sadd.s32 %s3007, %s3008
        %s3010 = smul.addr %s3009, 8
        %s3011 = scalar_lea.vmem %s3, %s3010
      $region44: #{recnext_stem.2} parent=39 // pred_fallthru
        _
    $region40: #{recnext_stem.2} parent=5 // pred_fallthru
      _
  $region6: #{recnext_stem.2} parent=0 // loop_footer
    %s13 = sadd.s32 1, %s9
  $region7: #{recnext_stem.2} parent=0 // loop_footer_branch
    %8 = sbr.rel target = $region3
  $region8: #{recnext_stem.2} parent=0 // loop_exit
    _

</llo_original>
